<compile_context>
chip_gen: v5e
topology: v5e:2x2
jax: 0.10.0
libtpu: 0.0.40
codegen_flags: <defaults>
</compile_context>

<pallas_src>
import math
from functools import partial

import jax
import jax.numpy as jnp
from jax.experimental import pallas as pl
from jax.experimental.pallas import tpu as pltpu


# ----------------------------- Pallas kernels ------------------------------

def _embed_kernel(ids_ref, emb_ref, pe_ref, o_ref, *, scale):
    # ids_ref: (1, S, 1) int32; emb_ref: (V, D); pe_ref: (S, D); o_ref: (1, S, D)
    ids = ids_ref[0]                                        # (S, 1)
    S = ids.shape[0]
    V = emb_ref.shape[0]
    iota = jax.lax.broadcasted_iota(jnp.int32, (S, V), 1)   # (S, V)
    onehot = (iota == ids).astype(jnp.float32)              # one-hot gather via MXU
    e = jnp.dot(onehot, emb_ref[...], preferred_element_type=jnp.float32)
    o_ref[0] = e * jnp.float32(scale) + pe_ref[...]


def _mha_block_kernel(q_ref, kv_ref, mask_ref, wq_ref, bq_ref, wkv_ref, bkv_ref,
                      wo_ref, bo_ref, g_ref, beta_ref, o_ref, probs_ref,
                      *, num_heads):
    # One batch element per grid step; all heads computed inside the kernel.
    q_in = q_ref[0]             # (Sq, D)   -- also the residual branch
    kv_in = kv_ref[0]           # (Sk, D)
    m = mask_ref[0, 0]          # (Sq, Sk)  -- shared across heads (free VPU select)
    D = q_in.shape[-1]
    dk = D // num_heads
    inv_sqrt_dk = 1.0 / math.sqrt(dk)

    # Fused projections: Q = x_q @ Wq ; [K|V] = x_kv @ [Wk|Wv]  (single matmul)
    Q = jnp.dot(q_in, wq_ref[...], preferred_element_type=jnp.float32) + bq_ref[...]
    KV = jnp.dot(kv_in, wkv_ref[...], preferred_element_type=jnp.float32) + bkv_ref[...]
    K = KV[:, :D]
    V = KV[:, D:]

    ctx_heads = []
    for h in range(num_heads):                      # static unrolled head loop
        Qh = Q[:, h * dk:(h + 1) * dk]              # (Sq, dk)
        Kh = K[:, h * dk:(h + 1) * dk]              # (Sk, dk)
        Vh = V[:, h * dk:(h + 1) * dk]              # (Sk, dk)
        s = jnp.dot(Qh, Kh.T, preferred_element_type=jnp.float32) * inv_sqrt_dk
        s = jnp.where(m == 0.0, jnp.float32(-1e9), s)       # masked_fill(mask==0, -1e9)
        s = s - jnp.max(s, axis=-1, keepdims=True)
        e = jnp.exp(s)
        p = e / jnp.sum(e, axis=-1, keepdims=True)          # softmax over keys
        probs_ref[0, h] = p
        ctx_heads.append(jnp.dot(p, Vh, preferred_element_type=jnp.float32))
    ctx = jnp.concatenate(ctx_heads, axis=-1)                # (Sq, D) head merge

    attn_out = jnp.dot(ctx, wo_ref[...], preferred_element_type=jnp.float32) + bo_ref[...]

    # residual + LayerNorm (eps = 1e-5, PyTorch default)
    h_res = q_in + attn_out
    mu = jnp.mean(h_res, axis=-1, keepdims=True)
    var = jnp.mean((h_res - mu) ** 2, axis=-1, keepdims=True)
    o_ref[0] = (h_res - mu) * jax.lax.rsqrt(var + 1e-5) * g_ref[...] + beta_ref[...]


def _ffn_block_kernel(x_ref, w1_ref, b1_ref, w2_ref, b2_ref, g_ref, beta_ref, o_ref):
    # x@W1 + ReLU + @W2 + residual + LayerNorm, fused.
    x = x_ref[0]                                             # (S, D)
    h = jnp.dot(x, w1_ref[...], preferred_element_type=jnp.float32) + b1_ref[...]
    h = jnp.maximum(h, 0.0)
    ff = jnp.dot(h, w2_ref[...], preferred_element_type=jnp.float32) + b2_ref[...]
    r = x + ff
    mu = jnp.mean(r, axis=-1, keepdims=True)
    var = jnp.mean((r - mu) ** 2, axis=-1, keepdims=True)
    o_ref[0] = (r - mu) * jax.lax.rsqrt(var + 1e-5) * g_ref[...] + beta_ref[...]


def _fc_out_kernel(x_ref, w_ref, b_ref, o_ref):
    o_ref[0] = (jnp.dot(x_ref[0], w_ref[...], preferred_element_type=jnp.float32)
                + b_ref[...])


# ------------------------------ pallas wrappers ------------------------------

_PARALLEL_B = pltpu.CompilerParams(dimension_semantics=("parallel",))


def embed_block(ids, emb, pe, d_model):
    B, S = ids.shape
    V, D = emb.shape
    ids3 = ids.reshape(B, S, 1).astype(jnp.int32)
    return pl.pallas_call(
        partial(_embed_kernel, scale=math.sqrt(d_model)),
        grid=(B,),
        in_specs=[
            pl.BlockSpec((1, S, 1), lambda b: (b, 0, 0)),
            pl.BlockSpec((V, D), lambda b: (0, 0)),
            pl.BlockSpec((S, D), lambda b: (0, 0)),
        ],
        out_specs=pl.BlockSpec((1, S, D), lambda b: (b, 0, 0)),
        out_shape=jax.ShapeDtypeStruct((B, S, D), jnp.float32),
        compiler_params=_PARALLEL_B,
    )(ids3, emb, pe)


def mha_block(x_q, x_kv, mask, p, ln_g, ln_b, num_heads):
    """Fused multi-head attention sub-block: proj + attention + out-proj + add + LN."""
    B, Sq, D = x_q.shape
    Sk = x_kv.shape[1]
    wkv = jnp.concatenate([p["wk"], p["wv"]], axis=1)           # (D, 2D)
    bkv = jnp.concatenate([p["bk"], p["bv"]], axis=0).reshape(1, 2 * D)
    # Only broadcast over the (small) query axis; heads stay un-broadcast.
    mask_b = jnp.broadcast_to(mask, (B, 1, Sq, Sk)).astype(jnp.float32)

    out, probs = pl.pallas_call(
        partial(_mha_block_kernel, num_heads=num_heads),
        grid=(B,),
        in_specs=[
            pl.BlockSpec((1, Sq, D), lambda b: (b, 0, 0)),
            pl.BlockSpec((1, Sk, D), lambda b: (b, 0, 0)),
            pl.BlockSpec((1, 1, Sq, Sk), lambda b: (b, 0, 0, 0)),
            pl.BlockSpec((D, D), lambda b: (0, 0)),
            pl.BlockSpec((1, D), lambda b: (0, 0)),
            pl.BlockSpec((D, 2 * D), lambda b: (0, 0)),
            pl.BlockSpec((1, 2 * D), lambda b: (0, 0)),
            pl.BlockSpec((D, D), lambda b: (0, 0)),
            pl.BlockSpec((1, D), lambda b: (0, 0)),
            pl.BlockSpec((1, D), lambda b: (0, 0)),
            pl.BlockSpec((1, D), lambda b: (0, 0)),
        ],
        out_specs=[
            pl.BlockSpec((1, Sq, D), lambda b: (b, 0, 0)),
            pl.BlockSpec((1, num_heads, Sq, Sk), lambda b: (b, 0, 0, 0)),
        ],
        out_shape=[
            jax.ShapeDtypeStruct((B, Sq, D), jnp.float32),
            jax.ShapeDtypeStruct((B, num_heads, Sq, Sk), jnp.float32),
        ],
        compiler_params=_PARALLEL_B,
    )(x_q, x_kv, mask_b,
      p["wq"], p["bq"].reshape(1, D), wkv, bkv,
      p["wo"], p["bo"].reshape(1, D),
      ln_g.reshape(1, D), ln_b.reshape(1, D))
    return out, probs


def ffn_block(x, w1, b1, w2, b2, ln_g, ln_b):
    B, S, D = x.shape
    F = w1.shape[1]
    return pl.pallas_call(
        _ffn_block_kernel,
        grid=(B,),
        in_specs=[
            pl.BlockSpec((1, S, D), lambda b: (b, 0, 0)),
            pl.BlockSpec((D, F), lambda b: (0, 0)),
            pl.BlockSpec((1, F), lambda b: (0, 0)),
            pl.BlockSpec((F, D), lambda b: (0, 0)),
            pl.BlockSpec((1, D), lambda b: (0, 0)),
            pl.BlockSpec((1, D), lambda b: (0, 0)),
            pl.BlockSpec((1, D), lambda b: (0, 0)),
        ],
        out_specs=pl.BlockSpec((1, S, D), lambda b: (b, 0, 0)),
        out_shape=jax.ShapeDtypeStruct((B, S, D), jnp.float32),
        compiler_params=_PARALLEL_B,
    )(x, w1, b1.reshape(1, F), w2, b2.reshape(1, D),
      ln_g.reshape(1, D), ln_b.reshape(1, D))


def fc_out_block(x, w, b):
    B, S, D = x.shape
    V = w.shape[1]
    return pl.pallas_call(
        _fc_out_kernel,
        grid=(B,),
        in_specs=[
            pl.BlockSpec((1, S, D), lambda b: (b, 0, 0)),
            pl.BlockSpec((D, V), lambda b: (0, 0)),
            pl.BlockSpec((1, V), lambda b: (0, 0)),
        ],
        out_specs=pl.BlockSpec((1, S, V), lambda b: (b, 0, 0)),
        out_shape=jax.ShapeDtypeStruct((B, S, V), jnp.float32),
        compiler_params=_PARALLEL_B,
    )(x, w, b.reshape(1, V))


# ------------------------------ model wrapper -------------------------------

def positional_encoding(seq_len, d_model):
    pos = jnp.arange(seq_len, dtype=jnp.float32)[:, None]
    div = jnp.exp(jnp.arange(0, d_model, 2, dtype=jnp.float32)
                  * (-math.log(10000.0) / d_model))
    pe = jnp.zeros((seq_len, d_model), jnp.float32)
    pe = pe.at[:, 0::2].set(jnp.sin(pos * div))
    pe = pe.at[:, 1::2].set(jnp.cos(pos * div))
    return pe


def decoder_forward(params, ids, enc_output, src_mask, tgt_mask, num_heads):
    d_model = params["embedding"].shape[1]
    S = ids.shape[1]
    pe = positional_encoding(S, d_model)

    x = embed_block(ids, params["embedding"], pe, d_model)   # embed*sqrt(D)+PE, dropout=id

    attention_weights = {}
    for i, lp in enumerate(params["layers"]):
        x, block1 = mha_block(x, x, tgt_mask, lp["self_attn"],
                              lp["ln1_g"], lp["ln1_b"], num_heads)
        x, block2 = mha_block(x, enc_output, src_mask, lp["cross_attn"],
                              lp["ln2_g"], lp["ln2_b"], num_heads)
        x = ffn_block(x, lp["w1"], lp["b1"], lp["w2"], lp["b2"],
                      lp["ln3_g"], lp["ln3_b"])
        attention_weights[f"decoder_layer{i + 1}_block1"] = block1
        attention_weights[f"decoder_layer{i + 1}_block2"] = block2

    final_output = fc_out_block(x, params["fc_w"], params["fc_b"])
    return final_output, attention_weights


# --------------------------- pure-JAX reference ------------------------------

def ref_decoder(params, ids, enc, src_mask, tgt_mask, num_heads):
    d_model = params["embedding"].shape[1]
    S = ids.shape[1]
    pe = positional_encoding(S, d_model)
    x = params["embedding"][ids] * math.sqrt(d_model) + pe[None]

    def lin(a, w, b):
        return a @ w + b

    def mha(p, q, k, v, mask):
        B, Sq, D = q.shape
        Sk = k.shape[1]
        dk = D // num_heads
        Q = lin(q, p["wq"], p["bq"]).reshape(B, Sq, num_heads, dk).transpose(0, 2, 1, 3)
        K = lin(k, p["wk"], p["bk"]).reshape(B, Sk, num_heads, dk).transpose(0, 2, 1, 3)
        V = lin(v, p["wv"], p["bv"]).reshape(B, Sk, num_heads, dk).transpose(0, 2, 1, 3)
        scores = jnp.einsum("bhqd,bhkd->bhqk", Q, K) / math.sqrt(dk)
        scores = jnp.where(mask == 0.0, -1e9, scores)
        probs = jax.nn.softmax(scores, axis=-1)
        out = jnp.einsum("bhqk,bhkd->bhqd", probs, V)
        out = out.transpose(0, 2, 1, 3).reshape(B, Sq, D)
        return lin(out, p["wo"], p["bo"]), probs

    def ln(h, g, b):
        mu = jnp.mean(h, -1, keepdims=True)
        var = jnp.mean((h - mu) ** 2, -1, keepdims=True)
        return (h - mu) / jnp.sqrt(var + 1e-5) * g + b

    attn = {}
    for i, lp in enumerate(params["layers"]):
        a1, b1 = mha(lp["self_attn"], x, x, x, tgt_mask)
        x = ln(x + a1, lp["ln1_g"], lp["ln1_b"])
        a2, b2 = mha(lp["cross_attn"], x, enc, enc, src_mask)
        x = ln(x + a2, lp["ln2_g"], lp["ln2_b"])
        ff = lin(jnp.maximum(lin(x, lp["w1"], lp["b1"]), 0.0), lp["w2"], lp["b2"])
        x = ln(x + ff, lp["ln3_g"], lp["ln3_b"])
        attn[f"decoder_layer{i + 1}_block1"] = b1
        attn[f"decoder_layer{i + 1}_block2"] = b2
    return lin(x, params["fc_w"], params["fc_b"]), attn


# ----------------------------------- main ------------------------------------

def init_params(key, num_layers, d_model, num_heads, d_ff, vocab_size):
    counter = [0]

    def nxt():
        k = jax.random.fold_in(key, counter[0])
        counter[0] += 1
        return k

    def w(shape, scale):
        return jax.random.normal(nxt(), shape, jnp.float32) * scale

    def mha_params():
        s = 1.0 / math.sqrt(d_model)
        return {
            "wq": w((d_model, d_model), s), "bq": w((d_model,), s),
            "wk": w((d_model, d_model), s), "bk": w((d_model,), s),
            "wv": w((d_model, d_model), s), "bv": w((d_model,), s),
            "wo": w((d_model, d_model), s), "bo": w((d_model,), s),
        }

    layers = []
    for _ in range(num_layers):
        layers.append({
            "self_attn": mha_params(),
            "cross_attn": mha_params(),
            "w1": w((d_model, d_ff), 1.0 / math.sqrt(d_model)),
            "b1": w((d_ff,), 0.02),
            "w2": w((d_ff, d_model), 1.0 / math.sqrt(d_ff)),
            "b2": w((d_model,), 0.02),
            "ln1_g": 1.0 + w((d_model,), 0.1), "ln1_b": w((d_model,), 0.1),
            "ln2_g": 1.0 + w((d_model,), 0.1), "ln2_b": w((d_model,), 0.1),
            "ln3_g": 1.0 + w((d_model,), 0.1), "ln3_b": w((d_model,), 0.1),
        })

    return {
        "embedding": w((vocab_size, d_model), 1.0),
        "layers": layers,
        "fc_w": w((d_model, vocab_size), 1.0 / math.sqrt(d_model)),
        "fc_b": w((vocab_size,), 0.02),
    }


if __name__ == "__main__":
    d_model, num_heads, d_ff = 32, 4, 64
    vocab_size, num_layers = 64, 2
    B, S_tgt, S_src = 2, 8, 8

    key = jax.random.PRNGKey(0)
    k_p, k_ids, k_e = jax.random.split(key, 3)
    params = init_params(k_p, num_layers, d_model, num_heads, d_ff, vocab_size)

    ids = jax.random.randint(k_ids, (B, S_tgt), 0, vocab_size, dtype=jnp.int32)
    enc_output = jax.random.normal(k_e, (B, S_src, d_model), jnp.float32)

    # masks: 1 = attend, 0 = masked (matches masked_fill(mask == 0, -1e9))
    tgt_mask = jnp.broadcast_to(
        jnp.tril(jnp.ones((S_tgt, S_tgt), jnp.float32)), (B, 1, S_tgt, S_tgt))
    src_mask = jnp.ones((B, 1, 1, S_src), jnp.float32)

    fwd = jax.jit(partial(decoder_forward, num_heads=num_heads))
    out, attn = fwd(params, ids, enc_output, src_mask, tgt_mask)
    jax.block_until_ready((out, attn))

    ref_out, ref_attn = ref_decoder(params, ids, enc_output, src_mask, tgt_mask,
                                    num_heads)

    assert out.shape == (B, S_tgt, vocab_size)
    assert set(attn.keys()) == set(ref_attn.keys())
    assert jnp.allclose(out, ref_out, rtol=1e-4, atol=1e-4), \
        float(jnp.max(jnp.abs(out - ref_out)))
    for name in ref_attn:
        assert attn[name].shape == ref_attn[name].shape
        assert jnp.allclose(attn[name], ref_attn[name], rtol=1e-4, atol=1e-4), name

    print("KERNEL_OK")
</pallas_src>

<mosaic_0001>
module attributes {stable_mosaic.version = 11 : i64} {
  func.func @_embed_kernel(%arg0: i32, %arg1: memref<1x8x1xi32, #tpu.memory_space<vmem>>, %arg2: memref<64x32xf32, #tpu.memory_space<vmem>>, %arg3: memref<8x32xf32, #tpu.memory_space<vmem>>, %arg4: memref<1x8x32xf32, #tpu.memory_space<vmem>>) attributes {dimension_semantics = [#tpu.dimension_semantics<parallel>], iteration_bounds = array<i64: 2>, scalar_prefetch = 0 : i64, scratch_operands = 0 : i64, tpu.core_type = #tpu.core_type<tc>, window_params = [{transform_indices = @transform_0, window_bounds = array<i64: 1, 8, 1>}, {pipeline_mode = #tpu.pipeline_mode<synchronous>, transform_indices = @transform_1, window_bounds = array<i64: 64, 32>}, {pipeline_mode = #tpu.pipeline_mode<synchronous>, transform_indices = @transform_2, window_bounds = array<i64: 8, 32>}, {transform_indices = @transform_3, window_bounds = array<i64: 1, 8, 32>}]} {
    %c0 = arith.constant 0 : index
    %c0_0 = arith.constant 0 : index
    %c0_1 = arith.constant 0 : index
    %0 = vector.load %arg1[%c0, %c0_0, %c0_1] : memref<1x8x1xi32, #tpu.memory_space<vmem>>, vector<1x8x1xi32>
    %1 = vector.shape_cast %0 : vector<1x8x1xi32> to vector<8x1xi32>
    %2 = tpu.iota {dimensions = array<i32: 1>} : vector<8x64xi32>
    %3 = vector.broadcast %1 : vector<8x1xi32> to vector<8x64xi32>
    %4 = arith.cmpi eq, %2, %3 : vector<8x64xi32>
    %5 = arith.extui %4 : vector<8x64xi1> to vector<8x64xi32>
    %6 = arith.sitofp %5 : vector<8x64xi32> to vector<8x64xf32>
    %c0_2 = arith.constant 0 : index
    %c0_3 = arith.constant 0 : index
    %7 = vector.load %arg2[%c0_2, %c0_3] : memref<64x32xf32, #tpu.memory_space<vmem>>, vector<64x32xf32>
    %cst = arith.constant dense<0.000000e+00> : vector<8x32xf32>
    %8 = tpu.matmul %6, %7, %cst {dimension_numbers = #tpu.dot_dimension_numbers<[1], [0], [0], [1], [0, 0, 1, 1], [], []>} : vector<8x64xf32>, vector<64x32xf32>, vector<8x32xf32> -> vector<8x32xf32>
    %cst_4 = arith.constant 5.65685415 : f32
    %9 = vector.broadcast %cst_4 : f32 to vector<8x32xf32>
    %10 = arith.mulf %8, %9 : vector<8x32xf32>
    %c0_5 = arith.constant 0 : index
    %c0_6 = arith.constant 0 : index
    %11 = vector.load %arg3[%c0_5, %c0_6] : memref<8x32xf32, #tpu.memory_space<vmem>>, vector<8x32xf32>
    %12 = arith.addf %10, %11 : vector<8x32xf32>
    %c0_7 = arith.constant 0 : index
    %c0_8 = arith.constant 0 : index
    %c0_9 = arith.constant 0 : index
    %13 = vector.load %arg4[%c0_7, %c0_8, %c0_9] : memref<1x8x32xf32, #tpu.memory_space<vmem>>, vector<1x8x32xf32>
    %14 = vector.shape_cast %13 : vector<1x8x32xf32> to vector<8x32xf32>
    %15 = vector.shape_cast %12 : vector<8x32xf32> to vector<1x8x32xf32>
    tpu.vector_store %arg4[%c0_7, %c0_8, %c0_9], %15 {strides = array<i32>} : memref<1x8x32xf32, #tpu.memory_space<vmem>>, vector<1x8x32xf32>,
    return
  }
  func.func @transform_0(%arg0: i32) -> (i32, i32, i32) {
    %c0_i32 = arith.constant 0 : i32
    %c0_i32_0 = arith.constant 0 : i32
    %c0_i32_1 = arith.constant 0 : i32
    return %arg0, %c0_i32, %c0_i32_0 : i32, i32, i32
  }
  func.func @transform_1(%arg0: i32) -> (i32, i32) {
    %c0_i32 = arith.constant 0 : i32
    %c0_i32_0 = arith.constant 0 : i32
    %c0_i32_1 = arith.constant 0 : i32
    return %c0_i32, %c0_i32_0 : i32, i32
  }
  func.func @transform_2(%arg0: i32) -> (i32, i32) {
    %c0_i32 = arith.constant 0 : i32
    %c0_i32_0 = arith.constant 0 : i32
    %c0_i32_1 = arith.constant 0 : i32
    return %c0_i32, %c0_i32_0 : i32, i32
  }
  func.func @transform_3(%arg0: i32) -> (i32, i32, i32) {
    %c0_i32 = arith.constant 0 : i32
    %c0_i32_0 = arith.constant 0 : i32
    %c0_i32_1 = arith.constant 0 : i32
    return %arg0, %c0_i32, %c0_i32_0 : i32, i32, i32
  }
}

module attributes {stable_mosaic.version = 11 : i64} {
  func.func @_mha_block_kernel(%arg0: i32, %arg1: memref<1x8x32xf32, #tpu.memory_space<vmem>>, %arg2: memref<1x8x32xf32, #tpu.memory_space<vmem>>, %arg3: memref<1x1x8x8xf32, #tpu.memory_space<vmem>>, %arg4: memref<32x32xf32, #tpu.memory_space<vmem>>, %arg5: memref<1x32xf32, #tpu.memory_space<vmem>>, %arg6: memref<32x64xf32, #tpu.memory_space<vmem>>, %arg7: memref<1x64xf32, #tpu.memory_space<vmem>>, %arg8: memref<32x32xf32, #tpu.memory_space<vmem>>, %arg9: memref<1x32xf32, #tpu.memory_space<vmem>>, %arg10: memref<1x32xf32, #tpu.memory_space<vmem>>, %arg11: memref<1x32xf32, #tpu.memory_space<vmem>>, %arg12: memref<1x8x32xf32, #tpu.memory_space<vmem>>, %arg13: memref<1x4x8x8xf32, #tpu.memory_space<vmem>>) attributes {dimension_semantics = [#tpu.dimension_semantics<parallel>], iteration_bounds = array<i64: 2>, scalar_prefetch = 0 : i64, scratch_operands = 0 : i64, tpu.core_type = #tpu.core_type<tc>, window_params = [{transform_indices = @transform_0, window_bounds = array<i64: 1, 8, 32>}, {transform_indices = @transform_1, window_bounds = array<i64: 1, 8, 32>}, {transform_indices = @transform_2, window_bounds = array<i64: 1, 1, 8, 8>}, {pipeline_mode = #tpu.pipeline_mode<synchronous>, transform_indices = @transform_3, window_bounds = array<i64: 32, 32>}, {pipeline_mode = #tpu.pipeline_mode<synchronous>, transform_indices = @transform_4, window_bounds = array<i64: 1, 32>}, {pipeline_mode = #tpu.pipeline_mode<synchronous>, transform_indices = @transform_5, window_bounds = array<i64: 32, 64>}, {pipeline_mode = #tpu.pipeline_mode<synchronous>, transform_indices = @transform_6, window_bounds = array<i64: 1, 64>}, {pipeline_mode = #tpu.pipeline_mode<synchronous>, transform_indices = @transform_7, window_bounds = array<i64: 32, 32>}, {pipeline_mode = #tpu.pipeline_mode<synchronous>, transform_indices = @transform_8, window_bounds = array<i64: 1, 32>}, {pipeline_mode = #tpu.pipeline_mode<synchronous>, transform_indices = @transform_9, window_bounds = array<i64: 1, 32>}, {pipeline_mode = #tpu.pipeline_mode<synchronous>, transform_indices = @transform_10, window_bounds = array<i64: 1, 32>}, {transform_indices = @transform_11, window_bounds = array<i64: 1, 8, 32>}, {transform_indices = @transform_12, window_bounds = array<i64: 1, 4, 8, 8>}]} {
    %c0 = arith.constant 0 : index
    %c0_0 = arith.constant 0 : index
    %c0_1 = arith.constant 0 : index
    %0 = vector.load %arg1[%c0, %c0_0, %c0_1] : memref<1x8x32xf32, #tpu.memory_space<vmem>>, vector<1x8x32xf32>
    %1 = vector.shape_cast %0 : vector<1x8x32xf32> to vector<8x32xf32>
    %c0_2 = arith.constant 0 : index
    %c0_3 = arith.constant 0 : index
    %c0_4 = arith.constant 0 : index
    %2 = vector.load %arg2[%c0_2, %c0_3, %c0_4] : memref<1x8x32xf32, #tpu.memory_space<vmem>>, vector<1x8x32xf32>
    %3 = vector.shape_cast %2 : vector<1x8x32xf32> to vector<8x32xf32>
    %c0_5 = arith.constant 0 : index
    %c0_6 = arith.constant 0 : index
    %c0_7 = arith.constant 0 : index
    %c0_8 = arith.constant 0 : index
    %4 = vector.load %arg3[%c0_5, %c0_6, %c0_7, %c0_8] : memref<1x1x8x8xf32, #tpu.memory_space<vmem>>, vector<1x1x8x8xf32>
    %5 = vector.shape_cast %4 : vector<1x1x8x8xf32> to vector<8x8xf32>
    %c0_9 = arith.constant 0 : index
    %c0_10 = arith.constant 0 : index
    %6 = vector.load %arg4[%c0_9, %c0_10] : memref<32x32xf32, #tpu.memory_space<vmem>>, vector<32x32xf32>
    %cst = arith.constant dense<0.000000e+00> : vector<8x32xf32>
    %7 = tpu.matmul %1, %6, %cst {dimension_numbers = #tpu.dot_dimension_numbers<[1], [0], [0], [1], [0, 0, 1, 1], [], []>} : vector<8x32xf32>, vector<32x32xf32>, vector<8x32xf32> -> vector<8x32xf32>
    %c0_11 = arith.constant 0 : index
    %c0_12 = arith.constant 0 : index
    %8 = vector.load %arg5[%c0_11, %c0_12] : memref<1x32xf32, #tpu.memory_space<vmem>>, vector<1x32xf32>
    %9 = vector.broadcast %8 : vector<1x32xf32> to vector<8x32xf32>
    %10 = arith.addf %7, %9 : vector<8x32xf32>
    %c0_13 = arith.constant 0 : index
    %c0_14 = arith.constant 0 : index
    %11 = vector.load %arg6[%c0_13, %c0_14] : memref<32x64xf32, #tpu.memory_space<vmem>>, vector<32x64xf32>
    %cst_15 = arith.constant dense<0.000000e+00> : vector<8x64xf32>
    %12 = tpu.matmul %3, %11, %cst_15 {dimension_numbers = #tpu.dot_dimension_numbers<[1], [0], [0], [1], [0, 0, 1, 1], [], []>} : vector<8x32xf32>, vector<32x64xf32>, vector<8x64xf32> -> vector<8x64xf32>
    %c0_16 = arith.constant 0 : index
    %c0_17 = arith.constant 0 : index
    %13 = vector.load %arg7[%c0_16, %c0_17] : memref<1x64xf32, #tpu.memory_space<vmem>>, vector<1x64xf32>
    %14 = vector.broadcast %13 : vector<1x64xf32> to vector<8x64xf32>
    %15 = arith.addf %12, %14 : vector<8x64xf32>
    %16 = vector.extract_strided_slice %15 {offsets = [0, 0], sizes = [8, 32], strides = [1, 1]} : vector<8x64xf32> to vector<8x32xf32>
    %17 = vector.extract_strided_slice %15 {offsets = [0, 32], sizes = [8, 32], strides = [1, 1]} : vector<8x64xf32> to vector<8x32xf32>
    %18 = vector.extract_strided_slice %10 {offsets = [0, 0], sizes = [8, 8], strides = [1, 1]} : vector<8x32xf32> to vector<8x8xf32>
    %19 = vector.extract_strided_slice %16 {offsets = [0, 0], sizes = [8, 8], strides = [1, 1]} : vector<8x32xf32> to vector<8x8xf32>
    %20 = vector.extract_strided_slice %17 {offsets = [0, 0], sizes = [8, 8], strides = [1, 1]} : vector<8x32xf32> to vector<8x8xf32>
    %21 = tpu.transpose %19, [1, 0] : vector<8x8xf32> -> vector<8x8xf32>
    %cst_18 = arith.constant dense<0.000000e+00> : vector<8x8xf32>
    %22 = tpu.matmul %18, %21, %cst_18 {dimension_numbers = #tpu.dot_dimension_numbers<[1], [0], [0], [1], [0, 0, 1, 1], [], []>} : vector<8x8xf32>, vector<8x8xf32>, vector<8x8xf32> -> vector<8x8xf32>
    %cst_19 = arith.constant 0.353553385 : f32
    %23 = vector.broadcast %cst_19 : f32 to vector<8x8xf32>
    %24 = arith.mulf %22, %23 : vector<8x8xf32>
    %cst_20 = arith.constant 0.000000e+00 : f32
    %25 = vector.broadcast %cst_20 : f32 to vector<8x8xf32>
    %26 = arith.cmpf oeq, %5, %25 : vector<8x8xf32>
    %cst_21 = arith.constant -1.000000e+09 : f32
    %27 = vector.broadcast %cst_21 : f32 to vector<8x8xf32>
    %28 = arith.select %26, %27, %24 : vector<8x8xi1>, vector<8x8xf32>
    %cst_22 = arith.constant dense<0xFF800000> : vector<8xf32>
    %29 = vector.multi_reduction <maximumf>, %28, %cst_22 [1] : vector<8x8xf32> to vector<8xf32>
    %30 = vector.shape_cast %29 : vector<8xf32> to vector<8x1xf32>
    %31 = vector.broadcast %30 : vector<8x1xf32> to vector<8x8xf32>
    %32 = arith.subf %28, %31 : vector<8x8xf32>
    %33 = math.exp %32 : vector<8x8xf32>
    %cst_23 = arith.constant dense<0.000000e+00> : vector<8xf32>
    %34 = vector.multi_reduction <add>, %33, %cst_23 [1] : vector<8x8xf32> to vector<8xf32>
    %35 = vector.shape_cast %34 : vector<8xf32> to vector<8x1xf32>
    %36 = vector.broadcast %35 : vector<8x1xf32> to vector<8x8xf32>
    %37 = arith.divf %33, %36 : vector<8x8xf32>
    %c0_24 = arith.constant 0 : index
    %c0_25 = arith.constant 0 : index
    %c0_26 = arith.constant 0 : index
    %c0_27 = arith.constant 0 : index
    %38 = vector.load %arg13[%c0_24, %c0_25, %c0_26, %c0_27] : memref<1x4x8x8xf32, #tpu.memory_space<vmem>>, vector<1x1x8x8xf32>
    %39 = vector.shape_cast %38 : vector<1x1x8x8xf32> to vector<8x8xf32>
    %40 = vector.shape_cast %37 : vector<8x8xf32> to vector<1x1x8x8xf32>
    tpu.vector_store %arg13[%c0_24, %c0_25, %c0_26, %c0_27], %40 {strides = array<i32>} : memref<1x4x8x8xf32, #tpu.memory_space<vmem>>, vector<1x1x8x8xf32>,
    %cst_28 = arith.constant dense<0.000000e+00> : vector<8x8xf32>
    %41 = tpu.matmul %37, %20, %cst_28 {dimension_numbers = #tpu.dot_dimension_numbers<[1], [0], [0], [1], [0, 0, 1, 1], [], []>} : vector<8x8xf32>, vector<8x8xf32>, vector<8x8xf32> -> vector<8x8xf32>
    %42 = vector.extract_strided_slice %10 {offsets = [0, 8], sizes = [8, 8], strides = [1, 1]} : vector<8x32xf32> to vector<8x8xf32>
    %43 = vector.extract_strided_slice %16 {offsets = [0, 8], sizes = [8, 8], strides = [1, 1]} : vector<8x32xf32> to vector<8x8xf32>
    %44 = vector.extract_strided_slice %17 {offsets = [0, 8], sizes = [8, 8], strides = [1, 1]} : vector<8x32xf32> to vector<8x8xf32>
    %45 = tpu.transpose %43, [1, 0] : vector<8x8xf32> -> vector<8x8xf32>
    %cst_29 = arith.constant dense<0.000000e+00> : vector<8x8xf32>
    %46 = tpu.matmul %42, %45, %cst_29 {dimension_numbers = #tpu.dot_dimension_numbers<[1], [0], [0], [1], [0, 0, 1, 1], [], []>} : vector<8x8xf32>, vector<8x8xf32>, vector<8x8xf32> -> vector<8x8xf32>
    %cst_30 = arith.constant 0.353553385 : f32
    %47 = vector.broadcast %cst_30 : f32 to vector<8x8xf32>
    %48 = arith.mulf %46, %47 : vector<8x8xf32>
    %cst_31 = arith.constant 0.000000e+00 : f32
    %49 = vector.broadcast %cst_31 : f32 to vector<8x8xf32>
    %50 = arith.cmpf oeq, %5, %49 : vector<8x8xf32>
    %cst_32 = arith.constant -1.000000e+09 : f32
    %51 = vector.broadcast %cst_32 : f32 to vector<8x8xf32>
    %52 = arith.select %50, %51, %48 : vector<8x8xi1>, vector<8x8xf32>
    %cst_33 = arith.constant dense<0xFF800000> : vector<8xf32>
    %53 = vector.multi_reduction <maximumf>, %52, %cst_33 [1] : vector<8x8xf32> to vector<8xf32>
    %54 = vector.shape_cast %53 : vector<8xf32> to vector<8x1xf32>
    %55 = vector.broadcast %54 : vector<8x1xf32> to vector<8x8xf32>
    %56 = arith.subf %52, %55 : vector<8x8xf32>
    %57 = math.exp %56 : vector<8x8xf32>
    %cst_34 = arith.constant dense<0.000000e+00> : vector<8xf32>
    %58 = vector.multi_reduction <add>, %57, %cst_34 [1] : vector<8x8xf32> to vector<8xf32>
    %59 = vector.shape_cast %58 : vector<8xf32> to vector<8x1xf32>
    %60 = vector.broadcast %59 : vector<8x1xf32> to vector<8x8xf32>
    %61 = arith.divf %57, %60 : vector<8x8xf32>
    %c0_35 = arith.constant 0 : index
    %c1 = arith.constant 1 : index
    %c0_36 = arith.constant 0 : index
    %c0_37 = arith.constant 0 : index
    %62 = vector.load %arg13[%c0_35, %c1, %c0_36, %c0_37] : memref<1x4x8x8xf32, #tpu.memory_space<vmem>>, vector<1x1x8x8xf32>
    %63 = vector.shape_cast %62 : vector<1x1x8x8xf32> to vector<8x8xf32>
    %64 = vector.shape_cast %61 : vector<8x8xf32> to vector<1x1x8x8xf32>
    tpu.vector_store %arg13[%c0_35, %c1, %c0_36, %c0_37], %64 {strides = array<i32>} : memref<1x4x8x8xf32, #tpu.memory_space<vmem>>, vector<1x1x8x8xf32>,
    %cst_38 = arith.constant dense<0.000000e+00> : vector<8x8xf32>
    %65 = tpu.matmul %61, %44, %cst_38 {dimension_numbers = #tpu.dot_dimension_numbers<[1], [0], [0], [1], [0, 0, 1, 1], [], []>} : vector<8x8xf32>, vector<8x8xf32>, vector<8x8xf32> -> vector<8x8xf32>
    %66 = vector.extract_strided_slice %10 {offsets = [0, 16], sizes = [8, 8], strides = [1, 1]} : vector<8x32xf32> to vector<8x8xf32>
    %67 = vector.extract_strided_slice %16 {offsets = [0, 16], sizes = [8, 8], strides = [1, 1]} : vector<8x32xf32> to vector<8x8xf32>
    %68 = vector.extract_strided_slice %17 {offsets = [0, 16], sizes = [8, 8], strides = [1, 1]} : vector<8x32xf32> to vector<8x8xf32>
    %69 = tpu.transpose %67, [1, 0] : vector<8x8xf32> -> vector<8x8xf32>
    %cst_39 = arith.constant dense<0.000000e+00> : vector<8x8xf32>
    %70 = tpu.matmul %66, %69, %cst_39 {dimension_numbers = #tpu.dot_dimension_numbers<[1], [0], [0], [1], [0, 0, 1, 1], [], []>} : vector<8x8xf32>, vector<8x8xf32>, vector<8x8xf32> -> vector<8x8xf32>
    %cst_40 = arith.constant 0.353553385 : f32
    %71 = vector.broadcast %cst_40 : f32 to vector<8x8xf32>
    %72 = arith.mulf %70, %71 : vector<8x8xf32>
    %cst_41 = arith.constant 0.000000e+00 : f32
    %73 = vector.broadcast %cst_41 : f32 to vector<8x8xf32>
    %74 = arith.cmpf oeq, %5, %73 : vector<8x8xf32>
    %cst_42 = arith.constant -1.000000e+09 : f32
    %75 = vector.broadcast %cst_42 : f32 to vector<8x8xf32>
    %76 = arith.select %74, %75, %72 : vector<8x8xi1>, vector<8x8xf32>
    %cst_43 = arith.constant dense<0xFF800000> : vector<8xf32>
    %77 = vector.multi_reduction <maximumf>, %76, %cst_43 [1] : vector<8x8xf32> to vector<8xf32>
    %78 = vector.shape_cast %77 : vector<8xf32> to vector<8x1xf32>
    %79 = vector.broadcast %78 : vector<8x1xf32> to vector<8x8xf32>
    %80 = arith.subf %76, %79 : vector<8x8xf32>
    %81 = math.exp %80 : vector<8x8xf32>
    %cst_44 = arith.constant dense<0.000000e+00> : vector<8xf32>
    %82 = vector.multi_reduction <add>, %81, %cst_44 [1] : vector<8x8xf32> to vector<8xf32>
    %83 = vector.shape_cast %82 : vector<8xf32> to vector<8x1xf32>
    %84 = vector.broadcast %83 : vector<8x1xf32> to vector<8x8xf32>
    %85 = arith.divf %81, %84 : vector<8x8xf32>
    %c0_45 = arith.constant 0 : index
    %c2 = arith.constant 2 : index
    %c0_46 = arith.constant 0 : index
    %c0_47 = arith.constant 0 : index
    %86 = vector.load %arg13[%c0_45, %c2, %c0_46, %c0_47] : memref<1x4x8x8xf32, #tpu.memory_space<vmem>>, vector<1x1x8x8xf32>
    %87 = vector.shape_cast %86 : vector<1x1x8x8xf32> to vector<8x8xf32>
    %88 = vector.shape_cast %85 : vector<8x8xf32> to vector<1x1x8x8xf32>
    tpu.vector_store %arg13[%c0_45, %c2, %c0_46, %c0_47], %88 {strides = array<i32>} : memref<1x4x8x8xf32, #tpu.memory_space<vmem>>, vector<1x1x8x8xf32>,
    %cst_48 = arith.constant dense<0.000000e+00> : vector<8x8xf32>
    %89 = tpu.matmul %85, %68, %cst_48 {dimension_numbers = #tpu.dot_dimension_numbers<[1], [0], [0], [1], [0, 0, 1, 1], [], []>} : vector<8x8xf32>, vector<8x8xf32>, vector<8x8xf32> -> vector<8x8xf32>
    %90 = vector.extract_strided_slice %10 {offsets = [0, 24], sizes = [8, 8], strides = [1, 1]} : vector<8x32xf32> to vector<8x8xf32>
    %91 = vector.extract_strided_slice %16 {offsets = [0, 24], sizes = [8, 8], strides = [1, 1]} : vector<8x32xf32> to vector<8x8xf32>
    %92 = vector.extract_strided_slice %17 {offsets = [0, 24], sizes = [8, 8], strides = [1, 1]} : vector<8x32xf32> to vector<8x8xf32>
    %93 = tpu.transpose %91, [1, 0] : vector<8x8xf32> -> vector<8x8xf32>
    %cst_49 = arith.constant dense<0.000000e+00> : vector<8x8xf32>
    %94 = tpu.matmul %90, %93, %cst_49 {dimension_numbers = #tpu.dot_dimension_numbers<[1], [0], [0], [1], [0, 0, 1, 1], [], []>} : vector<8x8xf32>, vector<8x8xf32>, vector<8x8xf32> -> vector<8x8xf32>
    %cst_50 = arith.constant 0.353553385 : f32
    %95 = vector.broadcast %cst_50 : f32 to vector<8x8xf32>
    %96 = arith.mulf %94, %95 : vector<8x8xf32>
    %cst_51 = arith.constant 0.000000e+00 : f32
    %97 = vector.broadcast %cst_51 : f32 to vector<8x8xf32>
    %98 = arith.cmpf oeq, %5, %97 : vector<8x8xf32>
    %cst_52 = arith.constant -1.000000e+09 : f32
    %99 = vector.broadcast %cst_52 : f32 to vector<8x8xf32>
    %100 = arith.select %98, %99, %96 : vector<8x8xi1>, vector<8x8xf32>
    %cst_53 = arith.constant dense<0xFF800000> : vector<8xf32>
    %101 = vector.multi_reduction <maximumf>, %100, %cst_53 [1] : vector<8x8xf32> to vector<8xf32>
    %102 = vector.shape_cast %101 : vector<8xf32> to vector<8x1xf32>
    %103 = vector.broadcast %102 : vector<8x1xf32> to vector<8x8xf32>
    %104 = arith.subf %100, %103 : vector<8x8xf32>
    %105 = math.exp %104 : vector<8x8xf32>
    %cst_54 = arith.constant dense<0.000000e+00> : vector<8xf32>
    %106 = vector.multi_reduction <add>, %105, %cst_54 [1] : vector<8x8xf32> to vector<8xf32>
    %107 = vector.shape_cast %106 : vector<8xf32> to vector<8x1xf32>
    %108 = vector.broadcast %107 : vector<8x1xf32> to vector<8x8xf32>
    %109 = arith.divf %105, %108 : vector<8x8xf32>
    %c0_55 = arith.constant 0 : index
    %c3 = arith.constant 3 : index
    %c0_56 = arith.constant 0 : index
    %c0_57 = arith.constant 0 : index
    %110 = vector.load %arg13[%c0_55, %c3, %c0_56, %c0_57] : memref<1x4x8x8xf32, #tpu.memory_space<vmem>>, vector<1x1x8x8xf32>
    %111 = vector.shape_cast %110 : vector<1x1x8x8xf32> to vector<8x8xf32>
    %112 = vector.shape_cast %109 : vector<8x8xf32> to vector<1x1x8x8xf32>
    tpu.vector_store %arg13[%c0_55, %c3, %c0_56, %c0_57], %112 {strides = array<i32>} : memref<1x4x8x8xf32, #tpu.memory_space<vmem>>, vector<1x1x8x8xf32>,
    %cst_58 = arith.constant dense<0.000000e+00> : vector<8x8xf32>
    %113 = tpu.matmul %109, %92, %cst_58 {dimension_numbers = #tpu.dot_dimension_numbers<[1], [0], [0], [1], [0, 0, 1, 1], [], []>} : vector<8x8xf32>, vector<8x8xf32>, vector<8x8xf32> -> vector<8x8xf32>
    %114 = tpu.concatenate %41, %65, %89, %113 in 1 : vector<8x8xf32>, vector<8x8xf32>, vector<8x8xf32>, vector<8x8xf32> -> vector<8x32xf32>
    %c0_59 = arith.constant 0 : index
    %c0_60 = arith.constant 0 : index
    %115 = vector.load %arg8[%c0_59, %c0_60] : memref<32x32xf32, #tpu.memory_space<vmem>>, vector<32x32xf32>
    %cst_61 = arith.constant dense<0.000000e+00> : vector<8x32xf32>
    %116 = tpu.matmul %114, %115, %cst_61 {dimension_numbers = #tpu.dot_dimension_numbers<[1], [0], [0], [1], [0, 0, 1, 1], [], []>} : vector<8x32xf32>, vector<32x32xf32>, vector<8x32xf32> -> vector<8x32xf32>
    %c0_62 = arith.constant 0 : index
    %c0_63 = arith.constant 0 : index
    %117 = vector.load %arg9[%c0_62, %c0_63] : memref<1x32xf32, #tpu.memory_space<vmem>>, vector<1x32xf32>
    %118 = vector.broadcast %117 : vector<1x32xf32> to vector<8x32xf32>
    %119 = arith.addf %116, %118 : vector<8x32xf32>
    %120 = arith.addf %1, %119 : vector<8x32xf32>
    %cst_64 = arith.constant dense<0.000000e+00> : vector<8xf32>
    %121 = vector.multi_reduction <add>, %120, %cst_64 [1] : vector<8x32xf32> to vector<8xf32>
    %122 = vector.shape_cast %121 : vector<8xf32> to vector<8x1xf32>
    %cst_65 = arith.constant 3.200000e+01 : f32
    %123 = vector.broadcast %cst_65 : f32 to vector<8x1xf32>
    %124 = arith.divf %122, %123 : vector<8x1xf32>
    %125 = vector.broadcast %124 : vector<8x1xf32> to vector<8x32xf32>
    %126 = arith.subf %120, %125 : vector<8x32xf32>
    %127 = arith.mulf %126, %126 : vector<8x32xf32>
    %cst_66 = arith.constant dense<0.000000e+00> : vector<8xf32>
    %128 = vector.multi_reduction <add>, %127, %cst_66 [1] : vector<8x32xf32> to vector<8xf32>
    %129 = vector.shape_cast %128 : vector<8xf32> to vector<8x1xf32>
    %cst_67 = arith.constant 3.200000e+01 : f32
    %130 = vector.broadcast %cst_67 : f32 to vector<8x1xf32>
    %131 = arith.divf %129, %130 : vector<8x1xf32>
    %132 = vector.broadcast %124 : vector<8x1xf32> to vector<8x32xf32>
    %133 = arith.subf %120, %132 : vector<8x32xf32>
    %cst_68 = arith.constant 9.99999974E-6 : f32
    %134 = vector.broadcast %cst_68 : f32 to vector<8x1xf32>
    %135 = arith.addf %131, %134 : vector<8x1xf32>
    %136 = math.rsqrt %135 : vector<8x1xf32>
    %137 = vector.broadcast %136 : vector<8x1xf32> to vector<8x32xf32>
    %138 = arith.mulf %133, %137 : vector<8x32xf32>
    %c0_69 = arith.constant 0 : index
    %c0_70 = arith.constant 0 : index
    %139 = vector.load %arg10[%c0_69, %c0_70] : memref<1x32xf32, #tpu.memory_space<vmem>>, vector<1x32xf32>
    %140 = vector.broadcast %139 : vector<1x32xf32> to vector<8x32xf32>
    %141 = arith.mulf %138, %140 : vector<8x32xf32>
    %c0_71 = arith.constant 0 : index
    %c0_72 = arith.constant 0 : index
    %142 = vector.load %arg11[%c0_71, %c0_72] : memref<1x32xf32, #tpu.memory_space<vmem>>, vector<1x32xf32>
    %143 = vector.broadcast %142 : vector<1x32xf32> to vector<8x32xf32>
    %144 = arith.addf %141, %143 : vector<8x32xf32>
    %c0_73 = arith.constant 0 : index
    %c0_74 = arith.constant 0 : index
    %c0_75 = arith.constant 0 : index
    %145 = vector.load %arg12[%c0_73, %c0_74, %c0_75] : memref<1x8x32xf32, #tpu.memory_space<vmem>>, vector<1x8x32xf32>
    %146 = vector.shape_cast %145 : vector<1x8x32xf32> to vector<8x32xf32>
    %147 = vector.shape_cast %144 : vector<8x32xf32> to vector<1x8x32xf32>
    tpu.vector_store %arg12[%c0_73, %c0_74, %c0_75], %147 {strides = array<i32>} : memref<1x8x32xf32, #tpu.memory_space<vmem>>, vector<1x8x32xf32>,
    return
  }
  func.func @transform_0(%arg0: i32) -> (i32, i32, i32) {
    %c0_i32 = arith.constant 0 : i32
    %c0_i32_0 = arith.constant 0 : i32
    %c0_i32_1 = arith.constant 0 : i32
    return %arg0, %c0_i32, %c0_i32_0 : i32, i32, i32
  }
  func.func @transform_1(%arg0: i32) -> (i32, i32, i32) {
    %c0_i32 = arith.constant 0 : i32
    %c0_i32_0 = arith.constant 0 : i32
    %c0_i32_1 = arith.constant 0 : i32
    return %arg0, %c0_i32, %c0_i32_0 : i32, i32, i32
  }
  func.func @transform_2(%arg0: i32) -> (i32, i32, i32, i32) {
    %c0_i32 = arith.constant 0 : i32
    %c0_i32_0 = arith.constant 0 : i32
    %c0_i32_1 = arith.constant 0 : i32
    %c0_i32_2 = arith.constant 0 : i32
    return %arg0, %c0_i32, %c0_i32_0, %c0_i32_1 : i32, i32, i32, i32
  }
  func.func @transform_3(%arg0: i32) -> (i32, i32) {
    %c0_i32 = arith.constant 0 : i32
    %c0_i32_0 = arith.constant 0 : i32
    %c0_i32_1 = arith.constant 0 : i32
    return %c0_i32, %c0_i32_0 : i32, i32
  }
  func.func @transform_4(%arg0: i32) -> (i32, i32) {
    %c0_i32 = arith.constant 0 : i32
    %c0_i32_0 = arith.constant 0 : i32
    %c0_i32_1 = arith.constant 0 : i32
    return %c0_i32, %c0_i32_0 : i32, i32
  }
  func.func @transform_5(%arg0: i32) -> (i32, i32) {
    %c0_i32 = arith.constant 0 : i32
    %c0_i32_0 = arith.constant 0 : i32
    %c0_i32_1 = arith.constant 0 : i32
    return %c0_i32, %c0_i32_0 : i32, i32
  }
  func.func @transform_6(%arg0: i32) -> (i32, i32) {
    %c0_i32 = arith.constant 0 : i32
    %c0_i32_0 = arith.constant 0 : i32
    %c0_i32_1 = arith.constant 0 : i32
    return %c0_i32, %c0_i32_0 : i32, i32
  }
  func.func @transform_7(%arg0: i32) -> (i32, i32) {
    %c0_i32 = arith.constant 0 : i32
    %c0_i32_0 = arith.constant 0 : i32
    %c0_i32_1 = arith.constant 0 : i32
    return %c0_i32, %c0_i32_0 : i32, i32
  }
  func.func @transform_8(%arg0: i32) -> (i32, i32) {
    %c0_i32 = arith.constant 0 : i32
    %c0_i32_0 = arith.constant 0 : i32
    %c0_i32_1 = arith.constant 0 : i32
    return %c0_i32, %c0_i32_0 : i32, i32
  }
  func.func @transform_9(%arg0: i32) -> (i32, i32) {
    %c0_i32 = arith.constant 0 : i32
    %c0_i32_0 = arith.constant 0 : i32
    %c0_i32_1 = arith.constant 0 : i32
    return %c0_i32, %c0_i32_0 : i32, i32
  }
  func.func @transform_10(%arg0: i32) -> (i32, i32) {
    %c0_i32 = arith.constant 0 : i32
    %c0_i32_0 = arith.constant 0 : i32
    %c0_i32_1 = arith.constant 0 : i32
    return %c0_i32, %c0_i32_0 : i32, i32
  }
  func.func @transform_11(%arg0: i32) -> (i32, i32, i32) {
    %c0_i32 = arith.constant 0 : i32
    %c0_i32_0 = arith.constant 0 : i32
    %c0_i32_1 = arith.constant 0 : i32
    return %arg0, %c0_i32, %c0_i32_0 : i32, i32, i32
  }
  func.func @transform_12(%arg0: i32) -> (i32, i32, i32, i32) {
    %c0_i32 = arith.constant 0 : i32
    %c0_i32_0 = arith.constant 0 : i32
    %c0_i32_1 = arith.constant 0 : i32
    %c0_i32_2 = arith.constant 0 : i32
    return %arg0, %c0_i32, %c0_i32_0, %c0_i32_1 : i32, i32, i32, i32
  }
}

module attributes {stable_mosaic.version = 11 : i64} {
  func.func @_ffn_block_kernel(%arg0: i32, %arg1: memref<1x8x32xf32, #tpu.memory_space<vmem>>, %arg2: memref<32x64xf32, #tpu.memory_space<vmem>>, %arg3: memref<1x64xf32, #tpu.memory_space<vmem>>, %arg4: memref<64x32xf32, #tpu.memory_space<vmem>>, %arg5: memref<1x32xf32, #tpu.memory_space<vmem>>, %arg6: memref<1x32xf32, #tpu.memory_space<vmem>>, %arg7: memref<1x32xf32, #tpu.memory_space<vmem>>, %arg8: memref<1x8x32xf32, #tpu.memory_space<vmem>>) attributes {dimension_semantics = [#tpu.dimension_semantics<parallel>], iteration_bounds = array<i64: 2>, scalar_prefetch = 0 : i64, scratch_operands = 0 : i64, tpu.core_type = #tpu.core_type<tc>, window_params = [{transform_indices = @transform_0, window_bounds = array<i64: 1, 8, 32>}, {pipeline_mode = #tpu.pipeline_mode<synchronous>, transform_indices = @transform_1, window_bounds = array<i64: 32, 64>}, {pipeline_mode = #tpu.pipeline_mode<synchronous>, transform_indices = @transform_2, window_bounds = array<i64: 1, 64>}, {pipeline_mode = #tpu.pipeline_mode<synchronous>, transform_indices = @transform_3, window_bounds = array<i64: 64, 32>}, {pipeline_mode = #tpu.pipeline_mode<synchronous>, transform_indices = @transform_4, window_bounds = array<i64: 1, 32>}, {pipeline_mode = #tpu.pipeline_mode<synchronous>, transform_indices = @transform_5, window_bounds = array<i64: 1, 32>}, {pipeline_mode = #tpu.pipeline_mode<synchronous>, transform_indices = @transform_6, window_bounds = array<i64: 1, 32>}, {transform_indices = @transform_7, window_bounds = array<i64: 1, 8, 32>}]} {
    %c0 = arith.constant 0 : index
    %c0_0 = arith.constant 0 : index
    %c0_1 = arith.constant 0 : index
    %0 = vector.load %arg1[%c0, %c0_0, %c0_1] : memref<1x8x32xf32, #tpu.memory_space<vmem>>, vector<1x8x32xf32>
    %1 = vector.shape_cast %0 : vector<1x8x32xf32> to vector<8x32xf32>
    %c0_2 = arith.constant 0 : index
    %c0_3 = arith.constant 0 : index
    %2 = vector.load %arg2[%c0_2, %c0_3] : memref<32x64xf32, #tpu.memory_space<vmem>>, vector<32x64xf32>
    %cst = arith.constant dense<0.000000e+00> : vector<8x64xf32>
    %3 = tpu.matmul %1, %2, %cst {dimension_numbers = #tpu.dot_dimension_numbers<[1], [0], [0], [1], [0, 0, 1, 1], [], []>} : vector<8x32xf32>, vector<32x64xf32>, vector<8x64xf32> -> vector<8x64xf32>
    %c0_4 = arith.constant 0 : index
    %c0_5 = arith.constant 0 : index
    %4 = vector.load %arg3[%c0_4, %c0_5] : memref<1x64xf32, #tpu.memory_space<vmem>>, vector<1x64xf32>
    %5 = vector.broadcast %4 : vector<1x64xf32> to vector<8x64xf32>
    %6 = arith.addf %3, %5 : vector<8x64xf32>
    %cst_6 = arith.constant 0.000000e+00 : f32
    %7 = vector.broadcast %cst_6 : f32 to vector<8x64xf32>
    %8 = arith.maximumf %6, %7 : vector<8x64xf32>
    %c0_7 = arith.constant 0 : index
    %c0_8 = arith.constant 0 : index
    %9 = vector.load %arg4[%c0_7, %c0_8] : memref<64x32xf32, #tpu.memory_space<vmem>>, vector<64x32xf32>
    %cst_9 = arith.constant dense<0.000000e+00> : vector<8x32xf32>
    %10 = tpu.matmul %8, %9, %cst_9 {dimension_numbers = #tpu.dot_dimension_numbers<[1], [0], [0], [1], [0, 0, 1, 1], [], []>} : vector<8x64xf32>, vector<64x32xf32>, vector<8x32xf32> -> vector<8x32xf32>
    %c0_10 = arith.constant 0 : index
    %c0_11 = arith.constant 0 : index
    %11 = vector.load %arg5[%c0_10, %c0_11] : memref<1x32xf32, #tpu.memory_space<vmem>>, vector<1x32xf32>
    %12 = vector.broadcast %11 : vector<1x32xf32> to vector<8x32xf32>
    %13 = arith.addf %10, %12 : vector<8x32xf32>
    %14 = arith.addf %1, %13 : vector<8x32xf32>
    %cst_12 = arith.constant dense<0.000000e+00> : vector<8xf32>
    %15 = vector.multi_reduction <add>, %14, %cst_12 [1] : vector<8x32xf32> to vector<8xf32>
    %16 = vector.shape_cast %15 : vector<8xf32> to vector<8x1xf32>
    %cst_13 = arith.constant 3.200000e+01 : f32
    %17 = vector.broadcast %cst_13 : f32 to vector<8x1xf32>
    %18 = arith.divf %16, %17 : vector<8x1xf32>
    %19 = vector.broadcast %18 : vector<8x1xf32> to vector<8x32xf32>
    %20 = arith.subf %14, %19 : vector<8x32xf32>
    %21 = arith.mulf %20, %20 : vector<8x32xf32>
    %cst_14 = arith.constant dense<0.000000e+00> : vector<8xf32>
    %22 = vector.multi_reduction <add>, %21, %cst_14 [1] : vector<8x32xf32> to vector<8xf32>
    %23 = vector.shape_cast %22 : vector<8xf32> to vector<8x1xf32>
    %cst_15 = arith.constant 3.200000e+01 : f32
    %24 = vector.broadcast %cst_15 : f32 to vector<8x1xf32>
    %25 = arith.divf %23, %24 : vector<8x1xf32>
    %26 = vector.broadcast %18 : vector<8x1xf32> to vector<8x32xf32>
    %27 = arith.subf %14, %26 : vector<8x32xf32>
    %cst_16 = arith.constant 9.99999974E-6 : f32
    %28 = vector.broadcast %cst_16 : f32 to vector<8x1xf32>
    %29 = arith.addf %25, %28 : vector<8x1xf32>
    %30 = math.rsqrt %29 : vector<8x1xf32>
    %31 = vector.broadcast %30 : vector<8x1xf32> to vector<8x32xf32>
    %32 = arith.mulf %27, %31 : vector<8x32xf32>
    %c0_17 = arith.constant 0 : index
    %c0_18 = arith.constant 0 : index
    %33 = vector.load %arg6[%c0_17, %c0_18] : memref<1x32xf32, #tpu.memory_space<vmem>>, vector<1x32xf32>
    %34 = vector.broadcast %33 : vector<1x32xf32> to vector<8x32xf32>
    %35 = arith.mulf %32, %34 : vector<8x32xf32>
    %c0_19 = arith.constant 0 : index
    %c0_20 = arith.constant 0 : index
    %36 = vector.load %arg7[%c0_19, %c0_20] : memref<1x32xf32, #tpu.memory_space<vmem>>, vector<1x32xf32>
    %37 = vector.broadcast %36 : vector<1x32xf32> to vector<8x32xf32>
    %38 = arith.addf %35, %37 : vector<8x32xf32>
    %c0_21 = arith.constant 0 : index
    %c0_22 = arith.constant 0 : index
    %c0_23 = arith.constant 0 : index
    %39 = vector.load %arg8[%c0_21, %c0_22, %c0_23] : memref<1x8x32xf32, #tpu.memory_space<vmem>>, vector<1x8x32xf32>
    %40 = vector.shape_cast %39 : vector<1x8x32xf32> to vector<8x32xf32>
    %41 = vector.shape_cast %38 : vector<8x32xf32> to vector<1x8x32xf32>
    tpu.vector_store %arg8[%c0_21, %c0_22, %c0_23], %41 {strides = array<i32>} : memref<1x8x32xf32, #tpu.memory_space<vmem>>, vector<1x8x32xf32>,
    return
  }
  func.func @transform_0(%arg0: i32) -> (i32, i32, i32) {
    %c0_i32 = arith.constant 0 : i32
    %c0_i32_0 = arith.constant 0 : i32
    %c0_i32_1 = arith.constant 0 : i32
    return %arg0, %c0_i32, %c0_i32_0 : i32, i32, i32
  }
  func.func @transform_1(%arg0: i32) -> (i32, i32) {
    %c0_i32 = arith.constant 0 : i32
    %c0_i32_0 = arith.constant 0 : i32
    %c0_i32_1 = arith.constant 0 : i32
    return %c0_i32, %c0_i32_0 : i32, i32
  }
  func.func @transform_2(%arg0: i32) -> (i32, i32) {
    %c0_i32 = arith.constant 0 : i32
    %c0_i32_0 = arith.constant 0 : i32
    %c0_i32_1 = arith.constant 0 : i32
    return %c0_i32, %c0_i32_0 : i32, i32
  }
  func.func @transform_3(%arg0: i32) -> (i32, i32) {
    %c0_i32 = arith.constant 0 : i32
    %c0_i32_0 = arith.constant 0 : i32
    %c0_i32_1 = arith.constant 0 : i32
    return %c0_i32, %c0_i32_0 : i32, i32
  }
  func.func @transform_4(%arg0: i32) -> (i32, i32) {
    %c0_i32 = arith.constant 0 : i32
    %c0_i32_0 = arith.constant 0 : i32
    %c0_i32_1 = arith.constant 0 : i32
    return %c0_i32, %c0_i32_0 : i32, i32
  }
  func.func @transform_5(%arg0: i32) -> (i32, i32) {
    %c0_i32 = arith.constant 0 : i32
    %c0_i32_0 = arith.constant 0 : i32
    %c0_i32_1 = arith.constant 0 : i32
    return %c0_i32, %c0_i32_0 : i32, i32
  }
  func.func @transform_6(%arg0: i32) -> (i32, i32) {
    %c0_i32 = arith.constant 0 : i32
    %c0_i32_0 = arith.constant 0 : i32
    %c0_i32_1 = arith.constant 0 : i32
    return %c0_i32, %c0_i32_0 : i32, i32
  }
  func.func @transform_7(%arg0: i32) -> (i32, i32, i32) {
    %c0_i32 = arith.constant 0 : i32
    %c0_i32_0 = arith.constant 0 : i32
    %c0_i32_1 = arith.constant 0 : i32
    return %arg0, %c0_i32, %c0_i32_0 : i32, i32, i32
  }
}

module attributes {stable_mosaic.version = 11 : i64} {
  func.func @_mha_block_kernel(%arg0: i32, %arg1: memref<1x8x32xf32, #tpu.memory_space<vmem>>, %arg2: memref<1x8x32xf32, #tpu.memory_space<vmem>>, %arg3: memref<1x1x8x8xf32, #tpu.memory_space<vmem>>, %arg4: memref<32x32xf32, #tpu.memory_space<vmem>>, %arg5: memref<1x32xf32, #tpu.memory_space<vmem>>, %arg6: memref<32x64xf32, #tpu.memory_space<vmem>>, %arg7: memref<1x64xf32, #tpu.memory_space<vmem>>, %arg8: memref<32x32xf32, #tpu.memory_space<vmem>>, %arg9: memref<1x32xf32, #tpu.memory_space<vmem>>, %arg10: memref<1x32xf32, #tpu.memory_space<vmem>>, %arg11: memref<1x32xf32, #tpu.memory_space<vmem>>, %arg12: memref<1x8x32xf32, #tpu.memory_space<vmem>>, %arg13: memref<1x4x8x8xf32, #tpu.memory_space<vmem>>) attributes {dimension_semantics = [#tpu.dimension_semantics<parallel>], iteration_bounds = array<i64: 2>, scalar_prefetch = 0 : i64, scratch_operands = 0 : i64, tpu.core_type = #tpu.core_type<tc>, window_params = [{transform_indices = @transform_0, window_bounds = array<i64: 1, 8, 32>}, {transform_indices = @transform_1, window_bounds = array<i64: 1, 8, 32>}, {transform_indices = @transform_2, window_bounds = array<i64: 1, 1, 8, 8>}, {pipeline_mode = #tpu.pipeline_mode<synchronous>, transform_indices = @transform_3, window_bounds = array<i64: 32, 32>}, {pipeline_mode = #tpu.pipeline_mode<synchronous>, transform_indices = @transform_4, window_bounds = array<i64: 1, 32>}, {pipeline_mode = #tpu.pipeline_mode<synchronous>, transform_indices = @transform_5, window_bounds = array<i64: 32, 64>}, {pipeline_mode = #tpu.pipeline_mode<synchronous>, transform_indices = @transform_6, window_bounds = array<i64: 1, 64>}, {pipeline_mode = #tpu.pipeline_mode<synchronous>, transform_indices = @transform_7, window_bounds = array<i64: 32, 32>}, {pipeline_mode = #tpu.pipeline_mode<synchronous>, transform_indices = @transform_8, window_bounds = array<i64: 1, 32>}, {pipeline_mode = #tpu.pipeline_mode<synchronous>, transform_indices = @transform_9, window_bounds = array<i64: 1, 32>}, {pipeline_mode = #tpu.pipeline_mode<synchronous>, transform_indices = @transform_10, window_bounds = array<i64: 1, 32>}, {transform_indices = @transform_11, window_bounds = array<i64: 1, 8, 32>}, {transform_indices = @transform_12, window_bounds = array<i64: 1, 4, 8, 8>}]} {
    %c0 = arith.constant 0 : index
    %c0_0 = arith.constant 0 : index
    %c0_1 = arith.constant 0 : index
    %0 = vector.load %arg1[%c0, %c0_0, %c0_1] : memref<1x8x32xf32, #tpu.memory_space<vmem>>, vector<1x8x32xf32>
    %1 = vector.shape_cast %0 : vector<1x8x32xf32> to vector<8x32xf32>
    %c0_2 = arith.constant 0 : index
    %c0_3 = arith.constant 0 : index
    %c0_4 = arith.constant 0 : index
    %2 = vector.load %arg2[%c0_2, %c0_3, %c0_4] : memref<1x8x32xf32, #tpu.memory_space<vmem>>, vector<1x8x32xf32>
    %3 = vector.shape_cast %2 : vector<1x8x32xf32> to vector<8x32xf32>
    %c0_5 = arith.constant 0 : index
    %c0_6 = arith.constant 0 : index
    %c0_7 = arith.constant 0 : index
    %c0_8 = arith.constant 0 : index
    %4 = vector.load %arg3[%c0_5, %c0_6, %c0_7, %c0_8] : memref<1x1x8x8xf32, #tpu.memory_space<vmem>>, vector<1x1x8x8xf32>
    %5 = vector.shape_cast %4 : vector<1x1x8x8xf32> to vector<8x8xf32>
    %c0_9 = arith.constant 0 : index
    %c0_10 = arith.constant 0 : index
    %6 = vector.load %arg4[%c0_9, %c0_10] : memref<32x32xf32, #tpu.memory_space<vmem>>, vector<32x32xf32>
    %cst = arith.constant dense<0.000000e+00> : vector<8x32xf32>
    %7 = tpu.matmul %1, %6, %cst {dimension_numbers = #tpu.dot_dimension_numbers<[1], [0], [0], [1], [0, 0, 1, 1], [], []>} : vector<8x32xf32>, vector<32x32xf32>, vector<8x32xf32> -> vector<8x32xf32>
    %c0_11 = arith.constant 0 : index
    %c0_12 = arith.constant 0 : index
    %8 = vector.load %arg5[%c0_11, %c0_12] : memref<1x32xf32, #tpu.memory_space<vmem>>, vector<1x32xf32>
    %9 = vector.broadcast %8 : vector<1x32xf32> to vector<8x32xf32>
    %10 = arith.addf %7, %9 : vector<8x32xf32>
    %c0_13 = arith.constant 0 : index
    %c0_14 = arith.constant 0 : index
    %11 = vector.load %arg6[%c0_13, %c0_14] : memref<32x64xf32, #tpu.memory_space<vmem>>, vector<32x64xf32>
    %cst_15 = arith.constant dense<0.000000e+00> : vector<8x64xf32>
    %12 = tpu.matmul %3, %11, %cst_15 {dimension_numbers = #tpu.dot_dimension_numbers<[1], [0], [0], [1], [0, 0, 1, 1], [], []>} : vector<8x32xf32>, vector<32x64xf32>, vector<8x64xf32> -> vector<8x64xf32>
    %c0_16 = arith.constant 0 : index
    %c0_17 = arith.constant 0 : index
    %13 = vector.load %arg7[%c0_16, %c0_17] : memref<1x64xf32, #tpu.memory_space<vmem>>, vector<1x64xf32>
    %14 = vector.broadcast %13 : vector<1x64xf32> to vector<8x64xf32>
    %15 = arith.addf %12, %14 : vector<8x64xf32>
    %16 = vector.extract_strided_slice %15 {offsets = [0, 0], sizes = [8, 32], strides = [1, 1]} : vector<8x64xf32> to vector<8x32xf32>
    %17 = vector.extract_strided_slice %15 {offsets = [0, 32], sizes = [8, 32], strides = [1, 1]} : vector<8x64xf32> to vector<8x32xf32>
    %18 = vector.extract_strided_slice %10 {offsets = [0, 0], sizes = [8, 8], strides = [1, 1]} : vector<8x32xf32> to vector<8x8xf32>
    %19 = vector.extract_strided_slice %16 {offsets = [0, 0], sizes = [8, 8], strides = [1, 1]} : vector<8x32xf32> to vector<8x8xf32>
    %20 = vector.extract_strided_slice %17 {offsets = [0, 0], sizes = [8, 8], strides = [1, 1]} : vector<8x32xf32> to vector<8x8xf32>
    %21 = tpu.transpose %19, [1, 0] : vector<8x8xf32> -> vector<8x8xf32>
    %cst_18 = arith.constant dense<0.000000e+00> : vector<8x8xf32>
    %22 = tpu.matmul %18, %21, %cst_18 {dimension_numbers = #tpu.dot_dimension_numbers<[1], [0], [0], [1], [0, 0, 1, 1], [], []>} : vector<8x8xf32>, vector<8x8xf32>, vector<8x8xf32> -> vector<8x8xf32>
    %cst_19 = arith.constant 0.353553385 : f32
    %23 = vector.broadcast %cst_19 : f32 to vector<8x8xf32>
    %24 = arith.mulf %22, %23 : vector<8x8xf32>
    %cst_20 = arith.constant 0.000000e+00 : f32
    %25 = vector.broadcast %cst_20 : f32 to vector<8x8xf32>
    %26 = arith.cmpf oeq, %5, %25 : vector<8x8xf32>
    %cst_21 = arith.constant -1.000000e+09 : f32
    %27 = vector.broadcast %cst_21 : f32 to vector<8x8xf32>
    %28 = arith.select %26, %27, %24 : vector<8x8xi1>, vector<8x8xf32>
    %cst_22 = arith.constant dense<0xFF800000> : vector<8xf32>
    %29 = vector.multi_reduction <maximumf>, %28, %cst_22 [1] : vector<8x8xf32> to vector<8xf32>
    %30 = vector.shape_cast %29 : vector<8xf32> to vector<8x1xf32>
    %31 = vector.broadcast %30 : vector<8x1xf32> to vector<8x8xf32>
    %32 = arith.subf %28, %31 : vector<8x8xf32>
    %33 = math.exp %32 : vector<8x8xf32>
    %cst_23 = arith.constant dense<0.000000e+00> : vector<8xf32>
    %34 = vector.multi_reduction <add>, %33, %cst_23 [1] : vector<8x8xf32> to vector<8xf32>
    %35 = vector.shape_cast %34 : vector<8xf32> to vector<8x1xf32>
    %36 = vector.broadcast %35 : vector<8x1xf32> to vector<8x8xf32>
    %37 = arith.divf %33, %36 : vector<8x8xf32>
    %c0_24 = arith.constant 0 : index
    %c0_25 = arith.constant 0 : index
    %c0_26 = arith.constant 0 : index
    %c0_27 = arith.constant 0 : index
    %38 = vector.load %arg13[%c0_24, %c0_25, %c0_26, %c0_27] : memref<1x4x8x8xf32, #tpu.memory_space<vmem>>, vector<1x1x8x8xf32>
    %39 = vector.shape_cast %38 : vector<1x1x8x8xf32> to vector<8x8xf32>
    %40 = vector.shape_cast %37 : vector<8x8xf32> to vector<1x1x8x8xf32>
    tpu.vector_store %arg13[%c0_24, %c0_25, %c0_26, %c0_27], %40 {strides = array<i32>} : memref<1x4x8x8xf32, #tpu.memory_space<vmem>>, vector<1x1x8x8xf32>,
    %cst_28 = arith.constant dense<0.000000e+00> : vector<8x8xf32>
    %41 = tpu.matmul %37, %20, %cst_28 {dimension_numbers = #tpu.dot_dimension_numbers<[1], [0], [0], [1], [0, 0, 1, 1], [], []>} : vector<8x8xf32>, vector<8x8xf32>, vector<8x8xf32> -> vector<8x8xf32>
    %42 = vector.extract_strided_slice %10 {offsets = [0, 8], sizes = [8, 8], strides = [1, 1]} : vector<8x32xf32> to vector<8x8xf32>
    %43 = vector.extract_strided_slice %16 {offsets = [0, 8], sizes = [8, 8], strides = [1, 1]} : vector<8x32xf32> to vector<8x8xf32>
    %44 = vector.extract_strided_slice %17 {offsets = [0, 8], sizes = [8, 8], strides = [1, 1]} : vector<8x32xf32> to vector<8x8xf32>
    %45 = tpu.transpose %43, [1, 0] : vector<8x8xf32> -> vector<8x8xf32>
    %cst_29 = arith.constant dense<0.000000e+00> : vector<8x8xf32>
    %46 = tpu.matmul %42, %45, %cst_29 {dimension_numbers = #tpu.dot_dimension_numbers<[1], [0], [0], [1], [0, 0, 1, 1], [], []>} : vector<8x8xf32>, vector<8x8xf32>, vector<8x8xf32> -> vector<8x8xf32>
    %cst_30 = arith.constant 0.353553385 : f32
    %47 = vector.broadcast %cst_30 : f32 to vector<8x8xf32>
    %48 = arith.mulf %46, %47 : vector<8x8xf32>
    %cst_31 = arith.constant 0.000000e+00 : f32
    %49 = vector.broadcast %cst_31 : f32 to vector<8x8xf32>
    %50 = arith.cmpf oeq, %5, %49 : vector<8x8xf32>
    %cst_32 = arith.constant -1.000000e+09 : f32
    %51 = vector.broadcast %cst_32 : f32 to vector<8x8xf32>
    %52 = arith.select %50, %51, %48 : vector<8x8xi1>, vector<8x8xf32>
    %cst_33 = arith.constant dense<0xFF800000> : vector<8xf32>
    %53 = vector.multi_reduction <maximumf>, %52, %cst_33 [1] : vector<8x8xf32> to vector<8xf32>
    %54 = vector.shape_cast %53 : vector<8xf32> to vector<8x1xf32>
    %55 = vector.broadcast %54 : vector<8x1xf32> to vector<8x8xf32>
    %56 = arith.subf %52, %55 : vector<8x8xf32>
    %57 = math.exp %56 : vector<8x8xf32>
    %cst_34 = arith.constant dense<0.000000e+00> : vector<8xf32>
    %58 = vector.multi_reduction <add>, %57, %cst_34 [1] : vector<8x8xf32> to vector<8xf32>
    %59 = vector.shape_cast %58 : vector<8xf32> to vector<8x1xf32>
    %60 = vector.broadcast %59 : vector<8x1xf32> to vector<8x8xf32>
    %61 = arith.divf %57, %60 : vector<8x8xf32>
    %c0_35 = arith.constant 0 : index
    %c1 = arith.constant 1 : index
    %c0_36 = arith.constant 0 : index
    %c0_37 = arith.constant 0 : index
    %62 = vector.load %arg13[%c0_35, %c1, %c0_36, %c0_37] : memref<1x4x8x8xf32, #tpu.memory_space<vmem>>, vector<1x1x8x8xf32>
    %63 = vector.shape_cast %62 : vector<1x1x8x8xf32> to vector<8x8xf32>
    %64 = vector.shape_cast %61 : vector<8x8xf32> to vector<1x1x8x8xf32>
    tpu.vector_store %arg13[%c0_35, %c1, %c0_36, %c0_37], %64 {strides = array<i32>} : memref<1x4x8x8xf32, #tpu.memory_space<vmem>>, vector<1x1x8x8xf32>,
    %cst_38 = arith.constant dense<0.000000e+00> : vector<8x8xf32>
    %65 = tpu.matmul %61, %44, %cst_38 {dimension_numbers = #tpu.dot_dimension_numbers<[1], [0], [0], [1], [0, 0, 1, 1], [], []>} : vector<8x8xf32>, vector<8x8xf32>, vector<8x8xf32> -> vector<8x8xf32>
    %66 = vector.extract_strided_slice %10 {offsets = [0, 16], sizes = [8, 8], strides = [1, 1]} : vector<8x32xf32> to vector<8x8xf32>
    %67 = vector.extract_strided_slice %16 {offsets = [0, 16], sizes = [8, 8], strides = [1, 1]} : vector<8x32xf32> to vector<8x8xf32>
    %68 = vector.extract_strided_slice %17 {offsets = [0, 16], sizes = [8, 8], strides = [1, 1]} : vector<8x32xf32> to vector<8x8xf32>
    %69 = tpu.transpose %67, [1, 0] : vector<8x8xf32> -> vector<8x8xf32>
    %cst_39 = arith.constant dense<0.000000e+00> : vector<8x8xf32>
    %70 = tpu.matmul %66, %69, %cst_39 {dimension_numbers = #tpu.dot_dimension_numbers<[1], [0], [0], [1], [0, 0, 1, 1], [], []>} : vector<8x8xf32>, vector<8x8xf32>, vector<8x8xf32> -> vector<8x8xf32>
    %cst_40 = arith.constant 0.353553385 : f32
    %71 = vector.broadcast %cst_40 : f32 to vector<8x8xf32>
    %72 = arith.mulf %70, %71 : vector<8x8xf32>
    %cst_41 = arith.constant 0.000000e+00 : f32
    %73 = vector.broadcast %cst_41 : f32 to vector<8x8xf32>
    %74 = arith.cmpf oeq, %5, %73 : vector<8x8xf32>
    %cst_42 = arith.constant -1.000000e+09 : f32
    %75 = vector.broadcast %cst_42 : f32 to vector<8x8xf32>
    %76 = arith.select %74, %75, %72 : vector<8x8xi1>, vector<8x8xf32>
    %cst_43 = arith.constant dense<0xFF800000> : vector<8xf32>
    %77 = vector.multi_reduction <maximumf>, %76, %cst_43 [1] : vector<8x8xf32> to vector<8xf32>
    %78 = vector.shape_cast %77 : vector<8xf32> to vector<8x1xf32>
    %79 = vector.broadcast %78 : vector<8x1xf32> to vector<8x8xf32>
    %80 = arith.subf %76, %79 : vector<8x8xf32>
    %81 = math.exp %80 : vector<8x8xf32>
    %cst_44 = arith.constant dense<0.000000e+00> : vector<8xf32>
    %82 = vector.multi_reduction <add>, %81, %cst_44 [1] : vector<8x8xf32> to vector<8xf32>
    %83 = vector.shape_cast %82 : vector<8xf32> to vector<8x1xf32>
    %84 = vector.broadcast %83 : vector<8x1xf32> to vector<8x8xf32>
    %85 = arith.divf %81, %84 : vector<8x8xf32>
    %c0_45 = arith.constant 0 : index
    %c2 = arith.constant 2 : index
    %c0_46 = arith.constant 0 : index
    %c0_47 = arith.constant 0 : index
    %86 = vector.load %arg13[%c0_45, %c2, %c0_46, %c0_47] : memref<1x4x8x8xf32, #tpu.memory_space<vmem>>, vector<1x1x8x8xf32>
    %87 = vector.shape_cast %86 : vector<1x1x8x8xf32> to vector<8x8xf32>
    %88 = vector.shape_cast %85 : vector<8x8xf32> to vector<1x1x8x8xf32>
    tpu.vector_store %arg13[%c0_45, %c2, %c0_46, %c0_47], %88 {strides = array<i32>} : memref<1x4x8x8xf32, #tpu.memory_space<vmem>>, vector<1x1x8x8xf32>,
    %cst_48 = arith.constant dense<0.000000e+00> : vector<8x8xf32>
    %89 = tpu.matmul %85, %68, %cst_48 {dimension_numbers = #tpu.dot_dimension_numbers<[1], [0], [0], [1], [0, 0, 1, 1], [], []>} : vector<8x8xf32>, vector<8x8xf32>, vector<8x8xf32> -> vector<8x8xf32>
    %90 = vector.extract_strided_slice %10 {offsets = [0, 24], sizes = [8, 8], strides = [1, 1]} : vector<8x32xf32> to vector<8x8xf32>
    %91 = vector.extract_strided_slice %16 {offsets = [0, 24], sizes = [8, 8], strides = [1, 1]} : vector<8x32xf32> to vector<8x8xf32>
    %92 = vector.extract_strided_slice %17 {offsets = [0, 24], sizes = [8, 8], strides = [1, 1]} : vector<8x32xf32> to vector<8x8xf32>
    %93 = tpu.transpose %91, [1, 0] : vector<8x8xf32> -> vector<8x8xf32>
    %cst_49 = arith.constant dense<0.000000e+00> : vector<8x8xf32>
    %94 = tpu.matmul %90, %93, %cst_49 {dimension_numbers = #tpu.dot_dimension_numbers<[1], [0], [0], [1], [0, 0, 1, 1], [], []>} : vector<8x8xf32>, vector<8x8xf32>, vector<8x8xf32> -> vector<8x8xf32>
    %cst_50 = arith.constant 0.353553385 : f32
    %95 = vector.broadcast %cst_50 : f32 to vector<8x8xf32>
    %96 = arith.mulf %94, %95 : vector<8x8xf32>
    %cst_51 = arith.constant 0.000000e+00 : f32
    %97 = vector.broadcast %cst_51 : f32 to vector<8x8xf32>
    %98 = arith.cmpf oeq, %5, %97 : vector<8x8xf32>
    %cst_52 = arith.constant -1.000000e+09 : f32
    %99 = vector.broadcast %cst_52 : f32 to vector<8x8xf32>
    %100 = arith.select %98, %99, %96 : vector<8x8xi1>, vector<8x8xf32>
    %cst_53 = arith.constant dense<0xFF800000> : vector<8xf32>
    %101 = vector.multi_reduction <maximumf>, %100, %cst_53 [1] : vector<8x8xf32> to vector<8xf32>
    %102 = vector.shape_cast %101 : vector<8xf32> to vector<8x1xf32>
    %103 = vector.broadcast %102 : vector<8x1xf32> to vector<8x8xf32>
    %104 = arith.subf %100, %103 : vector<8x8xf32>
    %105 = math.exp %104 : vector<8x8xf32>
    %cst_54 = arith.constant dense<0.000000e+00> : vector<8xf32>
    %106 = vector.multi_reduction <add>, %105, %cst_54 [1] : vector<8x8xf32> to vector<8xf32>
    %107 = vector.shape_cast %106 : vector<8xf32> to vector<8x1xf32>
    %108 = vector.broadcast %107 : vector<8x1xf32> to vector<8x8xf32>
    %109 = arith.divf %105, %108 : vector<8x8xf32>
    %c0_55 = arith.constant 0 : index
    %c3 = arith.constant 3 : index
    %c0_56 = arith.constant 0 : index
    %c0_57 = arith.constant 0 : index
    %110 = vector.load %arg13[%c0_55, %c3, %c0_56, %c0_57] : memref<1x4x8x8xf32, #tpu.memory_space<vmem>>, vector<1x1x8x8xf32>
    %111 = vector.shape_cast %110 : vector<1x1x8x8xf32> to vector<8x8xf32>
    %112 = vector.shape_cast %109 : vector<8x8xf32> to vector<1x1x8x8xf32>
    tpu.vector_store %arg13[%c0_55, %c3, %c0_56, %c0_57], %112 {strides = array<i32>} : memref<1x4x8x8xf32, #tpu.memory_space<vmem>>, vector<1x1x8x8xf32>,
    %cst_58 = arith.constant dense<0.000000e+00> : vector<8x8xf32>
    %113 = tpu.matmul %109, %92, %cst_58 {dimension_numbers = #tpu.dot_dimension_numbers<[1], [0], [0], [1], [0, 0, 1, 1], [], []>} : vector<8x8xf32>, vector<8x8xf32>, vector<8x8xf32> -> vector<8x8xf32>
    %114 = tpu.concatenate %41, %65, %89, %113 in 1 : vector<8x8xf32>, vector<8x8xf32>, vector<8x8xf32>, vector<8x8xf32> -> vector<8x32xf32>
    %c0_59 = arith.constant 0 : index
    %c0_60 = arith.constant 0 : index
    %115 = vector.load %arg8[%c0_59, %c0_60] : memref<32x32xf32, #tpu.memory_space<vmem>>, vector<32x32xf32>
    %cst_61 = arith.constant dense<0.000000e+00> : vector<8x32xf32>
    %116 = tpu.matmul %114, %115, %cst_61 {dimension_numbers = #tpu.dot_dimension_numbers<[1], [0], [0], [1], [0, 0, 1, 1], [], []>} : vector<8x32xf32>, vector<32x32xf32>, vector<8x32xf32> -> vector<8x32xf32>
    %c0_62 = arith.constant 0 : index
    %c0_63 = arith.constant 0 : index
    %117 = vector.load %arg9[%c0_62, %c0_63] : memref<1x32xf32, #tpu.memory_space<vmem>>, vector<1x32xf32>
    %118 = vector.broadcast %117 : vector<1x32xf32> to vector<8x32xf32>
    %119 = arith.addf %116, %118 : vector<8x32xf32>
    %120 = arith.addf %1, %119 : vector<8x32xf32>
    %cst_64 = arith.constant dense<0.000000e+00> : vector<8xf32>
    %121 = vector.multi_reduction <add>, %120, %cst_64 [1] : vector<8x32xf32> to vector<8xf32>
    %122 = vector.shape_cast %121 : vector<8xf32> to vector<8x1xf32>
    %cst_65 = arith.constant 3.200000e+01 : f32
    %123 = vector.broadcast %cst_65 : f32 to vector<8x1xf32>
    %124 = arith.divf %122, %123 : vector<8x1xf32>
    %125 = vector.broadcast %124 : vector<8x1xf32> to vector<8x32xf32>
    %126 = arith.subf %120, %125 : vector<8x32xf32>
    %127 = arith.mulf %126, %126 : vector<8x32xf32>
    %cst_66 = arith.constant dense<0.000000e+00> : vector<8xf32>
    %128 = vector.multi_reduction <add>, %127, %cst_66 [1] : vector<8x32xf32> to vector<8xf32>
    %129 = vector.shape_cast %128 : vector<8xf32> to vector<8x1xf32>
    %cst_67 = arith.constant 3.200000e+01 : f32
    %130 = vector.broadcast %cst_67 : f32 to vector<8x1xf32>
    %131 = arith.divf %129, %130 : vector<8x1xf32>
    %132 = vector.broadcast %124 : vector<8x1xf32> to vector<8x32xf32>
    %133 = arith.subf %120, %132 : vector<8x32xf32>
    %cst_68 = arith.constant 9.99999974E-6 : f32
    %134 = vector.broadcast %cst_68 : f32 to vector<8x1xf32>
    %135 = arith.addf %131, %134 : vector<8x1xf32>
    %136 = math.rsqrt %135 : vector<8x1xf32>
    %137 = vector.broadcast %136 : vector<8x1xf32> to vector<8x32xf32>
    %138 = arith.mulf %133, %137 : vector<8x32xf32>
    %c0_69 = arith.constant 0 : index
    %c0_70 = arith.constant 0 : index
    %139 = vector.load %arg10[%c0_69, %c0_70] : memref<1x32xf32, #tpu.memory_space<vmem>>, vector<1x32xf32>
    %140 = vector.broadcast %139 : vector<1x32xf32> to vector<8x32xf32>
    %141 = arith.mulf %138, %140 : vector<8x32xf32>
    %c0_71 = arith.constant 0 : index
    %c0_72 = arith.constant 0 : index
    %142 = vector.load %arg11[%c0_71, %c0_72] : memref<1x32xf32, #tpu.memory_space<vmem>>, vector<1x32xf32>
    %143 = vector.broadcast %142 : vector<1x32xf32> to vector<8x32xf32>
    %144 = arith.addf %141, %143 : vector<8x32xf32>
    %c0_73 = arith.constant 0 : index
    %c0_74 = arith.constant 0 : index
    %c0_75 = arith.constant 0 : index
    %145 = vector.load %arg12[%c0_73, %c0_74, %c0_75] : memref<1x8x32xf32, #tpu.memory_space<vmem>>, vector<1x8x32xf32>
    %146 = vector.shape_cast %145 : vector<1x8x32xf32> to vector<8x32xf32>
    %147 = vector.shape_cast %144 : vector<8x32xf32> to vector<1x8x32xf32>
    tpu.vector_store %arg12[%c0_73, %c0_74, %c0_75], %147 {strides = array<i32>} : memref<1x8x32xf32, #tpu.memory_space<vmem>>, vector<1x8x32xf32>,
    return
  }
  func.func @transform_0(%arg0: i32) -> (i32, i32, i32) {
    %c0_i32 = arith.constant 0 : i32
    %c0_i32_0 = arith.constant 0 : i32
    %c0_i32_1 = arith.constant 0 : i32
    return %arg0, %c0_i32, %c0_i32_0 : i32, i32, i32
  }
  func.func @transform_1(%arg0: i32) -> (i32, i32, i32) {
    %c0_i32 = arith.constant 0 : i32
    %c0_i32_0 = arith.constant 0 : i32
    %c0_i32_1 = arith.constant 0 : i32
    return %arg0, %c0_i32, %c0_i32_0 : i32, i32, i32
  }
  func.func @transform_2(%arg0: i32) -> (i32, i32, i32, i32) {
    %c0_i32 = arith.constant 0 : i32
    %c0_i32_0 = arith.constant 0 : i32
    %c0_i32_1 = arith.constant 0 : i32
    %c0_i32_2 = arith.constant 0 : i32
    return %arg0, %c0_i32, %c0_i32_0, %c0_i32_1 : i32, i32, i32, i32
  }
  func.func @transform_3(%arg0: i32) -> (i32, i32) {
    %c0_i32 = arith.constant 0 : i32
    %c0_i32_0 = arith.constant 0 : i32
    %c0_i32_1 = arith.constant 0 : i32
    return %c0_i32, %c0_i32_0 : i32, i32
  }
  func.func @transform_4(%arg0: i32) -> (i32, i32) {
    %c0_i32 = arith.constant 0 : i32
    %c0_i32_0 = arith.constant 0 : i32
    %c0_i32_1 = arith.constant 0 : i32
    return %c0_i32, %c0_i32_0 : i32, i32
  }
  func.func @transform_5(%arg0: i32) -> (i32, i32) {
    %c0_i32 = arith.constant 0 : i32
    %c0_i32_0 = arith.constant 0 : i32
    %c0_i32_1 = arith.constant 0 : i32
    return %c0_i32, %c0_i32_0 : i32, i32
  }
  func.func @transform_6(%arg0: i32) -> (i32, i32) {
    %c0_i32 = arith.constant 0 : i32
    %c0_i32_0 = arith.constant 0 : i32
    %c0_i32_1 = arith.constant 0 : i32
    return %c0_i32, %c0_i32_0 : i32, i32
  }
  func.func @transform_7(%arg0: i32) -> (i32, i32) {
    %c0_i32 = arith.constant 0 : i32
    %c0_i32_0 = arith.constant 0 : i32
    %c0_i32_1 = arith.constant 0 : i32
    return %c0_i32, %c0_i32_0 : i32, i32
  }
  func.func @transform_8(%arg0: i32) -> (i32, i32) {
    %c0_i32 = arith.constant 0 : i32
    %c0_i32_0 = arith.constant 0 : i32
    %c0_i32_1 = arith.constant 0 : i32
    return %c0_i32, %c0_i32_0 : i32, i32
  }
  func.func @transform_9(%arg0: i32) -> (i32, i32) {
    %c0_i32 = arith.constant 0 : i32
    %c0_i32_0 = arith.constant 0 : i32
    %c0_i32_1 = arith.constant 0 : i32
    return %c0_i32, %c0_i32_0 : i32, i32
  }
  func.func @transform_10(%arg0: i32) -> (i32, i32) {
    %c0_i32 = arith.constant 0 : i32
    %c0_i32_0 = arith.constant 0 : i32
    %c0_i32_1 = arith.constant 0 : i32
    return %c0_i32, %c0_i32_0 : i32, i32
  }
  func.func @transform_11(%arg0: i32) -> (i32, i32, i32) {
    %c0_i32 = arith.constant 0 : i32
    %c0_i32_0 = arith.constant 0 : i32
    %c0_i32_1 = arith.constant 0 : i32
    return %arg0, %c0_i32, %c0_i32_0 : i32, i32, i32
  }
  func.func @transform_12(%arg0: i32) -> (i32, i32, i32, i32) {
    %c0_i32 = arith.constant 0 : i32
    %c0_i32_0 = arith.constant 0 : i32
    %c0_i32_1 = arith.constant 0 : i32
    %c0_i32_2 = arith.constant 0 : i32
    return %arg0, %c0_i32, %c0_i32_0, %c0_i32_1 : i32, i32, i32, i32
  }
}

module attributes {stable_mosaic.version = 11 : i64} {
  func.func @_fc_out_kernel(%arg0: i32, %arg1: memref<1x8x32xf32, #tpu.memory_space<vmem>>, %arg2: memref<32x64xf32, #tpu.memory_space<vmem>>, %arg3: memref<1x64xf32, #tpu.memory_space<vmem>>, %arg4: memref<1x8x64xf32, #tpu.memory_space<vmem>>) attributes {dimension_semantics = [#tpu.dimension_semantics<parallel>], iteration_bounds = array<i64: 2>, scalar_prefetch = 0 : i64, scratch_operands = 0 : i64, tpu.core_type = #tpu.core_type<tc>, window_params = [{transform_indices = @transform_0, window_bounds = array<i64: 1, 8, 32>}, {pipeline_mode = #tpu.pipeline_mode<synchronous>, transform_indices = @transform_1, window_bounds = array<i64: 32, 64>}, {pipeline_mode = #tpu.pipeline_mode<synchronous>, transform_indices = @transform_2, window_bounds = array<i64: 1, 64>}, {transform_indices = @transform_3, window_bounds = array<i64: 1, 8, 64>}]} {
    %c0 = arith.constant 0 : index
    %c0_0 = arith.constant 0 : index
    %c0_1 = arith.constant 0 : index
    %0 = vector.load %arg1[%c0, %c0_0, %c0_1] : memref<1x8x32xf32, #tpu.memory_space<vmem>>, vector<1x8x32xf32>
    %1 = vector.shape_cast %0 : vector<1x8x32xf32> to vector<8x32xf32>
    %c0_2 = arith.constant 0 : index
    %c0_3 = arith.constant 0 : index
    %2 = vector.load %arg2[%c0_2, %c0_3] : memref<32x64xf32, #tpu.memory_space<vmem>>, vector<32x64xf32>
    %cst = arith.constant dense<0.000000e+00> : vector<8x64xf32>
    %3 = tpu.matmul %1, %2, %cst {dimension_numbers = #tpu.dot_dimension_numbers<[1], [0], [0], [1], [0, 0, 1, 1], [], []>} : vector<8x32xf32>, vector<32x64xf32>, vector<8x64xf32> -> vector<8x64xf32>
    %c0_4 = arith.constant 0 : index
    %c0_5 = arith.constant 0 : index
    %4 = vector.load %arg3[%c0_4, %c0_5] : memref<1x64xf32, #tpu.memory_space<vmem>>, vector<1x64xf32>
    %5 = vector.broadcast %4 : vector<1x64xf32> to vector<8x64xf32>
    %6 = arith.addf %3, %5 : vector<8x64xf32>
    %c0_6 = arith.constant 0 : index
    %c0_7 = arith.constant 0 : index
    %c0_8 = arith.constant 0 : index
    %7 = vector.load %arg4[%c0_6, %c0_7, %c0_8] : memref<1x8x64xf32, #tpu.memory_space<vmem>>, vector<1x8x64xf32>
    %8 = vector.shape_cast %7 : vector<1x8x64xf32> to vector<8x64xf32>
    %9 = vector.shape_cast %6 : vector<8x64xf32> to vector<1x8x64xf32>
    tpu.vector_store %arg4[%c0_6, %c0_7, %c0_8], %9 {strides = array<i32>} : memref<1x8x64xf32, #tpu.memory_space<vmem>>, vector<1x8x64xf32>,
    return
  }
  func.func @transform_0(%arg0: i32) -> (i32, i32, i32) {
    %c0_i32 = arith.constant 0 : i32
    %c0_i32_0 = arith.constant 0 : i32
    %c0_i32_1 = arith.constant 0 : i32
    return %arg0, %c0_i32, %c0_i32_0 : i32, i32, i32
  }
  func.func @transform_1(%arg0: i32) -> (i32, i32) {
    %c0_i32 = arith.constant 0 : i32
    %c0_i32_0 = arith.constant 0 : i32
    %c0_i32_1 = arith.constant 0 : i32
    return %c0_i32, %c0_i32_0 : i32, i32
  }
  func.func @transform_2(%arg0: i32) -> (i32, i32) {
    %c0_i32 = arith.constant 0 : i32
    %c0_i32_0 = arith.constant 0 : i32
    %c0_i32_1 = arith.constant 0 : i32
    return %c0_i32, %c0_i32_0 : i32, i32
  }
  func.func @transform_3(%arg0: i32) -> (i32, i32, i32) {
    %c0_i32 = arith.constant 0 : i32
    %c0_i32_0 = arith.constant 0 : i32
    %c0_i32_1 = arith.constant 0 : i32
    return %arg0, %c0_i32, %c0_i32_0 : i32, i32, i32
  }
}

</mosaic_0001>

<llo_original>
// kernel: decoder_forward.8
$region0: #{decoder_forward.8}
  #allocation0 [shape = 'u32[]', space=smem, size = 0x4, offset = 0x4, fixed_abs, tag = 'smem constant byte address 0x4 - core index']
  #allocation1 [shape = 'u32[72,128]{1,0:T(1,128)}', space=vmem, size = 0x9000, scoped, tag = 'internal scratch']
  %s0 = inlined_call_operand.vmem [shape: s32[2,8,1], index: 0, kind: input, shape index: {}]
  %s1 = inlined_call_operand.vmem [shape: f32[64,32], index: 1, kind: input, shape index: {}]
  %s2 = inlined_call_operand.vmem [shape: f32[8,32], index: 2, kind: input, shape index: {}]
  %s3 = inlined_call_operand.vmem [shape: f32[2,8,32], index: 3, kind: output, shape index: {}]
  %s4 = sld [smem:[#allocation0]]
  $region45: #{decoder_forward.8} parent=0
    _
  %s6 = ssub.s32 1, %s4
  %s7 = scalar_select 0, %s6, %s4
  loop: start=0, step=1, limit=4
  $region2: #{decoder_forward.8} parent=0 // loop_pre_header
    _
  $region3: #{decoder_forward.8} parent=0 // loop_header
    %s9 = sphi 0, %s13
    %p10 = scmp.ge.s32.totalorder %s9, 4
    %s19 = sphi 0, %s21
    %s22 = sphi 0, %s19
    %s23 = sphi 0, %s22
    %s39 = sphi 0, %s23
    %s43 = sphi 0, %s43
    %s45 = sphi 0, %s43
    %s46 = sphi 0, %s45
    %s60 = sphi 0, %s46
    %s64 = sphi 0, %s64
    %s66 = sphi 0, %s64
    %s67 = sphi 0, %s66
    %s81 = sphi 0, %s67
    %s87 = sphi 0, %s89
    %s90 = sphi 0, %s87
    %s91 = sphi 0, %s90
    %s107 = sphi 0, %s91
  $region4: #{decoder_forward.8} parent=0 // loop_header_branch
    %12 = sbr.rel (%p10) target = $region8
  $region5: #{decoder_forward.8} parent=0 // loop_body
    %s14 = ssub.s32 %s9, 1
    %s15 = ssub.s32 %s9, 2
    %s16 = sadd.s32 %s9, 1
    %s17 = ssub.s32 %s9, %s16
    %p18 = scmp.eq.s32.totalorder %s17, 0
    %s20 = sadd.s32 %s19, 1
    %s21 = scalar_select %p18, %s19, %s20
    %p24 = pneg %p18
    %p25 = scmp.eq.s32.totalorder %s9, 1
    %p26 = por %p24, %p25
    %p27 = scmp.ne.s32.totalorder %s19, %s22
    %p28 = scmp.eq.s32.totalorder %s9, 0
    %p29 = por %p27, %p28
    %p30 = scmp.ne.s32.totalorder %s19, %s22
    %p31 = scmp.eq.s32.totalorder %s14, 1
    %p32 = por %p30, %p31
    %p33 = scmp.ne.s32.totalorder %s22, %s23
    %p34 = scmp.eq.s32.totalorder %s14, 0
    %p35 = por %p33, %p34
    %p36 = scmp.ne.s32.totalorder %s22, %s23
    %p37 = scmp.eq.s32.totalorder %s15, 1
    %p38 = por %p36, %p37
    %p40 = scmp.ne.s32.totalorder %s23, %s39
    %p41 = scmp.eq.s32.totalorder %s15, 0
    %p42 = por %p40, %p41
    %s44 = sadd.s32 %s43, 1
    %p47 = scmp.eq.s32.totalorder %s9, 1
    %p48 = scmp.ne.s32.totalorder %s43, %s45
    %p49 = scmp.eq.s32.totalorder %s9, 0
    %p50 = por %p48, %p49
    %p51 = scmp.ne.s32.totalorder %s43, %s45
    %p52 = scmp.eq.s32.totalorder %s14, 1
    %p53 = por %p51, %p52
    %p54 = scmp.ne.s32.totalorder %s45, %s46
    %p55 = scmp.eq.s32.totalorder %s14, 0
    %p56 = por %p54, %p55
    %p57 = scmp.ne.s32.totalorder %s45, %s46
    %p58 = scmp.eq.s32.totalorder %s15, 1
    %p59 = por %p57, %p58
    %p61 = scmp.ne.s32.totalorder %s46, %s60
    %p62 = scmp.eq.s32.totalorder %s15, 0
    %p63 = por %p61, %p62
    %s65 = sadd.s32 %s64, 1
    %p68 = scmp.eq.s32.totalorder %s9, 1
    %p69 = scmp.ne.s32.totalorder %s64, %s66
    %p70 = scmp.eq.s32.totalorder %s9, 0
    %p71 = por %p69, %p70
    %p72 = scmp.ne.s32.totalorder %s64, %s66
    %p73 = scmp.eq.s32.totalorder %s14, 1
    %p74 = por %p72, %p73
    %p75 = scmp.ne.s32.totalorder %s66, %s67
    %p76 = scmp.eq.s32.totalorder %s14, 0
    %p77 = por %p75, %p76
    %p78 = scmp.ne.s32.totalorder %s66, %s67
    %p79 = scmp.eq.s32.totalorder %s15, 1
    %p80 = por %p78, %p79
    %p82 = scmp.ne.s32.totalorder %s67, %s81
    %p83 = scmp.eq.s32.totalorder %s15, 0
    %p84 = por %p82, %p83
    %s85 = ssub.s32 %s9, %s16
    %p86 = scmp.eq.s32.totalorder %s85, 0
    %s88 = sadd.s32 %s87, 1
    %s89 = scalar_select %p86, %s87, %s88
    %p92 = pneg %p86
    %p93 = scmp.eq.s32.totalorder %s9, 1
    %p94 = por %p92, %p93
    %p95 = scmp.ne.s32.totalorder %s87, %s90
    %p96 = scmp.eq.s32.totalorder %s9, 0
    %p97 = por %p95, %p96
    %p98 = scmp.ne.s32.totalorder %s87, %s90
    %p99 = scmp.eq.s32.totalorder %s14, 1
    %p100 = por %p98, %p99
    %p101 = scmp.ne.s32.totalorder %s90, %s91
    %p102 = scmp.eq.s32.totalorder %s14, 0
    %p103 = por %p101, %p102
    %p104 = scmp.ne.s32.totalorder %s90, %s91
    %p105 = scmp.eq.s32.totalorder %s15, 1
    %p106 = por %p104, %p105
    %p108 = scmp.ne.s32.totalorder %s91, %s107
    %p109 = scmp.eq.s32.totalorder %s15, 0
    %p110 = por %p108, %p109
    %p111 = scmp.le.s32.totalorder 1, %s9
    %p112 = scmp.lt.s32.totalorder %s9, 3
    %p113 = pnand %p111, %p112
    %p114 = pneg %p113
    // Predicated region
    $region9: #{decoder_forward.8} parent=5 // pred_check
      _
    $region10: #{decoder_forward.8} parent=5 // pred_check_branch
      %116 = sbr.rel (%p113) target = $region12
    $region11: #{decoder_forward.8} parent=5 // pred_region
      %s117 = ssub.s32 %s9, 1
      // Predicated region
      $region13: #{decoder_forward.8} parent=11 // pred_check
        %p118 = pneg %p56
      $region14: #{decoder_forward.8} parent=11 // pred_check_branch
        %120 = sbr.rel (%p118) target = $region16
      $region15: #{decoder_forward.8} parent=11 // pred_region
        _
      $region16: #{decoder_forward.8} parent=11 // pred_fallthru
        _
      // Predicated region
      $region17: #{decoder_forward.8} parent=11 // pred_check
        %p121 = pneg %p77
      $region18: #{decoder_forward.8} parent=11 // pred_check_branch
        %123 = sbr.rel (%p121) target = $region20
      $region19: #{decoder_forward.8} parent=11 // pred_region
        _
      $region20: #{decoder_forward.8} parent=11 // pred_fallthru
        _
    $region12: #{decoder_forward.8} parent=5 // pred_fallthru
      _
    %p124 = scmp.lt.s32.totalorder %s9, 2
    // Predicated region
    $region21: #{decoder_forward.8} parent=5 // pred_check
      %p125 = pneg %p124
    $region22: #{decoder_forward.8} parent=5 // pred_check_branch
      %127 = sbr.rel (%p125) target = $region24
    $region23: #{decoder_forward.8} parent=5 // pred_region
      // Predicated region
      $region25: #{decoder_forward.8} parent=23 // pred_check
        %p128 = pneg %p29
      $region26: #{decoder_forward.8} parent=23 // pred_check_branch
        %130 = sbr.rel (%p128) target = $region28
      $region27: #{decoder_forward.8} parent=23 // pred_region
        %p131 = scmp.lt.s32.totalorder %s9, 1
        %s132 = scalar_select %p131, %s9, 1
        %s133 = smul.addr %s132, 8
        %s134 = scalar_lea.vmem %s0, %s133
      $region28: #{decoder_forward.8} parent=23 // pred_fallthru
        _
    $region24: #{decoder_forward.8} parent=5 // pred_fallthru
      _
    %p135 = scmp.le.s32.totalorder 1, %s9
    %p136 = scmp.lt.s32.totalorder %s9, 3
    %p137 = pnand %p135, %p136
    %p138 = pneg %p137
    // Predicated region
    $region29: #{decoder_forward.8} parent=5 // pred_check
      _
    $region30: #{decoder_forward.8} parent=5 // pred_check_branch
      %140 = sbr.rel (%p137) target = $region32
    $region31: #{decoder_forward.8} parent=5 // pred_region
      %s141 = ssub.s32 %s9, 1
      %p142 = scmp.lt.s32.totalorder %s14, 1
      %s143 = scalar_select %p142, %s14, 1
      %s144 = smul.addr %s143, 8
      %s145 = scalar_lea.vmem %s0, %s144
      %p146 = pneg %p35
      %p147 = pneg %p32
      %p148 = pneg %p56
      %p149 = pneg %p53
      %p150 = pneg %p77
      %p151 = pneg %p74
      %p152 = pneg %p103
      %p153 = pneg %p100
      %p154 = scmp.lt.s32.totalorder %s14, 1
      %s155 = scalar_select %p154, %s14, 1
      %s156 = smul.addr %s155, 8
      %s157 = scalar_lea.vmem %s3, %s156
      %p158 = scmp.lt.s32.totalorder %s14, 1
      %s159 = scalar_select %p158, %s14, 1
      %s160 = smul.addr %s159, 8
      %s161 = scalar_lea.vmem %s0, %s160
      %p162 = scmp.lt.s32.totalorder %s14, 1
      %s163 = scalar_select %p162, %s14, 1
      %s164 = smul.addr %s163, 8
      %s165 = scalar_lea.vmem %s3, %s164
      %v166 = vld [vmem:[%s161] sm:$0xff]
      %v167 = vlaneseq
      %v168 = vand.u32 %v167, 127
      %169 = vset.pattern.permute.xlu0 0
      %170 = vperm.xlu0 %169, %v166
      %v171 = vpop.permute.xlu0 %170
      %vm172 = vcmp.eq.s32.totalorder %v168, %v171
      %v173 = vsel %vm172, 1, 0
      %v174 = vcvt.s32.f32 %v173
      %v175 = vld [vmem:[%s1] sm:$0xff]
      %v176 = vld [vmem:[%s1 + $0x8] sm:$0xff]
      %v177 = vld [vmem:[%s1 + $0x10] sm:$0xff]
      %v178 = vld [vmem:[%s1 + $0x18] sm:$0xff]
      %v179 = vld [vmem:[%s1 + $0x20] sm:$0xff]
      %v180 = vld [vmem:[%s1 + $0x28] sm:$0xff]
      %v181 = vld [vmem:[%s1 + $0x30] sm:$0xff]
      %v182 = vld [vmem:[%s1 + $0x38] sm:$0xff]
      %vm183 = vcmask 523264
      %v185 = vsel %vm183, %v174, 0
      %187 = vmatpush.msra.mxu0 0.0
      %188 = vmatpush.msra.mxu0 0.0
      %189 = vmatpush.msra.mxu0 0.0
      %190 = vmatpush.msra.mxu0 0.0
      %191 = vmatpush.msra.mxu0 0.0
      %192 = vmatpush.msra.mxu0 0.0
      %193 = vmatpush.msra.mxu0 0.0
      %194 = vmatpush.msra.mxu0 0.0
      %195 = vmatpush.msra.mxu0 %v182
      %196 = vmatpush.msra.mxu0 %v181
      %197 = vmatpush.msra.mxu0 %v180
      %198 = vmatpush.msra.mxu0 %v179
      %199 = vmatpush.msra.mxu0 %v178
      %200 = vmatpush.msra.mxu0 %v177
      %201 = vmatpush.msra.mxu0 %v176
      %202 = vmatpush.msra.mxu0 %v175
      %203 = vmatmul.f32.gmra.mxu0 %v185
      %v204 = vpop.f32.mrf.mxu0
      %v205 = vadd.f32 0.0, %v204
      %206 = vdwg.mxu0
      %v207 = vmul.f32 %v205, 5.656854
      %v208 = vld [vmem:[%s2] sm:$0xff]
      %v209 = vadd.f32 %v207, %v208
      %vm210 = vcmask 261120
      %211 = vst.msk [vmem:[%s165] sm:$0xff] %vm210, %v209
      %p212 = scmp.lt.s32.totalorder %s14, 1
      %s213 = scalar_select %p212, %s14, 1
      %s214 = smul.addr %s213, 8
      %s215 = scalar_lea.vmem %s3, %s214
      // Predicated region
      $region33: #{decoder_forward.8} parent=31 // pred_check
        %p216 = pneg %p100
      $region34: #{decoder_forward.8} parent=31 // pred_check_branch
        %218 = sbr.rel (%p216) target = $region36
      $region35: #{decoder_forward.8} parent=31 // pred_region
        _
      $region36: #{decoder_forward.8} parent=31 // pred_fallthru
        _
    $region32: #{decoder_forward.8} parent=5 // pred_fallthru
      _
    %p219 = scmp.le.s32.totalorder 2, %s9
    // Predicated region
    $region37: #{decoder_forward.8} parent=5 // pred_check
      %p220 = pneg %p219
    $region38: #{decoder_forward.8} parent=5 // pred_check_branch
      %222 = sbr.rel (%p220) target = $region40
    $region39: #{decoder_forward.8} parent=5 // pred_region
      %s223 = ssub.s32 %s9, 2
      // Predicated region
      $region41: #{decoder_forward.8} parent=39 // pred_check
        %p224 = pneg %p106
      $region42: #{decoder_forward.8} parent=39 // pred_check_branch
        %226 = sbr.rel (%p224) target = $region44
      $region43: #{decoder_forward.8} parent=39 // pred_region
        %p227 = scmp.lt.s32.totalorder %s15, 1
        %s228 = scalar_select %p227, %s15, 1
        %s229 = smul.addr %s228, 8
        %s230 = scalar_lea.vmem %s3, %s229
      $region44: #{decoder_forward.8} parent=39 // pred_fallthru
        _
    $region40: #{decoder_forward.8} parent=5 // pred_fallthru
      _
  $region6: #{decoder_forward.8} parent=0 // loop_footer
    %s13 = sadd.s32 1, %s9
  $region7: #{decoder_forward.8} parent=0 // loop_footer_branch
    %8 = sbr.rel target = $region3
  $region8: #{decoder_forward.8} parent=0 // loop_exit
    _

// kernel: decoder_forward.11
$region0: #{decoder_forward.11}
  #allocation0 [shape = 'u32[]', space=smem, size = 0x4, offset = 0x4, fixed_abs, tag = 'smem constant byte address 0x4 - core index']
  #allocation1 [shape = 'u32[72,128]{1,0:T(1,128)}', space=vmem, size = 0x9000, scoped, tag = 'internal scratch']
  %s0 = inlined_call_operand.vmem [shape: f32[2,8,32], index: 0, kind: input, shape index: {}]
  %s1 = inlined_call_operand.vmem [shape: f32[32,64], index: 1, kind: input, shape index: {}]
  %s2 = inlined_call_operand.vmem [shape: f32[1,64], index: 2, kind: input, shape index: {}]
  %s3 = inlined_call_operand.vmem [shape: f32[64,32], index: 3, kind: input, shape index: {}]
  %s4 = inlined_call_operand.vmem [shape: f32[1,32], index: 4, kind: input, shape index: {}]
  %s5 = inlined_call_operand.vmem [shape: f32[1,32], index: 5, kind: input, shape index: {}]
  %s6 = inlined_call_operand.vmem [shape: f32[1,32], index: 6, kind: input, shape index: {}]
  %s7 = inlined_call_operand.vmem [shape: f32[2,8,32], index: 7, kind: output, shape index: {}]
  %s8 = sld [smem:[#allocation0]]
  $region61: #{decoder_forward.11} parent=0
    _
  %s10 = ssub.s32 1, %s8
  %s11 = scalar_select 0, %s10, %s8
  loop: start=0, step=1, limit=4
  $region2: #{decoder_forward.11} parent=0 // loop_pre_header
    _
  $region3: #{decoder_forward.11} parent=0 // loop_header
    %s13 = sphi 0, %s17
    %p14 = scmp.ge.s32.totalorder %s13, 4
    %s23 = sphi 0, %s25
    %s26 = sphi 0, %s23
    %s27 = sphi 0, %s26
    %s43 = sphi 0, %s27
    %s47 = sphi 0, %s47
    %s49 = sphi 0, %s47
    %s50 = sphi 0, %s49
    %s64 = sphi 0, %s50
    %s68 = sphi 0, %s68
    %s70 = sphi 0, %s68
    %s71 = sphi 0, %s70
    %s85 = sphi 0, %s71
    %s89 = sphi 0, %s89
    %s91 = sphi 0, %s89
    %s92 = sphi 0, %s91
    %s106 = sphi 0, %s92
    %s110 = sphi 0, %s110
    %s112 = sphi 0, %s110
    %s113 = sphi 0, %s112
    %s127 = sphi 0, %s113
    %s131 = sphi 0, %s131
    %s133 = sphi 0, %s131
    %s134 = sphi 0, %s133
    %s148 = sphi 0, %s134
    %s152 = sphi 0, %s152
    %s154 = sphi 0, %s152
    %s155 = sphi 0, %s154
    %s169 = sphi 0, %s155
    %s175 = sphi 0, %s177
    %s178 = sphi 0, %s175
    %s179 = sphi 0, %s178
    %s195 = sphi 0, %s179
  $region4: #{decoder_forward.11} parent=0 // loop_header_branch
    %16 = sbr.rel (%p14) target = $region8
  $region5: #{decoder_forward.11} parent=0 // loop_body
    %s18 = ssub.s32 %s13, 1
    %s19 = ssub.s32 %s13, 2
    %s20 = sadd.s32 %s13, 1
    %s21 = ssub.s32 %s13, %s20
    %p22 = scmp.eq.s32.totalorder %s21, 0
    %s24 = sadd.s32 %s23, 1
    %s25 = scalar_select %p22, %s23, %s24
    %p28 = pneg %p22
    %p29 = scmp.eq.s32.totalorder %s13, 1
    %p30 = por %p28, %p29
    %p31 = scmp.ne.s32.totalorder %s23, %s26
    %p32 = scmp.eq.s32.totalorder %s13, 0
    %p33 = por %p31, %p32
    %p34 = scmp.ne.s32.totalorder %s23, %s26
    %p35 = scmp.eq.s32.totalorder %s18, 1
    %p36 = por %p34, %p35
    %p37 = scmp.ne.s32.totalorder %s26, %s27
    %p38 = scmp.eq.s32.totalorder %s18, 0
    %p39 = por %p37, %p38
    %p40 = scmp.ne.s32.totalorder %s26, %s27
    %p41 = scmp.eq.s32.totalorder %s19, 1
    %p42 = por %p40, %p41
    %p44 = scmp.ne.s32.totalorder %s27, %s43
    %p45 = scmp.eq.s32.totalorder %s19, 0
    %p46 = por %p44, %p45
    %s48 = sadd.s32 %s47, 1
    %p51 = scmp.eq.s32.totalorder %s13, 1
    %p52 = scmp.ne.s32.totalorder %s47, %s49
    %p53 = scmp.eq.s32.totalorder %s13, 0
    %p54 = por %p52, %p53
    %p55 = scmp.ne.s32.totalorder %s47, %s49
    %p56 = scmp.eq.s32.totalorder %s18, 1
    %p57 = por %p55, %p56
    %p58 = scmp.ne.s32.totalorder %s49, %s50
    %p59 = scmp.eq.s32.totalorder %s18, 0
    %p60 = por %p58, %p59
    %p61 = scmp.ne.s32.totalorder %s49, %s50
    %p62 = scmp.eq.s32.totalorder %s19, 1
    %p63 = por %p61, %p62
    %p65 = scmp.ne.s32.totalorder %s50, %s64
    %p66 = scmp.eq.s32.totalorder %s19, 0
    %p67 = por %p65, %p66
    %s69 = sadd.s32 %s68, 1
    %p72 = scmp.eq.s32.totalorder %s13, 1
    %p73 = scmp.ne.s32.totalorder %s68, %s70
    %p74 = scmp.eq.s32.totalorder %s13, 0
    %p75 = por %p73, %p74
    %p76 = scmp.ne.s32.totalorder %s68, %s70
    %p77 = scmp.eq.s32.totalorder %s18, 1
    %p78 = por %p76, %p77
    %p79 = scmp.ne.s32.totalorder %s70, %s71
    %p80 = scmp.eq.s32.totalorder %s18, 0
    %p81 = por %p79, %p80
    %p82 = scmp.ne.s32.totalorder %s70, %s71
    %p83 = scmp.eq.s32.totalorder %s19, 1
    %p84 = por %p82, %p83
    %p86 = scmp.ne.s32.totalorder %s71, %s85
    %p87 = scmp.eq.s32.totalorder %s19, 0
    %p88 = por %p86, %p87
    %s90 = sadd.s32 %s89, 1
    %p93 = scmp.eq.s32.totalorder %s13, 1
    %p94 = scmp.ne.s32.totalorder %s89, %s91
    %p95 = scmp.eq.s32.totalorder %s13, 0
    %p96 = por %p94, %p95
    %p97 = scmp.ne.s32.totalorder %s89, %s91
    %p98 = scmp.eq.s32.totalorder %s18, 1
    %p99 = por %p97, %p98
    %p100 = scmp.ne.s32.totalorder %s91, %s92
    %p101 = scmp.eq.s32.totalorder %s18, 0
    %p102 = por %p100, %p101
    %p103 = scmp.ne.s32.totalorder %s91, %s92
    %p104 = scmp.eq.s32.totalorder %s19, 1
    %p105 = por %p103, %p104
    %p107 = scmp.ne.s32.totalorder %s92, %s106
    %p108 = scmp.eq.s32.totalorder %s19, 0
    %p109 = por %p107, %p108
    %s111 = sadd.s32 %s110, 1
    %p114 = scmp.eq.s32.totalorder %s13, 1
    %p115 = scmp.ne.s32.totalorder %s110, %s112
    %p116 = scmp.eq.s32.totalorder %s13, 0
    %p117 = por %p115, %p116
    %p118 = scmp.ne.s32.totalorder %s110, %s112
    %p119 = scmp.eq.s32.totalorder %s18, 1
    %p120 = por %p118, %p119
    %p121 = scmp.ne.s32.totalorder %s112, %s113
    %p122 = scmp.eq.s32.totalorder %s18, 0
    %p123 = por %p121, %p122
    %p124 = scmp.ne.s32.totalorder %s112, %s113
    %p125 = scmp.eq.s32.totalorder %s19, 1
    %p126 = por %p124, %p125
    %p128 = scmp.ne.s32.totalorder %s113, %s127
    %p129 = scmp.eq.s32.totalorder %s19, 0
    %p130 = por %p128, %p129
    %s132 = sadd.s32 %s131, 1
    %p135 = scmp.eq.s32.totalorder %s13, 1
    %p136 = scmp.ne.s32.totalorder %s131, %s133
    %p137 = scmp.eq.s32.totalorder %s13, 0
    %p138 = por %p136, %p137
    %p139 = scmp.ne.s32.totalorder %s131, %s133
    %p140 = scmp.eq.s32.totalorder %s18, 1
    %p141 = por %p139, %p140
    %p142 = scmp.ne.s32.totalorder %s133, %s134
    %p143 = scmp.eq.s32.totalorder %s18, 0
    %p144 = por %p142, %p143
    %p145 = scmp.ne.s32.totalorder %s133, %s134
    %p146 = scmp.eq.s32.totalorder %s19, 1
    %p147 = por %p145, %p146
    %p149 = scmp.ne.s32.totalorder %s134, %s148
    %p150 = scmp.eq.s32.totalorder %s19, 0
    %p151 = por %p149, %p150
    %s153 = sadd.s32 %s152, 1
    %p156 = scmp.eq.s32.totalorder %s13, 1
    %p157 = scmp.ne.s32.totalorder %s152, %s154
    %p158 = scmp.eq.s32.totalorder %s13, 0
    %p159 = por %p157, %p158
    %p160 = scmp.ne.s32.totalorder %s152, %s154
    %p161 = scmp.eq.s32.totalorder %s18, 1
    %p162 = por %p160, %p161
    %p163 = scmp.ne.s32.totalorder %s154, %s155
    %p164 = scmp.eq.s32.totalorder %s18, 0
    %p165 = por %p163, %p164
    %p166 = scmp.ne.s32.totalorder %s154, %s155
    %p167 = scmp.eq.s32.totalorder %s19, 1
    %p168 = por %p166, %p167
    %p170 = scmp.ne.s32.totalorder %s155, %s169
    %p171 = scmp.eq.s32.totalorder %s19, 0
    %p172 = por %p170, %p171
    %s173 = ssub.s32 %s13, %s20
    %p174 = scmp.eq.s32.totalorder %s173, 0
    %s176 = sadd.s32 %s175, 1
    %s177 = scalar_select %p174, %s175, %s176
    %p180 = pneg %p174
    %p181 = scmp.eq.s32.totalorder %s13, 1
    %p182 = por %p180, %p181
    %p183 = scmp.ne.s32.totalorder %s175, %s178
    %p184 = scmp.eq.s32.totalorder %s13, 0
    %p185 = por %p183, %p184
    %p186 = scmp.ne.s32.totalorder %s175, %s178
    %p187 = scmp.eq.s32.totalorder %s18, 1
    %p188 = por %p186, %p187
    %p189 = scmp.ne.s32.totalorder %s178, %s179
    %p190 = scmp.eq.s32.totalorder %s18, 0
    %p191 = por %p189, %p190
    %p192 = scmp.ne.s32.totalorder %s178, %s179
    %p193 = scmp.eq.s32.totalorder %s19, 1
    %p194 = por %p192, %p193
    %p196 = scmp.ne.s32.totalorder %s179, %s195
    %p197 = scmp.eq.s32.totalorder %s19, 0
    %p198 = por %p196, %p197
    %p199 = scmp.le.s32.totalorder 1, %s13
    %p200 = scmp.lt.s32.totalorder %s13, 3
    %p201 = pnand %p199, %p200
    %p202 = pneg %p201
    // Predicated region
    $region9: #{decoder_forward.11} parent=5 // pred_check
      _
    $region10: #{decoder_forward.11} parent=5 // pred_check_branch
      %204 = sbr.rel (%p201) target = $region12
    $region11: #{decoder_forward.11} parent=5 // pred_region
      %s205 = ssub.s32 %s13, 1
      // Predicated region
      $region13: #{decoder_forward.11} parent=11 // pred_check
        %p206 = pneg %p60
      $region14: #{decoder_forward.11} parent=11 // pred_check_branch
        %208 = sbr.rel (%p206) target = $region16
      $region15: #{decoder_forward.11} parent=11 // pred_region
        _
      $region16: #{decoder_forward.11} parent=11 // pred_fallthru
        _
      // Predicated region
      $region17: #{decoder_forward.11} parent=11 // pred_check
        %p209 = pneg %p81
      $region18: #{decoder_forward.11} parent=11 // pred_check_branch
        %211 = sbr.rel (%p209) target = $region20
      $region19: #{decoder_forward.11} parent=11 // pred_region
        _
      $region20: #{decoder_forward.11} parent=11 // pred_fallthru
        _
      // Predicated region
      $region21: #{decoder_forward.11} parent=11 // pred_check
        %p212 = pneg %p102
      $region22: #{decoder_forward.11} parent=11 // pred_check_branch
        %214 = sbr.rel (%p212) target = $region24
      $region23: #{decoder_forward.11} parent=11 // pred_region
        _
      $region24: #{decoder_forward.11} parent=11 // pred_fallthru
        _
      // Predicated region
      $region25: #{decoder_forward.11} parent=11 // pred_check
        %p215 = pneg %p123
      $region26: #{decoder_forward.11} parent=11 // pred_check_branch
        %217 = sbr.rel (%p215) target = $region28
      $region27: #{decoder_forward.11} parent=11 // pred_region
        _
      $region28: #{decoder_forward.11} parent=11 // pred_fallthru
        _
      // Predicated region
      $region29: #{decoder_forward.11} parent=11 // pred_check
        %p218 = pneg %p144
      $region30: #{decoder_forward.11} parent=11 // pred_check_branch
        %220 = sbr.rel (%p218) target = $region32
      $region31: #{decoder_forward.11} parent=11 // pred_region
        _
      $region32: #{decoder_forward.11} parent=11 // pred_fallthru
        _
      // Predicated region
      $region33: #{decoder_forward.11} parent=11 // pred_check
        %p221 = pneg %p165
      $region34: #{decoder_forward.11} parent=11 // pred_check_branch
        %223 = sbr.rel (%p221) target = $region36
      $region35: #{decoder_forward.11} parent=11 // pred_region
        _
      $region36: #{decoder_forward.11} parent=11 // pred_fallthru
        _
    $region12: #{decoder_forward.11} parent=5 // pred_fallthru
      _
    %p224 = scmp.lt.s32.totalorder %s13, 2
    // Predicated region
    $region37: #{decoder_forward.11} parent=5 // pred_check
      %p225 = pneg %p224
    $region38: #{decoder_forward.11} parent=5 // pred_check_branch
      %227 = sbr.rel (%p225) target = $region40
    $region39: #{decoder_forward.11} parent=5 // pred_region
      // Predicated region
      $region41: #{decoder_forward.11} parent=39 // pred_check
        %p228 = pneg %p33
      $region42: #{decoder_forward.11} parent=39 // pred_check_branch
        %230 = sbr.rel (%p228) target = $region44
      $region43: #{decoder_forward.11} parent=39 // pred_region
        %p231 = scmp.lt.s32.totalorder %s13, 1
        %s232 = scalar_select %p231, %s13, 1
        %s233 = smul.addr %s232, 8
        %s234 = scalar_lea.vmem %s0, %s233
      $region44: #{decoder_forward.11} parent=39 // pred_fallthru
        _
    $region40: #{decoder_forward.11} parent=5 // pred_fallthru
      _
    %p235 = scmp.le.s32.totalorder 1, %s13
    %p236 = scmp.lt.s32.totalorder %s13, 3
    %p237 = pnand %p235, %p236
    %p238 = pneg %p237
    // Predicated region
    $region45: #{decoder_forward.11} parent=5 // pred_check
      _
    $region46: #{decoder_forward.11} parent=5 // pred_check_branch
      %240 = sbr.rel (%p237) target = $region48
    $region47: #{decoder_forward.11} parent=5 // pred_region
      %s241 = ssub.s32 %s13, 1
      %p242 = scmp.lt.s32.totalorder %s18, 1
      %s243 = scalar_select %p242, %s18, 1
      %s244 = smul.addr %s243, 8
      %s245 = scalar_lea.vmem %s0, %s244
      %p246 = pneg %p39
      %p247 = pneg %p36
      %p248 = pneg %p60
      %p249 = pneg %p57
      %p250 = pneg %p81
      %p251 = pneg %p78
      %p252 = pneg %p102
      %p253 = pneg %p99
      %p254 = pneg %p123
      %p255 = pneg %p120
      %p256 = pneg %p144
      %p257 = pneg %p141
      %p258 = pneg %p165
      %p259 = pneg %p162
      %p260 = pneg %p191
      %p261 = pneg %p188
      %p262 = scmp.lt.s32.totalorder %s18, 1
      %s263 = scalar_select %p262, %s18, 1
      %s264 = smul.addr %s263, 8
      %s265 = scalar_lea.vmem %s7, %s264
      %p266 = scmp.lt.s32.totalorder %s18, 1
      %s267 = scalar_select %p266, %s18, 1
      %s268 = smul.addr %s267, 8
      %s269 = scalar_lea.vmem %s0, %s268
      %p270 = scmp.lt.s32.totalorder %s18, 1
      %s271 = scalar_select %p270, %s18, 1
      %s272 = smul.addr %s271, 8
      %s273 = scalar_lea.vmem %s7, %s272
      %v274 = vld [vmem:[%s269] sm:$0xff]
      %v275 = vld [vmem:[%s1] sm:$0xff]
      %v276 = vld [vmem:[%s1 + $0x8] sm:$0xff]
      %v277 = vld [vmem:[%s1 + $0x10] sm:$0xff]
      %v278 = vld [vmem:[%s1 + $0x18] sm:$0xff]
      %v279 = vld [vmem:[%s2] sm:$0x1]
      %v281 = vperm.slane %v279, 0
      %vm283 = vcmask 261120
      %v285 = vsel %vm283, %v274, 0
      %287 = vmatpush.msra.mxu0 0.0
      %288 = vmatpush.msra.mxu0 0.0
      %289 = vmatpush.msra.mxu0 0.0
      %290 = vmatpush.msra.mxu0 0.0
      %291 = vmatpush.msra.mxu0 0.0
      %292 = vmatpush.msra.mxu0 0.0
      %293 = vmatpush.msra.mxu0 0.0
      %294 = vmatpush.msra.mxu0 0.0
      %295 = vmatpush.msra.mxu0 0.0
      %296 = vmatpush.msra.mxu0 0.0
      %297 = vmatpush.msra.mxu0 0.0
      %298 = vmatpush.msra.mxu0 0.0
      %299 = vmatpush.msra.mxu0 %v278
      %300 = vmatpush.msra.mxu0 %v277
      %301 = vmatpush.msra.mxu0 %v276
      %302 = vmatpush.msra.mxu0 %v275
      %303 = vmatmul.f32.gmra.mxu0 %v285
      %v304 = vpop.f32.mrf.mxu0
      %v305 = vadd.f32 %v281, %v304
      %306 = vdwg.mxu0
      %v307 = vmax.f32 %v305, 0.0
      %v308 = vld [vmem:[%s3] sm:$0xff]
      %v309 = vld [vmem:[%s3 + $0x8] sm:$0xff]
      %v310 = vld [vmem:[%s3 + $0x10] sm:$0xff]
      %v311 = vld [vmem:[%s3 + $0x18] sm:$0xff]
      %v312 = vld [vmem:[%s3 + $0x20] sm:$0xff]
      %v313 = vld [vmem:[%s3 + $0x28] sm:$0xff]
      %v314 = vld [vmem:[%s3 + $0x30] sm:$0xff]
      %v315 = vld [vmem:[%s3 + $0x38] sm:$0xff]
      %v316 = vld [vmem:[%s4] sm:$0x1]
      %v318 = vperm.slane %v316, 0
      %vm320 = vcmask 523264
      %v322 = vsel %vm320, %v307, 0
      %324 = vmatpush.msra.mxu0 0.0
      %325 = vmatpush.msra.mxu0 0.0
      %326 = vmatpush.msra.mxu0 0.0
      %327 = vmatpush.msra.mxu0 0.0
      %328 = vmatpush.msra.mxu0 0.0
      %329 = vmatpush.msra.mxu0 0.0
      %330 = vmatpush.msra.mxu0 0.0
      %331 = vmatpush.msra.mxu0 0.0
      %332 = vmatpush.msra.mxu0 %v315
      %333 = vmatpush.msra.mxu0 %v314
      %334 = vmatpush.msra.mxu0 %v313
      %335 = vmatpush.msra.mxu0 %v312
      %336 = vmatpush.msra.mxu0 %v311
      %337 = vmatpush.msra.mxu0 %v310
      %338 = vmatpush.msra.mxu0 %v309
      %339 = vmatpush.msra.mxu0 %v308
      %340 = vmatmul.f32.gmra.mxu0 %v322
      %v341 = vpop.f32.mrf.mxu0
      %v342 = vadd.f32 %v318, %v341
      %343 = vdwg.mxu0
      %v344 = vadd.f32 %v274, %v342
      %v345 = vsel %vm283, %v344, 0.0
      %346 = vadd.xlane.f32.xlu0 %v345
      %v347 = vpop.xlane.xlu0 %346
      %v348 = vrcp.pop 32.0
      %v349 = vmul.f32 32.0, %v348
      %v350 = vsub.f32 1.0, %v349
      %v351 = vmul.f32 %v348, %v350
      %v352 = vadd.f32 %v348, %v351
      %vm353 = vweird.f32 %v348
      %v354 = vsel %vm353, %v348, %v352
      %v355 = vmul.f32 %v347, %v354
      %v356 = vsub.f32 %v344, %v355
      %v357 = vmul.f32 %v356, %v356
      %v358 = vsel %vm283, %v357, 0.0
      %359 = vadd.xlane.f32.xlu0 %v358
      %v360 = vpop.xlane.xlu0 %359
      %v361 = vmul.f32 %v360, %v354
      %v362 = vadd.f32 %v361, 1e-05
      %v363 = vrsqrt.pop %v362
      %v364 = vmul.f32 %v363, %v362
      %v365 = vmul.f32 %v364, %v363
      %v366 = vmul.f32 0.5, %v365
      %v367 = vsub.f32 1.5, %v366
      %v368 = vmul.f32 %v363, %v367
      %vm369 = vweird.f32 %v362
      %vm370 = vweird.f32 %v363
      %vm371 = vmor %vm369, %vm370
      %v372 = vsel %vm371, %v363, %v368
      %v373 = vmul.f32 %v356, %v372
      %v374 = vld [vmem:[%s5] sm:$0x1]
      %v376 = vperm.slane %v374, 0
      %v378 = vmul.f32 %v373, %v376
      %v379 = vld [vmem:[%s6] sm:$0x1]
      %v381 = vperm.slane %v379, 0
      %v383 = vadd.f32 %v378, %v381
      %384 = vst.msk [vmem:[%s273] sm:$0xff] %vm283, %v383
      %p385 = scmp.lt.s32.totalorder %s18, 1
      %s386 = scalar_select %p385, %s18, 1
      %s387 = smul.addr %s386, 8
      %s388 = scalar_lea.vmem %s7, %s387
      // Predicated region
      $region49: #{decoder_forward.11} parent=47 // pred_check
        %p389 = pneg %p188
      $region50: #{decoder_forward.11} parent=47 // pred_check_branch
        %391 = sbr.rel (%p389) target = $region52
      $region51: #{decoder_forward.11} parent=47 // pred_region
        _
      $region52: #{decoder_forward.11} parent=47 // pred_fallthru
        _
    $region48: #{decoder_forward.11} parent=5 // pred_fallthru
      _
    %p392 = scmp.le.s32.totalorder 2, %s13
    // Predicated region
    $region53: #{decoder_forward.11} parent=5 // pred_check
      %p393 = pneg %p392
    $region54: #{decoder_forward.11} parent=5 // pred_check_branch
      %395 = sbr.rel (%p393) target = $region56
    $region55: #{decoder_forward.11} parent=5 // pred_region
      %s396 = ssub.s32 %s13, 2
      // Predicated region
      $region57: #{decoder_forward.11} parent=55 // pred_check
        %p397 = pneg %p194
      $region58: #{decoder_forward.11} parent=55 // pred_check_branch
        %399 = sbr.rel (%p397) target = $region60
      $region59: #{decoder_forward.11} parent=55 // pred_region
        %p400 = scmp.lt.s32.totalorder %s19, 1
        %s401 = scalar_select %p400, %s19, 1
        %s402 = smul.addr %s401, 8
        %s403 = scalar_lea.vmem %s7, %s402
      $region60: #{decoder_forward.11} parent=55 // pred_fallthru
        _
    $region56: #{decoder_forward.11} parent=5 // pred_fallthru
      _
  $region6: #{decoder_forward.11} parent=0 // loop_footer
    %s17 = sadd.s32 1, %s13
  $region7: #{decoder_forward.11} parent=0 // loop_footer_branch
    %12 = sbr.rel target = $region3
  $region8: #{decoder_forward.11} parent=0 // loop_exit
    _

// kernel: decoder_forward.9
$region0: #{decoder_forward.9}
  #allocation0 [shape = 'u32[]', space=smem, size = 0x4, offset = 0x4, fixed_abs, tag = 'smem constant byte address 0x4 - core index']
  #allocation1 [shape = 'u32[72,128]{1,0:T(1,128)}', space=vmem, size = 0x9000, scoped, tag = 'internal scratch']
  %s0 = inlined_call_operand.vmem [shape: f32[2,8,32], index: 0, kind: input, shape index: {}, may-alias: {0,1}]
  %s1 = inlined_call_operand.vmem [shape: f32[2,8,32], index: 1, kind: input, shape index: {}, may-alias: {0,1}]
  %s2 = inlined_call_operand.vmem [shape: f32[2,1,8,8], index: 2, kind: input, shape index: {}]
  %s3 = inlined_call_operand.vmem [shape: f32[32,32], index: 3, kind: input, shape index: {}]
  %s4 = inlined_call_operand.vmem [shape: f32[1,32], index: 4, kind: input, shape index: {}]
  %s5 = inlined_call_operand.vmem [shape: f32[32,64], index: 5, kind: input, shape index: {}]
  %s6 = inlined_call_operand.vmem [shape: f32[1,64], index: 6, kind: input, shape index: {}]
  %s7 = inlined_call_operand.vmem [shape: f32[32,32], index: 7, kind: input, shape index: {}]
  %s8 = inlined_call_operand.vmem [shape: f32[1,32], index: 8, kind: input, shape index: {}]
  %s9 = inlined_call_operand.vmem [shape: f32[1,32], index: 9, kind: input, shape index: {}]
  %s10 = inlined_call_operand.vmem [shape: f32[1,32], index: 10, kind: input, shape index: {}]
  %s11 = inlined_call_operand.vmem [shape: f32[2,8,32], index: 11, kind: output, shape index: {0}]
  %s12 = inlined_call_operand.hbm [shape: f32[2,4,8,8], index: 12, kind: output, shape index: {1}]
  %13 = xla_tuple %s11, %s12
  %s14 = sld [smem:[#allocation0]]
  $region85: #{decoder_forward.9} parent=0
    _
  %s16 = ssub.s32 1, %s14
  %s17 = scalar_select 0, %s16, %s14
  $region1: #{decoder_forward.9} parent=0
    #allocation2 [shape = 'u8[32768]{0}', space=vmem, size = 0x8000, scoped, tag = 'output window, operand 1']
    #allocation3 [shape = 's32[2]{0}', space=sflag, size = 0x8, scoped, tag = 'scoped memory for decoder_forward.9']
    %18 = vsyncpa [#allocation3], 0
    %s19 = scalar_lea.sflag [#allocation3], 1
    %20 = vsyncpa %s19, 0
    loop: start=0, step=1, limit=4
    $region2: #{decoder_forward.9} parent=1 // loop_pre_header
      _
    $region3: #{decoder_forward.9} parent=1 // loop_header
      %s22 = sphi 0, %s26
      %p23 = scmp.ge.s32.totalorder %s22, 4
      %s32 = sphi 0, %s34
      %s35 = sphi 0, %s32
      %s36 = sphi 0, %s35
      %s52 = sphi 0, %s36
      %s58 = sphi 0, %s60
      %s61 = sphi 0, %s58
      %s62 = sphi 0, %s61
      %s78 = sphi 0, %s62
      %s84 = sphi 0, %s86
      %s87 = sphi 0, %s84
      %s88 = sphi 0, %s87
      %s104 = sphi 0, %s88
      %s108 = sphi 0, %s108
      %s110 = sphi 0, %s108
      %s111 = sphi 0, %s110
      %s125 = sphi 0, %s111
      %s129 = sphi 0, %s129
      %s131 = sphi 0, %s129
      %s132 = sphi 0, %s131
      %s146 = sphi 0, %s132
      %s150 = sphi 0, %s150
      %s152 = sphi 0, %s150
      %s153 = sphi 0, %s152
      %s167 = sphi 0, %s153
      %s171 = sphi 0, %s171
      %s173 = sphi 0, %s171
      %s174 = sphi 0, %s173
      %s188 = sphi 0, %s174
      %s192 = sphi 0, %s192
      %s194 = sphi 0, %s192
      %s195 = sphi 0, %s194
      %s209 = sphi 0, %s195
      %s213 = sphi 0, %s213
      %s215 = sphi 0, %s213
      %s216 = sphi 0, %s215
      %s230 = sphi 0, %s216
      %s234 = sphi 0, %s234
      %s236 = sphi 0, %s234
      %s237 = sphi 0, %s236
      %s251 = sphi 0, %s237
      %s255 = sphi 0, %s255
      %s257 = sphi 0, %s255
      %s258 = sphi 0, %s257
      %s272 = sphi 0, %s258
      %s278 = sphi 0, %s280
      %s281 = sphi 0, %s278
      %s282 = sphi 0, %s281
      %s298 = sphi 0, %s282
      %s304 = sphi 0, %s306
      %s307 = sphi 0, %s304
      %s308 = sphi 0, %s307
      %s324 = sphi 0, %s308
    $region4: #{decoder_forward.9} parent=1 // loop_header_branch
      %25 = sbr.rel (%p23) target = $region8
    $region5: #{decoder_forward.9} parent=1 // loop_body
      %s27 = ssub.s32 %s22, 1
      %s28 = ssub.s32 %s22, 2
      %s29 = sadd.s32 %s22, 1
      %s30 = ssub.s32 %s22, %s29
      %p31 = scmp.eq.s32.totalorder %s30, 0
      %s33 = sadd.s32 %s32, 1
      %s34 = scalar_select %p31, %s32, %s33
      %p37 = pneg %p31
      %p38 = scmp.eq.s32.totalorder %s22, 1
      %p39 = por %p37, %p38
      %p40 = scmp.ne.s32.totalorder %s32, %s35
      %p41 = scmp.eq.s32.totalorder %s22, 0
      %p42 = por %p40, %p41
      %p43 = scmp.ne.s32.totalorder %s32, %s35
      %p44 = scmp.eq.s32.totalorder %s27, 1
      %p45 = por %p43, %p44
      %p46 = scmp.ne.s32.totalorder %s35, %s36
      %p47 = scmp.eq.s32.totalorder %s27, 0
      %p48 = por %p46, %p47
      %p49 = scmp.ne.s32.totalorder %s35, %s36
      %p50 = scmp.eq.s32.totalorder %s28, 1
      %p51 = por %p49, %p50
      %p53 = scmp.ne.s32.totalorder %s36, %s52
      %p54 = scmp.eq.s32.totalorder %s28, 0
      %p55 = por %p53, %p54
      %s56 = ssub.s32 %s22, %s29
      %p57 = scmp.eq.s32.totalorder %s56, 0
      %s59 = sadd.s32 %s58, 1
      %s60 = scalar_select %p57, %s58, %s59
      %p63 = pneg %p57
      %p64 = scmp.eq.s32.totalorder %s22, 1
      %p65 = por %p63, %p64
      %p66 = scmp.ne.s32.totalorder %s58, %s61
      %p67 = scmp.eq.s32.totalorder %s22, 0
      %p68 = por %p66, %p67
      %p69 = scmp.ne.s32.totalorder %s58, %s61
      %p70 = scmp.eq.s32.totalorder %s27, 1
      %p71 = por %p69, %p70
      %p72 = scmp.ne.s32.totalorder %s61, %s62
      %p73 = scmp.eq.s32.totalorder %s27, 0
      %p74 = por %p72, %p73
      %p75 = scmp.ne.s32.totalorder %s61, %s62
      %p76 = scmp.eq.s32.totalorder %s28, 1
      %p77 = por %p75, %p76
      %p79 = scmp.ne.s32.totalorder %s62, %s78
      %p80 = scmp.eq.s32.totalorder %s28, 0
      %p81 = por %p79, %p80
      %s82 = ssub.s32 %s22, %s29
      %p83 = scmp.eq.s32.totalorder %s82, 0
      %s85 = sadd.s32 %s84, 1
      %s86 = scalar_select %p83, %s84, %s85
      %p89 = pneg %p83
      %p90 = scmp.eq.s32.totalorder %s22, 1
      %p91 = por %p89, %p90
      %p92 = scmp.ne.s32.totalorder %s84, %s87
      %p93 = scmp.eq.s32.totalorder %s22, 0
      %p94 = por %p92, %p93
      %p95 = scmp.ne.s32.totalorder %s84, %s87
      %p96 = scmp.eq.s32.totalorder %s27, 1
      %p97 = por %p95, %p96
      %p98 = scmp.ne.s32.totalorder %s87, %s88
      %p99 = scmp.eq.s32.totalorder %s27, 0
      %p100 = por %p98, %p99
      %p101 = scmp.ne.s32.totalorder %s87, %s88
      %p102 = scmp.eq.s32.totalorder %s28, 1
      %p103 = por %p101, %p102
      %p105 = scmp.ne.s32.totalorder %s88, %s104
      %p106 = scmp.eq.s32.totalorder %s28, 0
      %p107 = por %p105, %p106
      %s109 = sadd.s32 %s108, 1
      %p112 = scmp.eq.s32.totalorder %s22, 1
      %p113 = scmp.ne.s32.totalorder %s108, %s110
      %p114 = scmp.eq.s32.totalorder %s22, 0
      %p115 = por %p113, %p114
      %p116 = scmp.ne.s32.totalorder %s108, %s110
      %p117 = scmp.eq.s32.totalorder %s27, 1
      %p118 = por %p116, %p117
      %p119 = scmp.ne.s32.totalorder %s110, %s111
      %p120 = scmp.eq.s32.totalorder %s27, 0
      %p121 = por %p119, %p120
      %p122 = scmp.ne.s32.totalorder %s110, %s111
      %p123 = scmp.eq.s32.totalorder %s28, 1
      %p124 = por %p122, %p123
      %p126 = scmp.ne.s32.totalorder %s111, %s125
      %p127 = scmp.eq.s32.totalorder %s28, 0
      %p128 = por %p126, %p127
      %s130 = sadd.s32 %s129, 1
      %p133 = scmp.eq.s32.totalorder %s22, 1
      %p134 = scmp.ne.s32.totalorder %s129, %s131
      %p135 = scmp.eq.s32.totalorder %s22, 0
      %p136 = por %p134, %p135
      %p137 = scmp.ne.s32.totalorder %s129, %s131
      %p138 = scmp.eq.s32.totalorder %s27, 1
      %p139 = por %p137, %p138
      %p140 = scmp.ne.s32.totalorder %s131, %s132
      %p141 = scmp.eq.s32.totalorder %s27, 0
      %p142 = por %p140, %p141
      %p143 = scmp.ne.s32.totalorder %s131, %s132
      %p144 = scmp.eq.s32.totalorder %s28, 1
      %p145 = por %p143, %p144
      %p147 = scmp.ne.s32.totalorder %s132, %s146
      %p148 = scmp.eq.s32.totalorder %s28, 0
      %p149 = por %p147, %p148
      %s151 = sadd.s32 %s150, 1
      %p154 = scmp.eq.s32.totalorder %s22, 1
      %p155 = scmp.ne.s32.totalorder %s150, %s152
      %p156 = scmp.eq.s32.totalorder %s22, 0
      %p157 = por %p155, %p156
      %p158 = scmp.ne.s32.totalorder %s150, %s152
      %p159 = scmp.eq.s32.totalorder %s27, 1
      %p160 = por %p158, %p159
      %p161 = scmp.ne.s32.totalorder %s152, %s153
      %p162 = scmp.eq.s32.totalorder %s27, 0
      %p163 = por %p161, %p162
      %p164 = scmp.ne.s32.totalorder %s152, %s153
      %p165 = scmp.eq.s32.totalorder %s28, 1
      %p166 = por %p164, %p165
      %p168 = scmp.ne.s32.totalorder %s153, %s167
      %p169 = scmp.eq.s32.totalorder %s28, 0
      %p170 = por %p168, %p169
      %s172 = sadd.s32 %s171, 1
      %p175 = scmp.eq.s32.totalorder %s22, 1
      %p176 = scmp.ne.s32.totalorder %s171, %s173
      %p177 = scmp.eq.s32.totalorder %s22, 0
      %p178 = por %p176, %p177
      %p179 = scmp.ne.s32.totalorder %s171, %s173
      %p180 = scmp.eq.s32.totalorder %s27, 1
      %p181 = por %p179, %p180
      %p182 = scmp.ne.s32.totalorder %s173, %s174
      %p183 = scmp.eq.s32.totalorder %s27, 0
      %p184 = por %p182, %p183
      %p185 = scmp.ne.s32.totalorder %s173, %s174
      %p186 = scmp.eq.s32.totalorder %s28, 1
      %p187 = por %p185, %p186
      %p189 = scmp.ne.s32.totalorder %s174, %s188
      %p190 = scmp.eq.s32.totalorder %s28, 0
      %p191 = por %p189, %p190
      %s193 = sadd.s32 %s192, 1
      %p196 = scmp.eq.s32.totalorder %s22, 1
      %p197 = scmp.ne.s32.totalorder %s192, %s194
      %p198 = scmp.eq.s32.totalorder %s22, 0
      %p199 = por %p197, %p198
      %p200 = scmp.ne.s32.totalorder %s192, %s194
      %p201 = scmp.eq.s32.totalorder %s27, 1
      %p202 = por %p200, %p201
      %p203 = scmp.ne.s32.totalorder %s194, %s195
      %p204 = scmp.eq.s32.totalorder %s27, 0
      %p205 = por %p203, %p204
      %p206 = scmp.ne.s32.totalorder %s194, %s195
      %p207 = scmp.eq.s32.totalorder %s28, 1
      %p208 = por %p206, %p207
      %p210 = scmp.ne.s32.totalorder %s195, %s209
      %p211 = scmp.eq.s32.totalorder %s28, 0
      %p212 = por %p210, %p211
      %s214 = sadd.s32 %s213, 1
      %p217 = scmp.eq.s32.totalorder %s22, 1
      %p218 = scmp.ne.s32.totalorder %s213, %s215
      %p219 = scmp.eq.s32.totalorder %s22, 0
      %p220 = por %p218, %p219
      %p221 = scmp.ne.s32.totalorder %s213, %s215
      %p222 = scmp.eq.s32.totalorder %s27, 1
      %p223 = por %p221, %p222
      %p224 = scmp.ne.s32.totalorder %s215, %s216
      %p225 = scmp.eq.s32.totalorder %s27, 0
      %p226 = por %p224, %p225
      %p227 = scmp.ne.s32.totalorder %s215, %s216
      %p228 = scmp.eq.s32.totalorder %s28, 1
      %p229 = por %p227, %p228
      %p231 = scmp.ne.s32.totalorder %s216, %s230
      %p232 = scmp.eq.s32.totalorder %s28, 0
      %p233 = por %p231, %p232
      %s235 = sadd.s32 %s234, 1
      %p238 = scmp.eq.s32.totalorder %s22, 1
      %p239 = scmp.ne.s32.totalorder %s234, %s236
      %p240 = scmp.eq.s32.totalorder %s22, 0
      %p241 = por %p239, %p240
      %p242 = scmp.ne.s32.totalorder %s234, %s236
      %p243 = scmp.eq.s32.totalorder %s27, 1
      %p244 = por %p242, %p243
      %p245 = scmp.ne.s32.totalorder %s236, %s237
      %p246 = scmp.eq.s32.totalorder %s27, 0
      %p247 = por %p245, %p246
      %p248 = scmp.ne.s32.totalorder %s236, %s237
      %p249 = scmp.eq.s32.totalorder %s28, 1
      %p250 = por %p248, %p249
      %p252 = scmp.ne.s32.totalorder %s237, %s251
      %p253 = scmp.eq.s32.totalorder %s28, 0
      %p254 = por %p252, %p253
      %s256 = sadd.s32 %s255, 1
      %p259 = scmp.eq.s32.totalorder %s22, 1
      %p260 = scmp.ne.s32.totalorder %s255, %s257
      %p261 = scmp.eq.s32.totalorder %s22, 0
      %p262 = por %p260, %p261
      %p263 = scmp.ne.s32.totalorder %s255, %s257
      %p264 = scmp.eq.s32.totalorder %s27, 1
      %p265 = por %p263, %p264
      %p266 = scmp.ne.s32.totalorder %s257, %s258
      %p267 = scmp.eq.s32.totalorder %s27, 0
      %p268 = por %p266, %p267
      %p269 = scmp.ne.s32.totalorder %s257, %s258
      %p270 = scmp.eq.s32.totalorder %s28, 1
      %p271 = por %p269, %p270
      %p273 = scmp.ne.s32.totalorder %s258, %s272
      %p274 = scmp.eq.s32.totalorder %s28, 0
      %p275 = por %p273, %p274
      %s276 = ssub.s32 %s22, %s29
      %p277 = scmp.eq.s32.totalorder %s276, 0
      %s279 = sadd.s32 %s278, 1
      %s280 = scalar_select %p277, %s278, %s279
      %p283 = pneg %p277
      %p284 = scmp.eq.s32.totalorder %s22, 1
      %p285 = por %p283, %p284
      %p286 = scmp.ne.s32.totalorder %s278, %s281
      %p287 = scmp.eq.s32.totalorder %s22, 0
      %p288 = por %p286, %p287
      %p289 = scmp.ne.s32.totalorder %s278, %s281
      %p290 = scmp.eq.s32.totalorder %s27, 1
      %p291 = por %p289, %p290
      %p292 = scmp.ne.s32.totalorder %s281, %s282
      %p293 = scmp.eq.s32.totalorder %s27, 0
      %p294 = por %p292, %p293
      %p295 = scmp.ne.s32.totalorder %s281, %s282
      %p296 = scmp.eq.s32.totalorder %s28, 1
      %p297 = por %p295, %p296
      %p299 = scmp.ne.s32.totalorder %s282, %s298
      %p300 = scmp.eq.s32.totalorder %s28, 0
      %p301 = por %p299, %p300
      %s302 = ssub.s32 %s22, %s29
      %p303 = scmp.eq.s32.totalorder %s302, 0
      %s305 = sadd.s32 %s304, 1
      %s306 = scalar_select %p303, %s304, %s305
      %p309 = pneg %p303
      %p310 = scmp.eq.s32.totalorder %s22, 1
      %p311 = por %p309, %p310
      %p312 = scmp.ne.s32.totalorder %s304, %s307
      %p313 = scmp.eq.s32.totalorder %s22, 0
      %p314 = por %p312, %p313
      %p315 = scmp.ne.s32.totalorder %s304, %s307
      %p316 = scmp.eq.s32.totalorder %s27, 1
      %p317 = por %p315, %p316
      %p318 = scmp.ne.s32.totalorder %s307, %s308
      %p319 = scmp.eq.s32.totalorder %s27, 0
      %p320 = por %p318, %p319
      %p321 = scmp.ne.s32.totalorder %s307, %s308
      %p322 = scmp.eq.s32.totalorder %s28, 1
      %p323 = por %p321, %p322
      %p325 = scmp.ne.s32.totalorder %s308, %s324
      %p326 = scmp.eq.s32.totalorder %s28, 0
      %p327 = por %p325, %p326
      %p328 = scmp.le.s32.totalorder 1, %s22
      %p329 = scmp.lt.s32.totalorder %s22, 3
      %p330 = pnand %p328, %p329
      %p331 = pneg %p330
      // Predicated region
      $region9: #{decoder_forward.9} parent=5 // pred_check
        _
      $region10: #{decoder_forward.9} parent=5 // pred_check_branch
        %333 = sbr.rel (%p330) target = $region12
      $region11: #{decoder_forward.9} parent=5 // pred_region
        %s334 = ssub.s32 %s22, 1
        // Predicated region
        $region13: #{decoder_forward.9} parent=11 // pred_check
          %p335 = pneg %p121
        $region14: #{decoder_forward.9} parent=11 // pred_check_branch
          %337 = sbr.rel (%p335) target = $region16
        $region15: #{decoder_forward.9} parent=11 // pred_region
          _
        $region16: #{decoder_forward.9} parent=11 // pred_fallthru
          _
        // Predicated region
        $region17: #{decoder_forward.9} parent=11 // pred_check
          %p338 = pneg %p142
        $region18: #{decoder_forward.9} parent=11 // pred_check_branch
          %340 = sbr.rel (%p338) target = $region20
        $region19: #{decoder_forward.9} parent=11 // pred_region
          _
        $region20: #{decoder_forward.9} parent=11 // pred_fallthru
          _
        // Predicated region
        $region21: #{decoder_forward.9} parent=11 // pred_check
          %p341 = pneg %p163
        $region22: #{decoder_forward.9} parent=11 // pred_check_branch
          %343 = sbr.rel (%p341) target = $region24
        $region23: #{decoder_forward.9} parent=11 // pred_region
          _
        $region24: #{decoder_forward.9} parent=11 // pred_fallthru
          _
        // Predicated region
        $region25: #{decoder_forward.9} parent=11 // pred_check
          %p344 = pneg %p184
        $region26: #{decoder_forward.9} parent=11 // pred_check_branch
          %346 = sbr.rel (%p344) target = $region28
        $region27: #{decoder_forward.9} parent=11 // pred_region
          _
        $region28: #{decoder_forward.9} parent=11 // pred_fallthru
          _
        // Predicated region
        $region29: #{decoder_forward.9} parent=11 // pred_check
          %p347 = pneg %p205
        $region30: #{decoder_forward.9} parent=11 // pred_check_branch
          %349 = sbr.rel (%p347) target = $region32
        $region31: #{decoder_forward.9} parent=11 // pred_region
          _
        $region32: #{decoder_forward.9} parent=11 // pred_fallthru
          _
        // Predicated region
        $region33: #{decoder_forward.9} parent=11 // pred_check
          %p350 = pneg %p226
        $region34: #{decoder_forward.9} parent=11 // pred_check_branch
          %352 = sbr.rel (%p350) target = $region36
        $region35: #{decoder_forward.9} parent=11 // pred_region
          _
        $region36: #{decoder_forward.9} parent=11 // pred_fallthru
          _
        // Predicated region
        $region37: #{decoder_forward.9} parent=11 // pred_check
          %p353 = pneg %p247
        $region38: #{decoder_forward.9} parent=11 // pred_check_branch
          %355 = sbr.rel (%p353) target = $region40
        $region39: #{decoder_forward.9} parent=11 // pred_region
          _
        $region40: #{decoder_forward.9} parent=11 // pred_fallthru
          _
        // Predicated region
        $region41: #{decoder_forward.9} parent=11 // pred_check
          %p356 = pneg %p268
        $region42: #{decoder_forward.9} parent=11 // pred_check_branch
          %358 = sbr.rel (%p356) target = $region44
        $region43: #{decoder_forward.9} parent=11 // pred_region
          _
        $region44: #{decoder_forward.9} parent=11 // pred_fallthru
          _
      $region12: #{decoder_forward.9} parent=5 // pred_fallthru
        _
      %p359 = scmp.lt.s32.totalorder %s22, 2
      // Predicated region
      $region45: #{decoder_forward.9} parent=5 // pred_check
        %p360 = pneg %p359
      $region46: #{decoder_forward.9} parent=5 // pred_check_branch
        %362 = sbr.rel (%p360) target = $region48
      $region47: #{decoder_forward.9} parent=5 // pred_region
        // Predicated region
        $region49: #{decoder_forward.9} parent=47 // pred_check
          %p363 = pneg %p42
        $region50: #{decoder_forward.9} parent=47 // pred_check_branch
          %365 = sbr.rel (%p363) target = $region52
        $region51: #{decoder_forward.9} parent=47 // pred_region
          %p366 = scmp.lt.s32.totalorder %s22, 1
          %s367 = scalar_select %p366, %s22, 1
          %s368 = smul.addr %s367, 8
          %s369 = scalar_lea.vmem %s0, %s368
        $region52: #{decoder_forward.9} parent=47 // pred_fallthru
          _
        // Predicated region
        $region53: #{decoder_forward.9} parent=47 // pred_check
          %p370 = pneg %p68
        $region54: #{decoder_forward.9} parent=47 // pred_check_branch
          %372 = sbr.rel (%p370) target = $region56
        $region55: #{decoder_forward.9} parent=47 // pred_region
          %p373 = scmp.lt.s32.totalorder %s22, 1
          %s374 = scalar_select %p373, %s22, 1
          %s375 = smul.addr %s374, 8
          %s376 = scalar_lea.vmem %s1, %s375
        $region56: #{decoder_forward.9} parent=47 // pred_fallthru
          _
        // Predicated region
        $region57: #{decoder_forward.9} parent=47 // pred_check
          %p377 = pneg %p94
        $region58: #{decoder_forward.9} parent=47 // pred_check_branch
          %379 = sbr.rel (%p377) target = $region60
        $region59: #{decoder_forward.9} parent=47 // pred_region
          %p380 = scmp.lt.s32.totalorder %s22, 1
          %s381 = scalar_select %p380, %s22, 1
          %s382 = smul.addr %s381, 8
          %s383 = scalar_lea.vmem %s2, %s382
        $region60: #{decoder_forward.9} parent=47 // pred_fallthru
          _
      $region48: #{decoder_forward.9} parent=5 // pred_fallthru
        _
      %p384 = scmp.le.s32.totalorder 1, %s22
      %p385 = scmp.lt.s32.totalorder %s22, 3
      %p386 = pnand %p384, %p385
      %p387 = pneg %p386
      // Predicated region
      $region61: #{decoder_forward.9} parent=5 // pred_check
        _
      $region62: #{decoder_forward.9} parent=5 // pred_check_branch
        %389 = sbr.rel (%p386) target = $region64
      $region63: #{decoder_forward.9} parent=5 // pred_region
        %s390 = ssub.s32 %s22, 1
        %p391 = scmp.lt.s32.totalorder %s27, 1
        %s392 = scalar_select %p391, %s27, 1
        %s393 = smul.addr %s392, 8
        %s394 = scalar_lea.vmem %s0, %s393
        %p395 = pneg %p48
        %p396 = pneg %p45
        %p397 = scmp.lt.s32.totalorder %s27, 1
        %s398 = scalar_select %p397, %s27, 1
        %s399 = smul.addr %s398, 8
        %s400 = scalar_lea.vmem %s1, %s399
        %p401 = pneg %p74
        %p402 = pneg %p71
        %p403 = scmp.lt.s32.totalorder %s27, 1
        %s404 = scalar_select %p403, %s27, 1
        %s405 = smul.addr %s404, 8
        %s406 = scalar_lea.vmem %s2, %s405
        %p407 = pneg %p100
        %p408 = pneg %p97
        %p409 = pneg %p121
        %p410 = pneg %p118
        %p411 = pneg %p142
        %p412 = pneg %p139
        %p413 = pneg %p163
        %p414 = pneg %p160
        %p415 = pneg %p184
        %p416 = pneg %p181
        %p417 = pneg %p205
        %p418 = pneg %p202
        %p419 = pneg %p226
        %p420 = pneg %p223
        %p421 = pneg %p247
        %p422 = pneg %p244
        %p423 = pneg %p268
        %p424 = pneg %p265
        %p425 = pneg %p294
        %p426 = pneg %p291
        %p427 = scmp.lt.s32.totalorder %s27, 1
        %s428 = scalar_select %p427, %s27, 1
        %s429 = smul.addr %s428, 8
        %s430 = scalar_lea.vmem %s11, %s429
        %p431 = pneg %p320
        %p432 = pneg %p317
        %s433 = sand.u32 %s307, 1
        %s434 = scalar_lea.sflag [#allocation3], %s433
        %s435 = sand.u32 %s307, 1
        %s436 = smul.addr %s435, 32
        %s437 = scalar_lea.vmem [#allocation2], %s436
        %p438 = scmp.lt.s32.totalorder %s27, 1
        %s439 = scalar_select %p438, %s27, 1
        %s440 = smul.addr %s439, 8
        %s441 = scalar_lea.vmem %s0, %s440
        %p442 = scmp.lt.s32.totalorder %s27, 1
        %s443 = scalar_select %p442, %s27, 1
        %s444 = smul.addr %s443, 8
        %s445 = scalar_lea.vmem %s1, %s444
        %p446 = scmp.lt.s32.totalorder %s27, 1
        %s447 = scalar_select %p446, %s27, 1
        %s448 = smul.addr %s447, 8
        %s449 = scalar_lea.vmem %s2, %s448
        %p450 = scmp.lt.s32.totalorder %s27, 1
        %s451 = scalar_select %p450, %s27, 1
        %s452 = smul.addr %s451, 8
        %s453 = scalar_lea.vmem %s11, %s452
        %v454 = vld [vmem:[%s441] sm:$0xff]
        %v455 = vld [vmem:[%s445] sm:$0xff]
        %v456 = vld [vmem:[%s449] sm:$0xff]
        %v457 = vld [vmem:[%s3] sm:$0xff]
        %v458 = vld [vmem:[%s3 + $0x8] sm:$0xff]
        %v459 = vld [vmem:[%s3 + $0x10] sm:$0xff]
        %v460 = vld [vmem:[%s3 + $0x18] sm:$0xff]
        %v461 = vld [vmem:[%s4] sm:$0x1]
        %v463 = vperm.slane %v461, 0
        %vm465 = vcmask 261120
        %v467 = vsel %vm465, %v454, 0
        %469 = vmatpush.msra.mxu0 0.0
        %470 = vmatpush.msra.mxu0 0.0
        %471 = vmatpush.msra.mxu0 0.0
        %472 = vmatpush.msra.mxu0 0.0
        %473 = vmatpush.msra.mxu0 0.0
        %474 = vmatpush.msra.mxu0 0.0
        %475 = vmatpush.msra.mxu0 0.0
        %476 = vmatpush.msra.mxu0 0.0
        %477 = vmatpush.msra.mxu0 0.0
        %478 = vmatpush.msra.mxu0 0.0
        %479 = vmatpush.msra.mxu0 0.0
        %480 = vmatpush.msra.mxu0 0.0
        %481 = vmatpush.msra.mxu0 %v460
        %482 = vmatpush.msra.mxu0 %v459
        %483 = vmatpush.msra.mxu0 %v458
        %484 = vmatpush.msra.mxu0 %v457
        %485 = vmatmul.f32.gmra.mxu0 %v467
        %v486 = vpop.f32.mrf.mxu0
        %v487 = vadd.f32 %v463, %v486
        %488 = vdwg.mxu0
        %v489 = vld [vmem:[%s5] sm:$0xff]
        %v490 = vld [vmem:[%s5 + $0x8] sm:$0xff]
        %v491 = vld [vmem:[%s5 + $0x10] sm:$0xff]
        %v492 = vld [vmem:[%s5 + $0x18] sm:$0xff]
        %v493 = vld [vmem:[%s6] sm:$0x1]
        %v495 = vperm.slane %v493, 0
        %v498 = vsel %vm465, %v455, 0
        %500 = vmatpush.msra.mxu0 0.0
        %501 = vmatpush.msra.mxu0 0.0
        %502 = vmatpush.msra.mxu0 0.0
        %503 = vmatpush.msra.mxu0 0.0
        %504 = vmatpush.msra.mxu0 0.0
        %505 = vmatpush.msra.mxu0 0.0
        %506 = vmatpush.msra.mxu0 0.0
        %507 = vmatpush.msra.mxu0 0.0
        %508 = vmatpush.msra.mxu0 0.0
        %509 = vmatpush.msra.mxu0 0.0
        %510 = vmatpush.msra.mxu0 0.0
        %511 = vmatpush.msra.mxu0 0.0
        %512 = vmatpush.msra.mxu0 %v492
        %513 = vmatpush.msra.mxu0 %v491
        %514 = vmatpush.msra.mxu0 %v490
        %515 = vmatpush.msra.mxu0 %v489
        %516 = vmatmul.f32.gmra.mxu0 %v498
        %v517 = vpop.f32.mrf.mxu0
        %v518 = vadd.f32 %v495, %v517
        %519 = vdwg.mxu0
        %vm520 = vcmask 64512
        %v522 = vsel %vm520, %v487, 0
        %v525 = vsel %vm520, %v518, 0
        %527 = vmatpush.xpose.msra.mxu0 0.0
        %528 = vmatpush.xpose.msra.mxu0 0.0
        %529 = vmatpush.xpose.msra.mxu0 0.0
        %530 = vmatpush.xpose.msra.mxu0 0.0
        %531 = vmatpush.xpose.msra.mxu0 0.0
        %532 = vmatpush.xpose.msra.mxu0 0.0
        %533 = vmatpush.xpose.msra.mxu0 0.0
        %534 = vmatpush.xpose.msra.mxu0 0.0
        %535 = vmatpush.xpose.msra.mxu0 0.0
        %536 = vmatpush.xpose.msra.mxu0 0.0
        %537 = vmatpush.xpose.msra.mxu0 0.0
        %538 = vmatpush.xpose.msra.mxu0 0.0
        %539 = vmatpush.xpose.msra.mxu0 0.0
        %540 = vmatpush.xpose.msra.mxu0 0.0
        %541 = vmatpush.xpose.msra.mxu0 0.0
        %542 = vmatpush.xpose.msra.mxu0 %v525
        %543 = vmatmul.f32.gmra.mxu0 %v522
        %v544 = vpop.f32.mrf.mxu0
        %v545 = vadd.f32 0.0, %v544
        %546 = vdwg.mxu0
        %v547 = vmul.f32 %v545, 0.35355338
        %vm548 = vcmp.eq.f32.partialorder %v456, 0.0
        %v549 = vsel %vm548, -1e+09, %v547
        %v550 = vsel %vm520, %v549, -inf
        %551 = vmax.xlane.f32.xlu0 %v550
        %v552 = vpop.xlane.xlu0 %551
        %v553 = vsub.f32 %v549, %v552
        %v554 = vmul.f32 %v553, 1.442695
        %v555 = vpow.pop %v554
        %v556 = vsel %vm520, %v555, 0.0
        %557 = vadd.xlane.f32.xlu0 %v556
        %v558 = vpop.xlane.xlu0 %557
        %v559 = vrcp.pop %v558
        %v560 = vmul.f32 %v558, %v559
        %v561 = vsub.f32 1.0, %v560
        %v562 = vmul.f32 %v559, %v561
        %v563 = vadd.f32 %v559, %v562
        %vm564 = vweird.f32 %v558
        %vm565 = vweird.f32 %v559
        %vm566 = vmor %vm564, %vm565
        %v567 = vsel %vm566, %v559, %v563
        %v568 = vand.u32 2147483647, %v558
        %vm569 = vcmp.eq.f32.partialorder %v568, 8.507059e+37
        %v570 = vand.u32 %v558, 2147483648
        %v571 = vor.u32 1.1754944e-38, %v570
        %v572 = vsel %vm569, %v571, %v567
        %v573 = vmul.f32 %v555, %v572
        %574 = vst.msk [vmem:[%s437] sm:$0xff] %vm520, %v573
        %575 = vrot.lane.b32.xlu0 %v518, 96
        %v576 = vpop.permute.xlu0 %575
        %v579 = vsel %vm520, %v573, 0
        %581 = vmatpush.msra.mxu0 0.0
        %582 = vmatpush.msra.mxu0 0.0
        %583 = vmatpush.msra.mxu0 0.0
        %584 = vmatpush.msra.mxu0 0.0
        %585 = vmatpush.msra.mxu0 0.0
        %586 = vmatpush.msra.mxu0 0.0
        %587 = vmatpush.msra.mxu0 0.0
        %588 = vmatpush.msra.mxu0 0.0
        %589 = vmatpush.msra.mxu0 0.0
        %590 = vmatpush.msra.mxu0 0.0
        %591 = vmatpush.msra.mxu0 0.0
        %592 = vmatpush.msra.mxu0 0.0
        %593 = vmatpush.msra.mxu0 0.0
        %594 = vmatpush.msra.mxu0 0.0
        %595 = vmatpush.msra.mxu0 0.0
        %596 = vmatpush.msra.mxu0 %v576
        %597 = vmatmul.f32.gmra.mxu0 %v579
        %v598 = vpop.f32.mrf.mxu0
        %v599 = vadd.f32 0.0, %v598
        %600 = vdwg.mxu0
        %601 = vrot.lane.b32.xlu0 %v487, 120
        %v602 = vpop.permute.xlu0 %601
        %603 = vrot.lane.b32.xlu0 %v518, 120
        %v604 = vpop.permute.xlu0 %603
        %v605 = vsel %vm520, %v602, 0
        %v607 = vsel %vm520, %v604, 0
        %609 = vmatpush.xpose.msra.mxu0 0.0
        %610 = vmatpush.xpose.msra.mxu0 0.0
        %611 = vmatpush.xpose.msra.mxu0 0.0
        %612 = vmatpush.xpose.msra.mxu0 0.0
        %613 = vmatpush.xpose.msra.mxu0 0.0
        %614 = vmatpush.xpose.msra.mxu0 0.0
        %615 = vmatpush.xpose.msra.mxu0 0.0
        %616 = vmatpush.xpose.msra.mxu0 0.0
        %617 = vmatpush.xpose.msra.mxu0 0.0
        %618 = vmatpush.xpose.msra.mxu0 0.0
        %619 = vmatpush.xpose.msra.mxu0 0.0
        %620 = vmatpush.xpose.msra.mxu0 0.0
        %621 = vmatpush.xpose.msra.mxu0 0.0
        %622 = vmatpush.xpose.msra.mxu0 0.0
        %623 = vmatpush.xpose.msra.mxu0 0.0
        %624 = vmatpush.xpose.msra.mxu0 %v607
        %625 = vmatmul.f32.gmra.mxu0 %v605
        %v626 = vpop.f32.mrf.mxu0
        %v627 = vadd.f32 0.0, %v626
        %628 = vdwg.mxu0
        %v629 = vmul.f32 %v627, 0.35355338
        %v630 = vsel %vm548, -1e+09, %v629
        %v631 = vsel %vm520, %v630, -inf
        %632 = vmax.xlane.f32.xlu0 %v631
        %v633 = vpop.xlane.xlu0 %632
        %v634 = vsub.f32 %v630, %v633
        %v635 = vmul.f32 %v634, 1.442695
        %v636 = vpow.pop %v635
        %v637 = vsel %vm520, %v636, 0.0
        %638 = vadd.xlane.f32.xlu0 %v637
        %v639 = vpop.xlane.xlu0 %638
        %v640 = vrcp.pop %v639
        %v641 = vmul.f32 %v639, %v640
        %v642 = vsub.f32 1.0, %v641
        %v643 = vmul.f32 %v640, %v642
        %v644 = vadd.f32 %v640, %v643
        %vm645 = vweird.f32 %v639
        %vm646 = vweird.f32 %v640
        %vm647 = vmor %vm645, %vm646
        %v648 = vsel %vm647, %v640, %v644
        %v649 = vand.u32 2147483647, %v639
        %vm650 = vcmp.eq.f32.partialorder %v649, 8.507059e+37
        %v651 = vand.u32 %v639, 2147483648
        %v652 = vor.u32 1.1754944e-38, %v651
        %v653 = vsel %vm650, %v652, %v648
        %v654 = vmul.f32 %v636, %v653
        %s655 = scalar_lea.vmem %s437, 8 [#allocation2]
        %656 = vst.msk [vmem:[%s655] sm:$0xff] %vm520, %v654
        %657 = vrot.lane.b32.xlu0 %v518, 88
        %v658 = vpop.permute.xlu0 %657
        %v661 = vsel %vm520, %v654, 0
        %663 = vmatpush.msra.mxu0 0.0
        %664 = vmatpush.msra.mxu0 0.0
        %665 = vmatpush.msra.mxu0 0.0
        %666 = vmatpush.msra.mxu0 0.0
        %667 = vmatpush.msra.mxu0 0.0
        %668 = vmatpush.msra.mxu0 0.0
        %669 = vmatpush.msra.mxu0 0.0
        %670 = vmatpush.msra.mxu0 0.0
        %671 = vmatpush.msra.mxu0 0.0
        %672 = vmatpush.msra.mxu0 0.0
        %673 = vmatpush.msra.mxu0 0.0
        %674 = vmatpush.msra.mxu0 0.0
        %675 = vmatpush.msra.mxu0 0.0
        %676 = vmatpush.msra.mxu0 0.0
        %677 = vmatpush.msra.mxu0 0.0
        %678 = vmatpush.msra.mxu0 %v658
        %679 = vmatmul.f32.gmra.mxu0 %v661
        %v680 = vpop.f32.mrf.mxu0
        %v681 = vadd.f32 0.0, %v680
        %682 = vdwg.mxu0
        %683 = vrot.lane.b32.xlu0 %v487, 112
        %v684 = vpop.permute.xlu0 %683
        %685 = vrot.lane.b32.xlu0 %v518, 112
        %v686 = vpop.permute.xlu0 %685
        %v687 = vsel %vm520, %v684, 0
        %v689 = vsel %vm520, %v686, 0
        %691 = vmatpush.xpose.msra.mxu0 0.0
        %692 = vmatpush.xpose.msra.mxu0 0.0
        %693 = vmatpush.xpose.msra.mxu0 0.0
        %694 = vmatpush.xpose.msra.mxu0 0.0
        %695 = vmatpush.xpose.msra.mxu0 0.0
        %696 = vmatpush.xpose.msra.mxu0 0.0
        %697 = vmatpush.xpose.msra.mxu0 0.0
        %698 = vmatpush.xpose.msra.mxu0 0.0
        %699 = vmatpush.xpose.msra.mxu0 0.0
        %700 = vmatpush.xpose.msra.mxu0 0.0
        %701 = vmatpush.xpose.msra.mxu0 0.0
        %702 = vmatpush.xpose.msra.mxu0 0.0
        %703 = vmatpush.xpose.msra.mxu0 0.0
        %704 = vmatpush.xpose.msra.mxu0 0.0
        %705 = vmatpush.xpose.msra.mxu0 0.0
        %706 = vmatpush.xpose.msra.mxu0 %v689
        %707 = vmatmul.f32.gmra.mxu0 %v687
        %v708 = vpop.f32.mrf.mxu0
        %v709 = vadd.f32 0.0, %v708
        %710 = vdwg.mxu0
        %v711 = vmul.f32 %v709, 0.35355338
        %v712 = vsel %vm548, -1e+09, %v711
        %v713 = vsel %vm520, %v712, -inf
        %714 = vmax.xlane.f32.xlu0 %v713
        %v715 = vpop.xlane.xlu0 %714
        %v716 = vsub.f32 %v712, %v715
        %v717 = vmul.f32 %v716, 1.442695
        %v718 = vpow.pop %v717
        %v719 = vsel %vm520, %v718, 0.0
        %720 = vadd.xlane.f32.xlu0 %v719
        %v721 = vpop.xlane.xlu0 %720
        %v722 = vrcp.pop %v721
        %v723 = vmul.f32 %v721, %v722
        %v724 = vsub.f32 1.0, %v723
        %v725 = vmul.f32 %v722, %v724
        %v726 = vadd.f32 %v722, %v725
        %vm727 = vweird.f32 %v721
        %vm728 = vweird.f32 %v722
        %vm729 = vmor %vm727, %vm728
        %v730 = vsel %vm729, %v722, %v726
        %v731 = vand.u32 2147483647, %v721
        %vm732 = vcmp.eq.f32.partialorder %v731, 8.507059e+37
        %v733 = vand.u32 %v721, 2147483648
        %v734 = vor.u32 1.1754944e-38, %v733
        %v735 = vsel %vm732, %v734, %v730
        %v736 = vmul.f32 %v718, %v735
        %s737 = scalar_lea.vmem %s437, 16 [#allocation2]
        %738 = vst.msk [vmem:[%s737] sm:$0xff] %vm520, %v736
        %739 = vrot.lane.b32.xlu0 %v518, 80
        %v740 = vpop.permute.xlu0 %739
        %v743 = vsel %vm520, %v736, 0
        %745 = vmatpush.msra.mxu0 0.0
        %746 = vmatpush.msra.mxu0 0.0
        %747 = vmatpush.msra.mxu0 0.0
        %748 = vmatpush.msra.mxu0 0.0
        %749 = vmatpush.msra.mxu0 0.0
        %750 = vmatpush.msra.mxu0 0.0
        %751 = vmatpush.msra.mxu0 0.0
        %752 = vmatpush.msra.mxu0 0.0
        %753 = vmatpush.msra.mxu0 0.0
        %754 = vmatpush.msra.mxu0 0.0
        %755 = vmatpush.msra.mxu0 0.0
        %756 = vmatpush.msra.mxu0 0.0
        %757 = vmatpush.msra.mxu0 0.0
        %758 = vmatpush.msra.mxu0 0.0
        %759 = vmatpush.msra.mxu0 0.0
        %760 = vmatpush.msra.mxu0 %v740
        %761 = vmatmul.f32.gmra.mxu0 %v743
        %v762 = vpop.f32.mrf.mxu0
        %v763 = vadd.f32 0.0, %v762
        %764 = vdwg.mxu0
        %765 = vrot.lane.b32.xlu0 %v487, 104
        %v766 = vpop.permute.xlu0 %765
        %767 = vrot.lane.b32.xlu0 %v518, 104
        %v768 = vpop.permute.xlu0 %767
        %v769 = vsel %vm520, %v766, 0
        %v771 = vsel %vm520, %v768, 0
        %773 = vmatpush.xpose.msra.mxu0 0.0
        %774 = vmatpush.xpose.msra.mxu0 0.0
        %775 = vmatpush.xpose.msra.mxu0 0.0
        %776 = vmatpush.xpose.msra.mxu0 0.0
        %777 = vmatpush.xpose.msra.mxu0 0.0
        %778 = vmatpush.xpose.msra.mxu0 0.0
        %779 = vmatpush.xpose.msra.mxu0 0.0
        %780 = vmatpush.xpose.msra.mxu0 0.0
        %781 = vmatpush.xpose.msra.mxu0 0.0
        %782 = vmatpush.xpose.msra.mxu0 0.0
        %783 = vmatpush.xpose.msra.mxu0 0.0
        %784 = vmatpush.xpose.msra.mxu0 0.0
        %785 = vmatpush.xpose.msra.mxu0 0.0
        %786 = vmatpush.xpose.msra.mxu0 0.0
        %787 = vmatpush.xpose.msra.mxu0 0.0
        %788 = vmatpush.xpose.msra.mxu0 %v771
        %789 = vmatmul.f32.gmra.mxu0 %v769
        %v790 = vpop.f32.mrf.mxu0
        %v791 = vadd.f32 0.0, %v790
        %792 = vdwg.mxu0
        %v793 = vmul.f32 %v791, 0.35355338
        %v794 = vsel %vm548, -1e+09, %v793
        %v795 = vsel %vm520, %v794, -inf
        %796 = vmax.xlane.f32.xlu0 %v795
        %v797 = vpop.xlane.xlu0 %796
        %v798 = vsub.f32 %v794, %v797
        %v799 = vmul.f32 %v798, 1.442695
        %v800 = vpow.pop %v799
        %v801 = vsel %vm520, %v800, 0.0
        %802 = vadd.xlane.f32.xlu0 %v801
        %v803 = vpop.xlane.xlu0 %802
        %v804 = vrcp.pop %v803
        %v805 = vmul.f32 %v803, %v804
        %v806 = vsub.f32 1.0, %v805
        %v807 = vmul.f32 %v804, %v806
        %v808 = vadd.f32 %v804, %v807
        %vm809 = vweird.f32 %v803
        %vm810 = vweird.f32 %v804
        %vm811 = vmor %vm809, %vm810
        %v812 = vsel %vm811, %v804, %v808
        %v813 = vand.u32 2147483647, %v803
        %vm814 = vcmp.eq.f32.partialorder %v813, 8.507059e+37
        %v815 = vand.u32 %v803, 2147483648
        %v816 = vor.u32 1.1754944e-38, %v815
        %v817 = vsel %vm814, %v816, %v812
        %v818 = vmul.f32 %v800, %v817
        %s819 = scalar_lea.vmem %s437, 24 [#allocation2]
        %820 = vst.msk [vmem:[%s819] sm:$0xff] %vm520, %v818
        %821 = vrot.lane.b32.xlu0 %v518, 72
        %v822 = vpop.permute.xlu0 %821
        %v825 = vsel %vm520, %v818, 0
        %827 = vmatpush.msra.mxu0 0.0
        %828 = vmatpush.msra.mxu0 0.0
        %829 = vmatpush.msra.mxu0 0.0
        %830 = vmatpush.msra.mxu0 0.0
        %831 = vmatpush.msra.mxu0 0.0
        %832 = vmatpush.msra.mxu0 0.0
        %833 = vmatpush.msra.mxu0 0.0
        %834 = vmatpush.msra.mxu0 0.0
        %835 = vmatpush.msra.mxu0 0.0
        %836 = vmatpush.msra.mxu0 0.0
        %837 = vmatpush.msra.mxu0 0.0
        %838 = vmatpush.msra.mxu0 0.0
        %839 = vmatpush.msra.mxu0 0.0
        %840 = vmatpush.msra.mxu0 0.0
        %841 = vmatpush.msra.mxu0 0.0
        %842 = vmatpush.msra.mxu0 %v822
        %843 = vmatmul.f32.gmra.mxu0 %v825
        %v844 = vpop.f32.mrf.mxu0
        %v845 = vadd.f32 0.0, %v844
        %846 = vdwg.mxu0
        %848 = vrot.lane.b32.xlu0 %v681, 8
        %v849 = vpop.permute.xlu0 %848
        %852 = vrot.lane.b32.xlu0 %v763, 16
        %v853 = vpop.permute.xlu0 %852
        %856 = vrot.lane.b32.xlu0 %v845, 24
        %v857 = vpop.permute.xlu0 %856
        %v859 = vsel %vm520, %v599, %v849
        %vm860 = vcmask 130048
        %v861 = vsel %vm860, %v859, %v853
        %vm862 = vcmask 195584
        %v863 = vsel %vm862, %v861, %v857
        %v864 = vld [vmem:[%s7] sm:$0xff]
        %v865 = vld [vmem:[%s7 + $0x8] sm:$0xff]
        %v866 = vld [vmem:[%s7 + $0x10] sm:$0xff]
        %v867 = vld [vmem:[%s7 + $0x18] sm:$0xff]
        %v868 = vld [vmem:[%s8] sm:$0x1]
        %v870 = vperm.slane %v868, 0
        %v873 = vsel %vm465, %v863, 0
        %875 = vmatpush.msra.mxu0 0.0
        %876 = vmatpush.msra.mxu0 0.0
        %877 = vmatpush.msra.mxu0 0.0
        %878 = vmatpush.msra.mxu0 0.0
        %879 = vmatpush.msra.mxu0 0.0
        %880 = vmatpush.msra.mxu0 0.0
        %881 = vmatpush.msra.mxu0 0.0
        %882 = vmatpush.msra.mxu0 0.0
        %883 = vmatpush.msra.mxu0 0.0
        %884 = vmatpush.msra.mxu0 0.0
        %885 = vmatpush.msra.mxu0 0.0
        %886 = vmatpush.msra.mxu0 0.0
        %887 = vmatpush.msra.mxu0 %v867
        %888 = vmatpush.msra.mxu0 %v866
        %889 = vmatpush.msra.mxu0 %v865
        %890 = vmatpush.msra.mxu0 %v864
        %891 = vmatmul.f32.gmra.mxu0 %v873
        %v892 = vpop.f32.mrf.mxu0
        %v893 = vadd.f32 %v870, %v892
        %894 = vdwg.mxu0
        %v895 = vadd.f32 %v454, %v893
        %v896 = vsel %vm465, %v895, 0.0
        %897 = vadd.xlane.f32.xlu0 %v896
        %v898 = vpop.xlane.xlu0 %897
        %v899 = vrcp.pop 32.0
        %v900 = vmul.f32 32.0, %v899
        %v901 = vsub.f32 1.0, %v900
        %v902 = vmul.f32 %v899, %v901
        %v903 = vadd.f32 %v899, %v902
        %vm904 = vweird.f32 %v899
        %v905 = vsel %vm904, %v899, %v903
        %v906 = vmul.f32 %v898, %v905
        %v907 = vsub.f32 %v895, %v906
        %v908 = vmul.f32 %v907, %v907
        %v909 = vsel %vm465, %v908, 0.0
        %910 = vadd.xlane.f32.xlu0 %v909
        %v911 = vpop.xlane.xlu0 %910
        %v912 = vmul.f32 %v911, %v905
        %v913 = vadd.f32 %v912, 1e-05
        %v914 = vrsqrt.pop %v913
        %v915 = vmul.f32 %v914, %v913
        %v916 = vmul.f32 %v915, %v914
        %v917 = vmul.f32 0.5, %v916
        %v918 = vsub.f32 1.5, %v917
        %v919 = vmul.f32 %v914, %v918
        %vm920 = vweird.f32 %v913
        %vm921 = vweird.f32 %v914
        %vm922 = vmor %vm920, %vm921
        %v923 = vsel %vm922, %v914, %v919
        %v924 = vmul.f32 %v907, %v923
        %v925 = vld [vmem:[%s9] sm:$0x1]
        %v927 = vperm.slane %v925, 0
        %v929 = vmul.f32 %v924, %v927
        %v930 = vld [vmem:[%s10] sm:$0x1]
        %v932 = vperm.slane %v930, 0
        %v934 = vadd.f32 %v929, %v932
        %935 = vst.msk [vmem:[%s453] sm:$0xff] %vm465, %v934
        %p936 = scmp.lt.s32.totalorder %s27, 1
        %s937 = scalar_select %p936, %s27, 1
        %s938 = smul.addr %s937, 8
        %s939 = scalar_lea.vmem %s11, %s938
        %s940 = sand.u32 %s307, 1
        %s941 = scalar_lea.sflag [#allocation3], %s940
        %s942 = sand.u32 %s307, 1
        %s943 = smul.addr %s942, 32
        %s944 = scalar_lea.vmem [#allocation2], %s943
        // Predicated region
        $region65: #{decoder_forward.9} parent=63 // pred_check
          %p945 = pneg %p291
        $region66: #{decoder_forward.9} parent=63 // pred_check_branch
          %947 = sbr.rel (%p945) target = $region68
        $region67: #{decoder_forward.9} parent=63 // pred_region
          _
        $region68: #{decoder_forward.9} parent=63 // pred_fallthru
          _
        // Predicated region
        $region69: #{decoder_forward.9} parent=63 // pred_check
          %p948 = pneg %p317
        $region70: #{decoder_forward.9} parent=63 // pred_check_branch
          %950 = sbr.rel (%p948) target = $region72
        $region71: #{decoder_forward.9} parent=63 // pred_region
          %952 = vsyncadd %s941, 0
          %s953 = smul.addr %s27, 4
          %s954 = smul.addr %s953, 8
          %s955 = scalar_lea.hbm %s12, %s954
          %s956 = sshll.u32 %s944, 4
          %s957 = int_to_ptr.vmem [resolvable:$true] %s956
          %s958 = sshll.u32 %s955, 4
          %s959 = int_to_ptr.hbm [resolvable:$true] %s958
          %964 = dma.vmem_to_hbm [thread:$0]  %s957, 512, %s959, %s941, 128, 128, 8
        $region72: #{decoder_forward.9} parent=63 // pred_fallthru
          _
      $region64: #{decoder_forward.9} parent=5 // pred_fallthru
        _
      %p965 = scmp.le.s32.totalorder 2, %s22
      // Predicated region
      $region73: #{decoder_forward.9} parent=5 // pred_check
        %p966 = pneg %p965
      $region74: #{decoder_forward.9} parent=5 // pred_check_branch
        %968 = sbr.rel (%p966) target = $region76
      $region75: #{decoder_forward.9} parent=5 // pred_region
        %s969 = ssub.s32 %s22, 2
        // Predicated region
        $region77: #{decoder_forward.9} parent=75 // pred_check
          %p970 = pneg %p297
        $region78: #{decoder_forward.9} parent=75 // pred_check_branch
          %972 = sbr.rel (%p970) target = $region80
        $region79: #{decoder_forward.9} parent=75 // pred_region
          %p973 = scmp.lt.s32.totalorder %s28, 1
          %s974 = scalar_select %p973, %s28, 1
          %s975 = smul.addr %s974, 8
          %s976 = scalar_lea.vmem %s11, %s975
        $region80: #{decoder_forward.9} parent=75 // pred_fallthru
          _
        // Predicated region
        $region81: #{decoder_forward.9} parent=75 // pred_check
          %p977 = pneg %p323
        $region82: #{decoder_forward.9} parent=75 // pred_check_branch
          %979 = sbr.rel (%p977) target = $region84
        $region83: #{decoder_forward.9} parent=75 // pred_region
          %s980 = sand.u32 %s308, 1
          %s981 = scalar_lea.sflag [#allocation3], %s980
          %s982 = sand.u32 %s308, 1
          %s983 = smul.addr %s982, 32
          %s984 = scalar_lea.vmem [#allocation2], %s983
          %986 = dma.done %s981, 512
        $region84: #{decoder_forward.9} parent=75 // pred_fallthru
          _
      $region76: #{decoder_forward.9} parent=5 // pred_fallthru
        _
    $region6: #{decoder_forward.9} parent=1 // loop_footer
      %s26 = sadd.s32 1, %s22
    $region7: #{decoder_forward.9} parent=1 // loop_footer_branch
      %21 = sbr.rel target = $region3
    $region8: #{decoder_forward.9} parent=1 // loop_exit
      _
    %987 = vsyncpa [#allocation3], 1
    %s988 = scalar_lea.sflag [#allocation3], 1
    %989 = vsyncpa %s988, 1

// kernel: decoder_forward.13
$region0: #{decoder_forward.13}
  #allocation0 [shape = 'u32[]', space=smem, size = 0x4, offset = 0x4, fixed_abs, tag = 'smem constant byte address 0x4 - core index']
  #allocation1 [shape = 'u32[72,128]{1,0:T(1,128)}', space=vmem, size = 0x9000, scoped, tag = 'internal scratch']
  %s0 = inlined_call_operand.vmem [shape: f32[2,8,32], index: 0, kind: input, shape index: {}]
  %s1 = inlined_call_operand.vmem [shape: f32[2,8,32], index: 1, kind: input, shape index: {}]
  %s2 = inlined_call_operand.vmem [shape: f32[2,1,8,8], index: 2, kind: input, shape index: {}]
  %s3 = inlined_call_operand.vmem [shape: f32[32,32], index: 3, kind: input, shape index: {}]
  %s4 = inlined_call_operand.vmem [shape: f32[1,32], index: 4, kind: input, shape index: {}]
  %s5 = inlined_call_operand.vmem [shape: f32[32,64], index: 5, kind: input, shape index: {}]
  %s6 = inlined_call_operand.vmem [shape: f32[1,64], index: 6, kind: input, shape index: {}]
  %s7 = inlined_call_operand.vmem [shape: f32[32,32], index: 7, kind: input, shape index: {}]
  %s8 = inlined_call_operand.vmem [shape: f32[1,32], index: 8, kind: input, shape index: {}]
  %s9 = inlined_call_operand.vmem [shape: f32[1,32], index: 9, kind: input, shape index: {}]
  %s10 = inlined_call_operand.hbm [shape: f32[1,32], index: 10, kind: input, shape index: {}]
  %s11 = inlined_call_operand.vmem [shape: f32[2,8,32], index: 11, kind: output, shape index: {0}]
  %s12 = inlined_call_operand.hbm [shape: f32[2,4,8,8], index: 12, kind: output, shape index: {1}]
  %13 = xla_tuple %s11, %s12
  %s14 = sld [smem:[#allocation0]]
  $region89: #{decoder_forward.13} parent=0
    _
  %s16 = ssub.s32 1, %s14
  %s17 = scalar_select 0, %s16, %s14
  $region1: #{decoder_forward.13} parent=0
    #allocation2 [shape = 'u8[512]{0}', space=vmem, size = 0x400, scoped, tag = 'input window, operand 10, single buffered']
    #allocation3 [shape = 's32[2]{0}', space=sflag, size = 0x8, scoped, tag = 'scoped memory for decoder_forward.13']
    #allocation4 [shape = 's32[2]{0}', space=sflag, size = 0x8, scoped, tag = 'scoped memory for decoder_forward.13']
    #allocation5 [shape = 'u8[32768]{0}', space=vmem, size = 0x8000, scoped, tag = 'output window, operand 1']
    %18 = vsyncpa [#allocation3], 0
    %19 = vsyncpa [#allocation4], 0
    %s20 = scalar_lea.sflag [#allocation4], 1
    %21 = vsyncpa %s20, 0
    loop: start=0, step=1, limit=4
    $region2: #{decoder_forward.13} parent=1 // loop_pre_header
      _
    $region3: #{decoder_forward.13} parent=1 // loop_header
      %s23 = sphi 0, %s27
      %p24 = scmp.ge.s32.totalorder %s23, 4
      %s33 = sphi 0, %s35
      %s36 = sphi 0, %s33
      %s37 = sphi 0, %s36
      %s53 = sphi 0, %s37
      %s59 = sphi 0, %s61
      %s62 = sphi 0, %s59
      %s63 = sphi 0, %s62
      %s79 = sphi 0, %s63
      %s85 = sphi 0, %s87
      %s88 = sphi 0, %s85
      %s89 = sphi 0, %s88
      %s105 = sphi 0, %s89
      %s109 = sphi 0, %s109
      %s111 = sphi 0, %s109
      %s112 = sphi 0, %s111
      %s126 = sphi 0, %s112
      %s130 = sphi 0, %s130
      %s132 = sphi 0, %s130
      %s133 = sphi 0, %s132
      %s147 = sphi 0, %s133
      %s151 = sphi 0, %s151
      %s153 = sphi 0, %s151
      %s154 = sphi 0, %s153
      %s168 = sphi 0, %s154
      %s172 = sphi 0, %s172
      %s174 = sphi 0, %s172
      %s175 = sphi 0, %s174
      %s189 = sphi 0, %s175
      %s193 = sphi 0, %s193
      %s195 = sphi 0, %s193
      %s196 = sphi 0, %s195
      %s210 = sphi 0, %s196
      %s214 = sphi 0, %s214
      %s216 = sphi 0, %s214
      %s217 = sphi 0, %s216
      %s231 = sphi 0, %s217
      %s235 = sphi 0, %s235
      %s237 = sphi 0, %s235
      %s238 = sphi 0, %s237
      %s252 = sphi 0, %s238
      %s256 = sphi 0, %s256
      %s258 = sphi 0, %s256
      %s259 = sphi 0, %s258
      %s273 = sphi 0, %s259
      %s279 = sphi 0, %s281
      %s282 = sphi 0, %s279
      %s283 = sphi 0, %s282
      %s299 = sphi 0, %s283
      %s305 = sphi 0, %s307
      %s308 = sphi 0, %s305
      %s309 = sphi 0, %s308
      %s325 = sphi 0, %s309
    $region4: #{decoder_forward.13} parent=1 // loop_header_branch
      %26 = sbr.rel (%p24) target = $region8
    $region5: #{decoder_forward.13} parent=1 // loop_body
      %s28 = ssub.s32 %s23, 1
      %s29 = ssub.s32 %s23, 2
      %s30 = sadd.s32 %s23, 1
      %s31 = ssub.s32 %s23, %s30
      %p32 = scmp.eq.s32.totalorder %s31, 0
      %s34 = sadd.s32 %s33, 1
      %s35 = scalar_select %p32, %s33, %s34
      %p38 = pneg %p32
      %p39 = scmp.eq.s32.totalorder %s23, 1
      %p40 = por %p38, %p39
      %p41 = scmp.ne.s32.totalorder %s33, %s36
      %p42 = scmp.eq.s32.totalorder %s23, 0
      %p43 = por %p41, %p42
      %p44 = scmp.ne.s32.totalorder %s33, %s36
      %p45 = scmp.eq.s32.totalorder %s28, 1
      %p46 = por %p44, %p45
      %p47 = scmp.ne.s32.totalorder %s36, %s37
      %p48 = scmp.eq.s32.totalorder %s28, 0
      %p49 = por %p47, %p48
      %p50 = scmp.ne.s32.totalorder %s36, %s37
      %p51 = scmp.eq.s32.totalorder %s29, 1
      %p52 = por %p50, %p51
      %p54 = scmp.ne.s32.totalorder %s37, %s53
      %p55 = scmp.eq.s32.totalorder %s29, 0
      %p56 = por %p54, %p55
      %s57 = ssub.s32 %s23, %s30
      %p58 = scmp.eq.s32.totalorder %s57, 0
      %s60 = sadd.s32 %s59, 1
      %s61 = scalar_select %p58, %s59, %s60
      %p64 = pneg %p58
      %p65 = scmp.eq.s32.totalorder %s23, 1
      %p66 = por %p64, %p65
      %p67 = scmp.ne.s32.totalorder %s59, %s62
      %p68 = scmp.eq.s32.totalorder %s23, 0
      %p69 = por %p67, %p68
      %p70 = scmp.ne.s32.totalorder %s59, %s62
      %p71 = scmp.eq.s32.totalorder %s28, 1
      %p72 = por %p70, %p71
      %p73 = scmp.ne.s32.totalorder %s62, %s63
      %p74 = scmp.eq.s32.totalorder %s28, 0
      %p75 = por %p73, %p74
      %p76 = scmp.ne.s32.totalorder %s62, %s63
      %p77 = scmp.eq.s32.totalorder %s29, 1
      %p78 = por %p76, %p77
      %p80 = scmp.ne.s32.totalorder %s63, %s79
      %p81 = scmp.eq.s32.totalorder %s29, 0
      %p82 = por %p80, %p81
      %s83 = ssub.s32 %s23, %s30
      %p84 = scmp.eq.s32.totalorder %s83, 0
      %s86 = sadd.s32 %s85, 1
      %s87 = scalar_select %p84, %s85, %s86
      %p90 = pneg %p84
      %p91 = scmp.eq.s32.totalorder %s23, 1
      %p92 = por %p90, %p91
      %p93 = scmp.ne.s32.totalorder %s85, %s88
      %p94 = scmp.eq.s32.totalorder %s23, 0
      %p95 = por %p93, %p94
      %p96 = scmp.ne.s32.totalorder %s85, %s88
      %p97 = scmp.eq.s32.totalorder %s28, 1
      %p98 = por %p96, %p97
      %p99 = scmp.ne.s32.totalorder %s88, %s89
      %p100 = scmp.eq.s32.totalorder %s28, 0
      %p101 = por %p99, %p100
      %p102 = scmp.ne.s32.totalorder %s88, %s89
      %p103 = scmp.eq.s32.totalorder %s29, 1
      %p104 = por %p102, %p103
      %p106 = scmp.ne.s32.totalorder %s89, %s105
      %p107 = scmp.eq.s32.totalorder %s29, 0
      %p108 = por %p106, %p107
      %s110 = sadd.s32 %s109, 1
      %p113 = scmp.eq.s32.totalorder %s23, 1
      %p114 = scmp.ne.s32.totalorder %s109, %s111
      %p115 = scmp.eq.s32.totalorder %s23, 0
      %p116 = por %p114, %p115
      %p117 = scmp.ne.s32.totalorder %s109, %s111
      %p118 = scmp.eq.s32.totalorder %s28, 1
      %p119 = por %p117, %p118
      %p120 = scmp.ne.s32.totalorder %s111, %s112
      %p121 = scmp.eq.s32.totalorder %s28, 0
      %p122 = por %p120, %p121
      %p123 = scmp.ne.s32.totalorder %s111, %s112
      %p124 = scmp.eq.s32.totalorder %s29, 1
      %p125 = por %p123, %p124
      %p127 = scmp.ne.s32.totalorder %s112, %s126
      %p128 = scmp.eq.s32.totalorder %s29, 0
      %p129 = por %p127, %p128
      %s131 = sadd.s32 %s130, 1
      %p134 = scmp.eq.s32.totalorder %s23, 1
      %p135 = scmp.ne.s32.totalorder %s130, %s132
      %p136 = scmp.eq.s32.totalorder %s23, 0
      %p137 = por %p135, %p136
      %p138 = scmp.ne.s32.totalorder %s130, %s132
      %p139 = scmp.eq.s32.totalorder %s28, 1
      %p140 = por %p138, %p139
      %p141 = scmp.ne.s32.totalorder %s132, %s133
      %p142 = scmp.eq.s32.totalorder %s28, 0
      %p143 = por %p141, %p142
      %p144 = scmp.ne.s32.totalorder %s132, %s133
      %p145 = scmp.eq.s32.totalorder %s29, 1
      %p146 = por %p144, %p145
      %p148 = scmp.ne.s32.totalorder %s133, %s147
      %p149 = scmp.eq.s32.totalorder %s29, 0
      %p150 = por %p148, %p149
      %s152 = sadd.s32 %s151, 1
      %p155 = scmp.eq.s32.totalorder %s23, 1
      %p156 = scmp.ne.s32.totalorder %s151, %s153
      %p157 = scmp.eq.s32.totalorder %s23, 0
      %p158 = por %p156, %p157
      %p159 = scmp.ne.s32.totalorder %s151, %s153
      %p160 = scmp.eq.s32.totalorder %s28, 1
      %p161 = por %p159, %p160
      %p162 = scmp.ne.s32.totalorder %s153, %s154
      %p163 = scmp.eq.s32.totalorder %s28, 0
      %p164 = por %p162, %p163
      %p165 = scmp.ne.s32.totalorder %s153, %s154
      %p166 = scmp.eq.s32.totalorder %s29, 1
      %p167 = por %p165, %p166
      %p169 = scmp.ne.s32.totalorder %s154, %s168
      %p170 = scmp.eq.s32.totalorder %s29, 0
      %p171 = por %p169, %p170
      %s173 = sadd.s32 %s172, 1
      %p176 = scmp.eq.s32.totalorder %s23, 1
      %p177 = scmp.ne.s32.totalorder %s172, %s174
      %p178 = scmp.eq.s32.totalorder %s23, 0
      %p179 = por %p177, %p178
      %p180 = scmp.ne.s32.totalorder %s172, %s174
      %p181 = scmp.eq.s32.totalorder %s28, 1
      %p182 = por %p180, %p181
      %p183 = scmp.ne.s32.totalorder %s174, %s175
      %p184 = scmp.eq.s32.totalorder %s28, 0
      %p185 = por %p183, %p184
      %p186 = scmp.ne.s32.totalorder %s174, %s175
      %p187 = scmp.eq.s32.totalorder %s29, 1
      %p188 = por %p186, %p187
      %p190 = scmp.ne.s32.totalorder %s175, %s189
      %p191 = scmp.eq.s32.totalorder %s29, 0
      %p192 = por %p190, %p191
      %s194 = sadd.s32 %s193, 1
      %p197 = scmp.eq.s32.totalorder %s23, 1
      %p198 = scmp.ne.s32.totalorder %s193, %s195
      %p199 = scmp.eq.s32.totalorder %s23, 0
      %p200 = por %p198, %p199
      %p201 = scmp.ne.s32.totalorder %s193, %s195
      %p202 = scmp.eq.s32.totalorder %s28, 1
      %p203 = por %p201, %p202
      %p204 = scmp.ne.s32.totalorder %s195, %s196
      %p205 = scmp.eq.s32.totalorder %s28, 0
      %p206 = por %p204, %p205
      %p207 = scmp.ne.s32.totalorder %s195, %s196
      %p208 = scmp.eq.s32.totalorder %s29, 1
      %p209 = por %p207, %p208
      %p211 = scmp.ne.s32.totalorder %s196, %s210
      %p212 = scmp.eq.s32.totalorder %s29, 0
      %p213 = por %p211, %p212
      %s215 = sadd.s32 %s214, 1
      %p218 = scmp.eq.s32.totalorder %s23, 1
      %p219 = scmp.ne.s32.totalorder %s214, %s216
      %p220 = scmp.eq.s32.totalorder %s23, 0
      %p221 = por %p219, %p220
      %p222 = scmp.ne.s32.totalorder %s214, %s216
      %p223 = scmp.eq.s32.totalorder %s28, 1
      %p224 = por %p222, %p223
      %p225 = scmp.ne.s32.totalorder %s216, %s217
      %p226 = scmp.eq.s32.totalorder %s28, 0
      %p227 = por %p225, %p226
      %p228 = scmp.ne.s32.totalorder %s216, %s217
      %p229 = scmp.eq.s32.totalorder %s29, 1
      %p230 = por %p228, %p229
      %p232 = scmp.ne.s32.totalorder %s217, %s231
      %p233 = scmp.eq.s32.totalorder %s29, 0
      %p234 = por %p232, %p233
      %s236 = sadd.s32 %s235, 1
      %p239 = scmp.eq.s32.totalorder %s23, 1
      %p240 = scmp.ne.s32.totalorder %s235, %s237
      %p241 = scmp.eq.s32.totalorder %s23, 0
      %p242 = por %p240, %p241
      %p243 = scmp.ne.s32.totalorder %s235, %s237
      %p244 = scmp.eq.s32.totalorder %s28, 1
      %p245 = por %p243, %p244
      %p246 = scmp.ne.s32.totalorder %s237, %s238
      %p247 = scmp.eq.s32.totalorder %s28, 0
      %p248 = por %p246, %p247
      %p249 = scmp.ne.s32.totalorder %s237, %s238
      %p250 = scmp.eq.s32.totalorder %s29, 1
      %p251 = por %p249, %p250
      %p253 = scmp.ne.s32.totalorder %s238, %s252
      %p254 = scmp.eq.s32.totalorder %s29, 0
      %p255 = por %p253, %p254
      %s257 = sadd.s32 %s256, 1
      %p260 = scmp.eq.s32.totalorder %s23, 1
      %p261 = scmp.ne.s32.totalorder %s256, %s258
      %p262 = scmp.eq.s32.totalorder %s23, 0
      %p263 = por %p261, %p262
      %p264 = scmp.ne.s32.totalorder %s256, %s258
      %p265 = scmp.eq.s32.totalorder %s28, 1
      %p266 = por %p264, %p265
      %p267 = scmp.ne.s32.totalorder %s258, %s259
      %p268 = scmp.eq.s32.totalorder %s28, 0
      %p269 = por %p267, %p268
      %p270 = scmp.ne.s32.totalorder %s258, %s259
      %p271 = scmp.eq.s32.totalorder %s29, 1
      %p272 = por %p270, %p271
      %p274 = scmp.ne.s32.totalorder %s259, %s273
      %p275 = scmp.eq.s32.totalorder %s29, 0
      %p276 = por %p274, %p275
      %s277 = ssub.s32 %s23, %s30
      %p278 = scmp.eq.s32.totalorder %s277, 0
      %s280 = sadd.s32 %s279, 1
      %s281 = scalar_select %p278, %s279, %s280
      %p284 = pneg %p278
      %p285 = scmp.eq.s32.totalorder %s23, 1
      %p286 = por %p284, %p285
      %p287 = scmp.ne.s32.totalorder %s279, %s282
      %p288 = scmp.eq.s32.totalorder %s23, 0
      %p289 = por %p287, %p288
      %p290 = scmp.ne.s32.totalorder %s279, %s282
      %p291 = scmp.eq.s32.totalorder %s28, 1
      %p292 = por %p290, %p291
      %p293 = scmp.ne.s32.totalorder %s282, %s283
      %p294 = scmp.eq.s32.totalorder %s28, 0
      %p295 = por %p293, %p294
      %p296 = scmp.ne.s32.totalorder %s282, %s283
      %p297 = scmp.eq.s32.totalorder %s29, 1
      %p298 = por %p296, %p297
      %p300 = scmp.ne.s32.totalorder %s283, %s299
      %p301 = scmp.eq.s32.totalorder %s29, 0
      %p302 = por %p300, %p301
      %s303 = ssub.s32 %s23, %s30
      %p304 = scmp.eq.s32.totalorder %s303, 0
      %s306 = sadd.s32 %s305, 1
      %s307 = scalar_select %p304, %s305, %s306
      %p310 = pneg %p304
      %p311 = scmp.eq.s32.totalorder %s23, 1
      %p312 = por %p310, %p311
      %p313 = scmp.ne.s32.totalorder %s305, %s308
      %p314 = scmp.eq.s32.totalorder %s23, 0
      %p315 = por %p313, %p314
      %p316 = scmp.ne.s32.totalorder %s305, %s308
      %p317 = scmp.eq.s32.totalorder %s28, 1
      %p318 = por %p316, %p317
      %p319 = scmp.ne.s32.totalorder %s308, %s309
      %p320 = scmp.eq.s32.totalorder %s28, 0
      %p321 = por %p319, %p320
      %p322 = scmp.ne.s32.totalorder %s308, %s309
      %p323 = scmp.eq.s32.totalorder %s29, 1
      %p324 = por %p322, %p323
      %p326 = scmp.ne.s32.totalorder %s309, %s325
      %p327 = scmp.eq.s32.totalorder %s29, 0
      %p328 = por %p326, %p327
      %p329 = scmp.le.s32.totalorder 1, %s23
      %p330 = scmp.lt.s32.totalorder %s23, 3
      %p331 = pnand %p329, %p330
      %p332 = pneg %p331
      // Predicated region
      $region9: #{decoder_forward.13} parent=5 // pred_check
        _
      $region10: #{decoder_forward.13} parent=5 // pred_check_branch
        %334 = sbr.rel (%p331) target = $region12
      $region11: #{decoder_forward.13} parent=5 // pred_region
        %s335 = ssub.s32 %s23, 1
        // Predicated region
        $region13: #{decoder_forward.13} parent=11 // pred_check
          %p336 = pneg %p122
        $region14: #{decoder_forward.13} parent=11 // pred_check_branch
          %338 = sbr.rel (%p336) target = $region16
        $region15: #{decoder_forward.13} parent=11 // pred_region
          _
        $region16: #{decoder_forward.13} parent=11 // pred_fallthru
          _
        // Predicated region
        $region17: #{decoder_forward.13} parent=11 // pred_check
          %p339 = pneg %p143
        $region18: #{decoder_forward.13} parent=11 // pred_check_branch
          %341 = sbr.rel (%p339) target = $region20
        $region19: #{decoder_forward.13} parent=11 // pred_region
          _
        $region20: #{decoder_forward.13} parent=11 // pred_fallthru
          _
        // Predicated region
        $region21: #{decoder_forward.13} parent=11 // pred_check
          %p342 = pneg %p164
        $region22: #{decoder_forward.13} parent=11 // pred_check_branch
          %344 = sbr.rel (%p342) target = $region24
        $region23: #{decoder_forward.13} parent=11 // pred_region
          _
        $region24: #{decoder_forward.13} parent=11 // pred_fallthru
          _
        // Predicated region
        $region25: #{decoder_forward.13} parent=11 // pred_check
          %p345 = pneg %p185
        $region26: #{decoder_forward.13} parent=11 // pred_check_branch
          %347 = sbr.rel (%p345) target = $region28
        $region27: #{decoder_forward.13} parent=11 // pred_region
          _
        $region28: #{decoder_forward.13} parent=11 // pred_fallthru
          _
        // Predicated region
        $region29: #{decoder_forward.13} parent=11 // pred_check
          %p348 = pneg %p206
        $region30: #{decoder_forward.13} parent=11 // pred_check_branch
          %350 = sbr.rel (%p348) target = $region32
        $region31: #{decoder_forward.13} parent=11 // pred_region
          _
        $region32: #{decoder_forward.13} parent=11 // pred_fallthru
          _
        // Predicated region
        $region33: #{decoder_forward.13} parent=11 // pred_check
          %p351 = pneg %p227
        $region34: #{decoder_forward.13} parent=11 // pred_check_branch
          %353 = sbr.rel (%p351) target = $region36
        $region35: #{decoder_forward.13} parent=11 // pred_region
          _
        $region36: #{decoder_forward.13} parent=11 // pred_fallthru
          _
        // Predicated region
        $region37: #{decoder_forward.13} parent=11 // pred_check
          %p354 = pneg %p248
        $region38: #{decoder_forward.13} parent=11 // pred_check_branch
          %356 = sbr.rel (%p354) target = $region40
        $region39: #{decoder_forward.13} parent=11 // pred_region
          _
        $region40: #{decoder_forward.13} parent=11 // pred_fallthru
          _
        // Predicated region
        $region41: #{decoder_forward.13} parent=11 // pred_check
          %p357 = pneg %p269
        $region42: #{decoder_forward.13} parent=11 // pred_check_branch
          %359 = sbr.rel (%p357) target = $region44
        $region43: #{decoder_forward.13} parent=11 // pred_region
          %361 = vsyncadd [#allocation3], 0
          %s363 = sshll.u32 %s10, 4
          %s364 = int_to_ptr.hbm [resolvable:$true] %s363
          %s365 = sshll.u32 [#allocation2], 4
          %s366 = int_to_ptr.vmem [resolvable:$true] %s365
          %368 = dma.hbm_to_vmem [thread:$0]  %s364, 16, %s366, [#allocation3]
        $region44: #{decoder_forward.13} parent=11 // pred_fallthru
          _
      $region12: #{decoder_forward.13} parent=5 // pred_fallthru
        _
      %p369 = scmp.lt.s32.totalorder %s23, 2
      // Predicated region
      $region45: #{decoder_forward.13} parent=5 // pred_check
        %p370 = pneg %p369
      $region46: #{decoder_forward.13} parent=5 // pred_check_branch
        %372 = sbr.rel (%p370) target = $region48
      $region47: #{decoder_forward.13} parent=5 // pred_region
        // Predicated region
        $region49: #{decoder_forward.13} parent=47 // pred_check
          %p373 = pneg %p43
        $region50: #{decoder_forward.13} parent=47 // pred_check_branch
          %375 = sbr.rel (%p373) target = $region52
        $region51: #{decoder_forward.13} parent=47 // pred_region
          %p376 = scmp.lt.s32.totalorder %s23, 1
          %s377 = scalar_select %p376, %s23, 1
          %s378 = smul.addr %s377, 8
          %s379 = scalar_lea.vmem %s0, %s378
        $region52: #{decoder_forward.13} parent=47 // pred_fallthru
          _
        // Predicated region
        $region53: #{decoder_forward.13} parent=47 // pred_check
          %p380 = pneg %p69
        $region54: #{decoder_forward.13} parent=47 // pred_check_branch
          %382 = sbr.rel (%p380) target = $region56
        $region55: #{decoder_forward.13} parent=47 // pred_region
          %p383 = scmp.lt.s32.totalorder %s23, 1
          %s384 = scalar_select %p383, %s23, 1
          %s385 = smul.addr %s384, 8
          %s386 = scalar_lea.vmem %s1, %s385
        $region56: #{decoder_forward.13} parent=47 // pred_fallthru
          _
        // Predicated region
        $region57: #{decoder_forward.13} parent=47 // pred_check
          %p387 = pneg %p95
        $region58: #{decoder_forward.13} parent=47 // pred_check_branch
          %389 = sbr.rel (%p387) target = $region60
        $region59: #{decoder_forward.13} parent=47 // pred_region
          %p390 = scmp.lt.s32.totalorder %s23, 1
          %s391 = scalar_select %p390, %s23, 1
          %s392 = smul.addr %s391, 8
          %s393 = scalar_lea.vmem %s2, %s392
        $region60: #{decoder_forward.13} parent=47 // pred_fallthru
          _
      $region48: #{decoder_forward.13} parent=5 // pred_fallthru
        _
      %p394 = scmp.le.s32.totalorder 1, %s23
      %p395 = scmp.lt.s32.totalorder %s23, 3
      %p396 = pnand %p394, %p395
      %p397 = pneg %p396
      // Predicated region
      $region61: #{decoder_forward.13} parent=5 // pred_check
        _
      $region62: #{decoder_forward.13} parent=5 // pred_check_branch
        %399 = sbr.rel (%p396) target = $region64
      $region63: #{decoder_forward.13} parent=5 // pred_region
        %s400 = ssub.s32 %s23, 1
        // Predicated region
        $region65: #{decoder_forward.13} parent=63 // pred_check
          %p401 = pneg %p269
        $region66: #{decoder_forward.13} parent=63 // pred_check_branch
          %403 = sbr.rel (%p401) target = $region68
        $region67: #{decoder_forward.13} parent=63 // pred_region
          %405 = dma.done [#allocation3], 16
        $region68: #{decoder_forward.13} parent=63 // pred_fallthru
          _
        %p406 = scmp.lt.s32.totalorder %s28, 1
        %s407 = scalar_select %p406, %s28, 1
        %s408 = smul.addr %s407, 8
        %s409 = scalar_lea.vmem %s0, %s408
        %p410 = pneg %p49
        %p411 = pneg %p46
        %p412 = scmp.lt.s32.totalorder %s28, 1
        %s413 = scalar_select %p412, %s28, 1
        %s414 = smul.addr %s413, 8
        %s415 = scalar_lea.vmem %s1, %s414
        %p416 = pneg %p75
        %p417 = pneg %p72
        %p418 = scmp.lt.s32.totalorder %s28, 1
        %s419 = scalar_select %p418, %s28, 1
        %s420 = smul.addr %s419, 8
        %s421 = scalar_lea.vmem %s2, %s420
        %p422 = pneg %p101
        %p423 = pneg %p98
        %p424 = pneg %p122
        %p425 = pneg %p119
        %p426 = pneg %p143
        %p427 = pneg %p140
        %p428 = pneg %p164
        %p429 = pneg %p161
        %p430 = pneg %p185
        %p431 = pneg %p182
        %p432 = pneg %p206
        %p433 = pneg %p203
        %p434 = pneg %p227
        %p435 = pneg %p224
        %p436 = pneg %p248
        %p437 = pneg %p245
        %p438 = pneg %p269
        %p439 = pneg %p266
        %p440 = pneg %p295
        %p441 = pneg %p292
        %p442 = scmp.lt.s32.totalorder %s28, 1
        %s443 = scalar_select %p442, %s28, 1
        %s444 = smul.addr %s443, 8
        %s445 = scalar_lea.vmem %s11, %s444
        %p446 = pneg %p321
        %p447 = pneg %p318
        %s448 = sand.u32 %s308, 1
        %s449 = scalar_lea.sflag [#allocation4], %s448
        %s450 = sand.u32 %s308, 1
        %s451 = smul.addr %s450, 32
        %s452 = scalar_lea.vmem [#allocation5], %s451
        %p453 = scmp.lt.s32.totalorder %s28, 1
        %s454 = scalar_select %p453, %s28, 1
        %s455 = smul.addr %s454, 8
        %s456 = scalar_lea.vmem %s0, %s455
        %p457 = scmp.lt.s32.totalorder %s28, 1
        %s458 = scalar_select %p457, %s28, 1
        %s459 = smul.addr %s458, 8
        %s460 = scalar_lea.vmem %s1, %s459
        %p461 = scmp.lt.s32.totalorder %s28, 1
        %s462 = scalar_select %p461, %s28, 1
        %s463 = smul.addr %s462, 8
        %s464 = scalar_lea.vmem %s2, %s463
        %p465 = scmp.lt.s32.totalorder %s28, 1
        %s466 = scalar_select %p465, %s28, 1
        %s467 = smul.addr %s466, 8
        %s468 = scalar_lea.vmem %s11, %s467
        %v469 = vld [vmem:[%s456] sm:$0xff]
        %v470 = vld [vmem:[%s460] sm:$0xff]
        %v471 = vld [vmem:[%s464] sm:$0xff]
        %v472 = vld [vmem:[%s3] sm:$0xff]
        %v473 = vld [vmem:[%s3 + $0x8] sm:$0xff]
        %v474 = vld [vmem:[%s3 + $0x10] sm:$0xff]
        %v475 = vld [vmem:[%s3 + $0x18] sm:$0xff]
        %v476 = vld [vmem:[%s4] sm:$0x1]
        %v478 = vperm.slane %v476, 0
        %vm480 = vcmask 261120
        %v482 = vsel %vm480, %v469, 0
        %484 = vmatpush.msra.mxu0 0.0
        %485 = vmatpush.msra.mxu0 0.0
        %486 = vmatpush.msra.mxu0 0.0
        %487 = vmatpush.msra.mxu0 0.0
        %488 = vmatpush.msra.mxu0 0.0
        %489 = vmatpush.msra.mxu0 0.0
        %490 = vmatpush.msra.mxu0 0.0
        %491 = vmatpush.msra.mxu0 0.0
        %492 = vmatpush.msra.mxu0 0.0
        %493 = vmatpush.msra.mxu0 0.0
        %494 = vmatpush.msra.mxu0 0.0
        %495 = vmatpush.msra.mxu0 0.0
        %496 = vmatpush.msra.mxu0 %v475
        %497 = vmatpush.msra.mxu0 %v474
        %498 = vmatpush.msra.mxu0 %v473
        %499 = vmatpush.msra.mxu0 %v472
        %500 = vmatmul.f32.gmra.mxu0 %v482
        %v501 = vpop.f32.mrf.mxu0
        %v502 = vadd.f32 %v478, %v501
        %503 = vdwg.mxu0
        %v504 = vld [vmem:[%s5] sm:$0xff]
        %v505 = vld [vmem:[%s5 + $0x8] sm:$0xff]
        %v506 = vld [vmem:[%s5 + $0x10] sm:$0xff]
        %v507 = vld [vmem:[%s5 + $0x18] sm:$0xff]
        %v508 = vld [vmem:[%s6] sm:$0x1]
        %v510 = vperm.slane %v508, 0
        %v513 = vsel %vm480, %v470, 0
        %515 = vmatpush.msra.mxu0 0.0
        %516 = vmatpush.msra.mxu0 0.0
        %517 = vmatpush.msra.mxu0 0.0
        %518 = vmatpush.msra.mxu0 0.0
        %519 = vmatpush.msra.mxu0 0.0
        %520 = vmatpush.msra.mxu0 0.0
        %521 = vmatpush.msra.mxu0 0.0
        %522 = vmatpush.msra.mxu0 0.0
        %523 = vmatpush.msra.mxu0 0.0
        %524 = vmatpush.msra.mxu0 0.0
        %525 = vmatpush.msra.mxu0 0.0
        %526 = vmatpush.msra.mxu0 0.0
        %527 = vmatpush.msra.mxu0 %v507
        %528 = vmatpush.msra.mxu0 %v506
        %529 = vmatpush.msra.mxu0 %v505
        %530 = vmatpush.msra.mxu0 %v504
        %531 = vmatmul.f32.gmra.mxu0 %v513
        %v532 = vpop.f32.mrf.mxu0
        %v533 = vadd.f32 %v510, %v532
        %534 = vdwg.mxu0
        %vm535 = vcmask 64512
        %v537 = vsel %vm535, %v502, 0
        %v540 = vsel %vm535, %v533, 0
        %542 = vmatpush.xpose.msra.mxu0 0.0
        %543 = vmatpush.xpose.msra.mxu0 0.0
        %544 = vmatpush.xpose.msra.mxu0 0.0
        %545 = vmatpush.xpose.msra.mxu0 0.0
        %546 = vmatpush.xpose.msra.mxu0 0.0
        %547 = vmatpush.xpose.msra.mxu0 0.0
        %548 = vmatpush.xpose.msra.mxu0 0.0
        %549 = vmatpush.xpose.msra.mxu0 0.0
        %550 = vmatpush.xpose.msra.mxu0 0.0
        %551 = vmatpush.xpose.msra.mxu0 0.0
        %552 = vmatpush.xpose.msra.mxu0 0.0
        %553 = vmatpush.xpose.msra.mxu0 0.0
        %554 = vmatpush.xpose.msra.mxu0 0.0
        %555 = vmatpush.xpose.msra.mxu0 0.0
        %556 = vmatpush.xpose.msra.mxu0 0.0
        %557 = vmatpush.xpose.msra.mxu0 %v540
        %558 = vmatmul.f32.gmra.mxu0 %v537
        %v559 = vpop.f32.mrf.mxu0
        %v560 = vadd.f32 0.0, %v559
        %561 = vdwg.mxu0
        %v562 = vmul.f32 %v560, 0.35355338
        %vm563 = vcmp.eq.f32.partialorder %v471, 0.0
        %v564 = vsel %vm563, -1e+09, %v562
        %v565 = vsel %vm535, %v564, -inf
        %566 = vmax.xlane.f32.xlu0 %v565
        %v567 = vpop.xlane.xlu0 %566
        %v568 = vsub.f32 %v564, %v567
        %v569 = vmul.f32 %v568, 1.442695
        %v570 = vpow.pop %v569
        %v571 = vsel %vm535, %v570, 0.0
        %572 = vadd.xlane.f32.xlu0 %v571
        %v573 = vpop.xlane.xlu0 %572
        %v574 = vrcp.pop %v573
        %v575 = vmul.f32 %v573, %v574
        %v576 = vsub.f32 1.0, %v575
        %v577 = vmul.f32 %v574, %v576
        %v578 = vadd.f32 %v574, %v577
        %vm579 = vweird.f32 %v573
        %vm580 = vweird.f32 %v574
        %vm581 = vmor %vm579, %vm580
        %v582 = vsel %vm581, %v574, %v578
        %v583 = vand.u32 2147483647, %v573
        %vm584 = vcmp.eq.f32.partialorder %v583, 8.507059e+37
        %v585 = vand.u32 %v573, 2147483648
        %v586 = vor.u32 1.1754944e-38, %v585
        %v587 = vsel %vm584, %v586, %v582
        %v588 = vmul.f32 %v570, %v587
        %589 = vst.msk [vmem:[%s452] sm:$0xff] %vm535, %v588
        %590 = vrot.lane.b32.xlu0 %v533, 96
        %v591 = vpop.permute.xlu0 %590
        %v594 = vsel %vm535, %v588, 0
        %596 = vmatpush.msra.mxu0 0.0
        %597 = vmatpush.msra.mxu0 0.0
        %598 = vmatpush.msra.mxu0 0.0
        %599 = vmatpush.msra.mxu0 0.0
        %600 = vmatpush.msra.mxu0 0.0
        %601 = vmatpush.msra.mxu0 0.0
        %602 = vmatpush.msra.mxu0 0.0
        %603 = vmatpush.msra.mxu0 0.0
        %604 = vmatpush.msra.mxu0 0.0
        %605 = vmatpush.msra.mxu0 0.0
        %606 = vmatpush.msra.mxu0 0.0
        %607 = vmatpush.msra.mxu0 0.0
        %608 = vmatpush.msra.mxu0 0.0
        %609 = vmatpush.msra.mxu0 0.0
        %610 = vmatpush.msra.mxu0 0.0
        %611 = vmatpush.msra.mxu0 %v591
        %612 = vmatmul.f32.gmra.mxu0 %v594
        %v613 = vpop.f32.mrf.mxu0
        %v614 = vadd.f32 0.0, %v613
        %615 = vdwg.mxu0
        %616 = vrot.lane.b32.xlu0 %v502, 120
        %v617 = vpop.permute.xlu0 %616
        %618 = vrot.lane.b32.xlu0 %v533, 120
        %v619 = vpop.permute.xlu0 %618
        %v620 = vsel %vm535, %v617, 0
        %v622 = vsel %vm535, %v619, 0
        %624 = vmatpush.xpose.msra.mxu0 0.0
        %625 = vmatpush.xpose.msra.mxu0 0.0
        %626 = vmatpush.xpose.msra.mxu0 0.0
        %627 = vmatpush.xpose.msra.mxu0 0.0
        %628 = vmatpush.xpose.msra.mxu0 0.0
        %629 = vmatpush.xpose.msra.mxu0 0.0
        %630 = vmatpush.xpose.msra.mxu0 0.0
        %631 = vmatpush.xpose.msra.mxu0 0.0
        %632 = vmatpush.xpose.msra.mxu0 0.0
        %633 = vmatpush.xpose.msra.mxu0 0.0
        %634 = vmatpush.xpose.msra.mxu0 0.0
        %635 = vmatpush.xpose.msra.mxu0 0.0
        %636 = vmatpush.xpose.msra.mxu0 0.0
        %637 = vmatpush.xpose.msra.mxu0 0.0
        %638 = vmatpush.xpose.msra.mxu0 0.0
        %639 = vmatpush.xpose.msra.mxu0 %v622
        %640 = vmatmul.f32.gmra.mxu0 %v620
        %v641 = vpop.f32.mrf.mxu0
        %v642 = vadd.f32 0.0, %v641
        %643 = vdwg.mxu0
        %v644 = vmul.f32 %v642, 0.35355338
        %v645 = vsel %vm563, -1e+09, %v644
        %v646 = vsel %vm535, %v645, -inf
        %647 = vmax.xlane.f32.xlu0 %v646
        %v648 = vpop.xlane.xlu0 %647
        %v649 = vsub.f32 %v645, %v648
        %v650 = vmul.f32 %v649, 1.442695
        %v651 = vpow.pop %v650
        %v652 = vsel %vm535, %v651, 0.0
        %653 = vadd.xlane.f32.xlu0 %v652
        %v654 = vpop.xlane.xlu0 %653
        %v655 = vrcp.pop %v654
        %v656 = vmul.f32 %v654, %v655
        %v657 = vsub.f32 1.0, %v656
        %v658 = vmul.f32 %v655, %v657
        %v659 = vadd.f32 %v655, %v658
        %vm660 = vweird.f32 %v654
        %vm661 = vweird.f32 %v655
        %vm662 = vmor %vm660, %vm661
        %v663 = vsel %vm662, %v655, %v659
        %v664 = vand.u32 2147483647, %v654
        %vm665 = vcmp.eq.f32.partialorder %v664, 8.507059e+37
        %v666 = vand.u32 %v654, 2147483648
        %v667 = vor.u32 1.1754944e-38, %v666
        %v668 = vsel %vm665, %v667, %v663
        %v669 = vmul.f32 %v651, %v668
        %s670 = scalar_lea.vmem %s452, 8 [#allocation5]
        %671 = vst.msk [vmem:[%s670] sm:$0xff] %vm535, %v669
        %672 = vrot.lane.b32.xlu0 %v533, 88
        %v673 = vpop.permute.xlu0 %672
        %v676 = vsel %vm535, %v669, 0
        %678 = vmatpush.msra.mxu0 0.0
        %679 = vmatpush.msra.mxu0 0.0
        %680 = vmatpush.msra.mxu0 0.0
        %681 = vmatpush.msra.mxu0 0.0
        %682 = vmatpush.msra.mxu0 0.0
        %683 = vmatpush.msra.mxu0 0.0
        %684 = vmatpush.msra.mxu0 0.0
        %685 = vmatpush.msra.mxu0 0.0
        %686 = vmatpush.msra.mxu0 0.0
        %687 = vmatpush.msra.mxu0 0.0
        %688 = vmatpush.msra.mxu0 0.0
        %689 = vmatpush.msra.mxu0 0.0
        %690 = vmatpush.msra.mxu0 0.0
        %691 = vmatpush.msra.mxu0 0.0
        %692 = vmatpush.msra.mxu0 0.0
        %693 = vmatpush.msra.mxu0 %v673
        %694 = vmatmul.f32.gmra.mxu0 %v676
        %v695 = vpop.f32.mrf.mxu0
        %v696 = vadd.f32 0.0, %v695
        %697 = vdwg.mxu0
        %698 = vrot.lane.b32.xlu0 %v502, 112
        %v699 = vpop.permute.xlu0 %698
        %700 = vrot.lane.b32.xlu0 %v533, 112
        %v701 = vpop.permute.xlu0 %700
        %v702 = vsel %vm535, %v699, 0
        %v704 = vsel %vm535, %v701, 0
        %706 = vmatpush.xpose.msra.mxu0 0.0
        %707 = vmatpush.xpose.msra.mxu0 0.0
        %708 = vmatpush.xpose.msra.mxu0 0.0
        %709 = vmatpush.xpose.msra.mxu0 0.0
        %710 = vmatpush.xpose.msra.mxu0 0.0
        %711 = vmatpush.xpose.msra.mxu0 0.0
        %712 = vmatpush.xpose.msra.mxu0 0.0
        %713 = vmatpush.xpose.msra.mxu0 0.0
        %714 = vmatpush.xpose.msra.mxu0 0.0
        %715 = vmatpush.xpose.msra.mxu0 0.0
        %716 = vmatpush.xpose.msra.mxu0 0.0
        %717 = vmatpush.xpose.msra.mxu0 0.0
        %718 = vmatpush.xpose.msra.mxu0 0.0
        %719 = vmatpush.xpose.msra.mxu0 0.0
        %720 = vmatpush.xpose.msra.mxu0 0.0
        %721 = vmatpush.xpose.msra.mxu0 %v704
        %722 = vmatmul.f32.gmra.mxu0 %v702
        %v723 = vpop.f32.mrf.mxu0
        %v724 = vadd.f32 0.0, %v723
        %725 = vdwg.mxu0
        %v726 = vmul.f32 %v724, 0.35355338
        %v727 = vsel %vm563, -1e+09, %v726
        %v728 = vsel %vm535, %v727, -inf
        %729 = vmax.xlane.f32.xlu0 %v728
        %v730 = vpop.xlane.xlu0 %729
        %v731 = vsub.f32 %v727, %v730
        %v732 = vmul.f32 %v731, 1.442695
        %v733 = vpow.pop %v732
        %v734 = vsel %vm535, %v733, 0.0
        %735 = vadd.xlane.f32.xlu0 %v734
        %v736 = vpop.xlane.xlu0 %735
        %v737 = vrcp.pop %v736
        %v738 = vmul.f32 %v736, %v737
        %v739 = vsub.f32 1.0, %v738
        %v740 = vmul.f32 %v737, %v739
        %v741 = vadd.f32 %v737, %v740
        %vm742 = vweird.f32 %v736
        %vm743 = vweird.f32 %v737
        %vm744 = vmor %vm742, %vm743
        %v745 = vsel %vm744, %v737, %v741
        %v746 = vand.u32 2147483647, %v736
        %vm747 = vcmp.eq.f32.partialorder %v746, 8.507059e+37
        %v748 = vand.u32 %v736, 2147483648
        %v749 = vor.u32 1.1754944e-38, %v748
        %v750 = vsel %vm747, %v749, %v745
        %v751 = vmul.f32 %v733, %v750
        %s752 = scalar_lea.vmem %s452, 16 [#allocation5]
        %753 = vst.msk [vmem:[%s752] sm:$0xff] %vm535, %v751
        %754 = vrot.lane.b32.xlu0 %v533, 80
        %v755 = vpop.permute.xlu0 %754
        %v758 = vsel %vm535, %v751, 0
        %760 = vmatpush.msra.mxu0 0.0
        %761 = vmatpush.msra.mxu0 0.0
        %762 = vmatpush.msra.mxu0 0.0
        %763 = vmatpush.msra.mxu0 0.0
        %764 = vmatpush.msra.mxu0 0.0
        %765 = vmatpush.msra.mxu0 0.0
        %766 = vmatpush.msra.mxu0 0.0
        %767 = vmatpush.msra.mxu0 0.0
        %768 = vmatpush.msra.mxu0 0.0
        %769 = vmatpush.msra.mxu0 0.0
        %770 = vmatpush.msra.mxu0 0.0
        %771 = vmatpush.msra.mxu0 0.0
        %772 = vmatpush.msra.mxu0 0.0
        %773 = vmatpush.msra.mxu0 0.0
        %774 = vmatpush.msra.mxu0 0.0
        %775 = vmatpush.msra.mxu0 %v755
        %776 = vmatmul.f32.gmra.mxu0 %v758
        %v777 = vpop.f32.mrf.mxu0
        %v778 = vadd.f32 0.0, %v777
        %779 = vdwg.mxu0
        %780 = vrot.lane.b32.xlu0 %v502, 104
        %v781 = vpop.permute.xlu0 %780
        %782 = vrot.lane.b32.xlu0 %v533, 104
        %v783 = vpop.permute.xlu0 %782
        %v784 = vsel %vm535, %v781, 0
        %v786 = vsel %vm535, %v783, 0
        %788 = vmatpush.xpose.msra.mxu0 0.0
        %789 = vmatpush.xpose.msra.mxu0 0.0
        %790 = vmatpush.xpose.msra.mxu0 0.0
        %791 = vmatpush.xpose.msra.mxu0 0.0
        %792 = vmatpush.xpose.msra.mxu0 0.0
        %793 = vmatpush.xpose.msra.mxu0 0.0
        %794 = vmatpush.xpose.msra.mxu0 0.0
        %795 = vmatpush.xpose.msra.mxu0 0.0
        %796 = vmatpush.xpose.msra.mxu0 0.0
        %797 = vmatpush.xpose.msra.mxu0 0.0
        %798 = vmatpush.xpose.msra.mxu0 0.0
        %799 = vmatpush.xpose.msra.mxu0 0.0
        %800 = vmatpush.xpose.msra.mxu0 0.0
        %801 = vmatpush.xpose.msra.mxu0 0.0
        %802 = vmatpush.xpose.msra.mxu0 0.0
        %803 = vmatpush.xpose.msra.mxu0 %v786
        %804 = vmatmul.f32.gmra.mxu0 %v784
        %v805 = vpop.f32.mrf.mxu0
        %v806 = vadd.f32 0.0, %v805
        %807 = vdwg.mxu0
        %v808 = vmul.f32 %v806, 0.35355338
        %v809 = vsel %vm563, -1e+09, %v808
        %v810 = vsel %vm535, %v809, -inf
        %811 = vmax.xlane.f32.xlu0 %v810
        %v812 = vpop.xlane.xlu0 %811
        %v813 = vsub.f32 %v809, %v812
        %v814 = vmul.f32 %v813, 1.442695
        %v815 = vpow.pop %v814
        %v816 = vsel %vm535, %v815, 0.0
        %817 = vadd.xlane.f32.xlu0 %v816
        %v818 = vpop.xlane.xlu0 %817
        %v819 = vrcp.pop %v818
        %v820 = vmul.f32 %v818, %v819
        %v821 = vsub.f32 1.0, %v820
        %v822 = vmul.f32 %v819, %v821
        %v823 = vadd.f32 %v819, %v822
        %vm824 = vweird.f32 %v818
        %vm825 = vweird.f32 %v819
        %vm826 = vmor %vm824, %vm825
        %v827 = vsel %vm826, %v819, %v823
        %v828 = vand.u32 2147483647, %v818
        %vm829 = vcmp.eq.f32.partialorder %v828, 8.507059e+37
        %v830 = vand.u32 %v818, 2147483648
        %v831 = vor.u32 1.1754944e-38, %v830
        %v832 = vsel %vm829, %v831, %v827
        %v833 = vmul.f32 %v815, %v832
        %s834 = scalar_lea.vmem %s452, 24 [#allocation5]
        %835 = vst.msk [vmem:[%s834] sm:$0xff] %vm535, %v833
        %836 = vrot.lane.b32.xlu0 %v533, 72
        %v837 = vpop.permute.xlu0 %836
        %v840 = vsel %vm535, %v833, 0
        %842 = vmatpush.msra.mxu0 0.0
        %843 = vmatpush.msra.mxu0 0.0
        %844 = vmatpush.msra.mxu0 0.0
        %845 = vmatpush.msra.mxu0 0.0
        %846 = vmatpush.msra.mxu0 0.0
        %847 = vmatpush.msra.mxu0 0.0
        %848 = vmatpush.msra.mxu0 0.0
        %849 = vmatpush.msra.mxu0 0.0
        %850 = vmatpush.msra.mxu0 0.0
        %851 = vmatpush.msra.mxu0 0.0
        %852 = vmatpush.msra.mxu0 0.0
        %853 = vmatpush.msra.mxu0 0.0
        %854 = vmatpush.msra.mxu0 0.0
        %855 = vmatpush.msra.mxu0 0.0
        %856 = vmatpush.msra.mxu0 0.0
        %857 = vmatpush.msra.mxu0 %v837
        %858 = vmatmul.f32.gmra.mxu0 %v840
        %v859 = vpop.f32.mrf.mxu0
        %v860 = vadd.f32 0.0, %v859
        %861 = vdwg.mxu0
        %863 = vrot.lane.b32.xlu0 %v696, 8
        %v864 = vpop.permute.xlu0 %863
        %867 = vrot.lane.b32.xlu0 %v778, 16
        %v868 = vpop.permute.xlu0 %867
        %871 = vrot.lane.b32.xlu0 %v860, 24
        %v872 = vpop.permute.xlu0 %871
        %v874 = vsel %vm535, %v614, %v864
        %vm875 = vcmask 130048
        %v876 = vsel %vm875, %v874, %v868
        %vm877 = vcmask 195584
        %v878 = vsel %vm877, %v876, %v872
        %v879 = vld [vmem:[%s7] sm:$0xff]
        %v880 = vld [vmem:[%s7 + $0x8] sm:$0xff]
        %v881 = vld [vmem:[%s7 + $0x10] sm:$0xff]
        %v882 = vld [vmem:[%s7 + $0x18] sm:$0xff]
        %v883 = vld [vmem:[%s8] sm:$0x1]
        %v885 = vperm.slane %v883, 0
        %v888 = vsel %vm480, %v878, 0
        %890 = vmatpush.msra.mxu0 0.0
        %891 = vmatpush.msra.mxu0 0.0
        %892 = vmatpush.msra.mxu0 0.0
        %893 = vmatpush.msra.mxu0 0.0
        %894 = vmatpush.msra.mxu0 0.0
        %895 = vmatpush.msra.mxu0 0.0
        %896 = vmatpush.msra.mxu0 0.0
        %897 = vmatpush.msra.mxu0 0.0
        %898 = vmatpush.msra.mxu0 0.0
        %899 = vmatpush.msra.mxu0 0.0
        %900 = vmatpush.msra.mxu0 0.0
        %901 = vmatpush.msra.mxu0 0.0
        %902 = vmatpush.msra.mxu0 %v882
        %903 = vmatpush.msra.mxu0 %v881
        %904 = vmatpush.msra.mxu0 %v880
        %905 = vmatpush.msra.mxu0 %v879
        %906 = vmatmul.f32.gmra.mxu0 %v888
        %v907 = vpop.f32.mrf.mxu0
        %v908 = vadd.f32 %v885, %v907
        %909 = vdwg.mxu0
        %v910 = vadd.f32 %v469, %v908
        %v911 = vsel %vm480, %v910, 0.0
        %912 = vadd.xlane.f32.xlu0 %v911
        %v913 = vpop.xlane.xlu0 %912
        %v914 = vrcp.pop 32.0
        %v915 = vmul.f32 32.0, %v914
        %v916 = vsub.f32 1.0, %v915
        %v917 = vmul.f32 %v914, %v916
        %v918 = vadd.f32 %v914, %v917
        %vm919 = vweird.f32 %v914
        %v920 = vsel %vm919, %v914, %v918
        %v921 = vmul.f32 %v913, %v920
        %v922 = vsub.f32 %v910, %v921
        %v923 = vmul.f32 %v922, %v922
        %v924 = vsel %vm480, %v923, 0.0
        %925 = vadd.xlane.f32.xlu0 %v924
        %v926 = vpop.xlane.xlu0 %925
        %v927 = vmul.f32 %v926, %v920
        %v928 = vadd.f32 %v927, 1e-05
        %v929 = vrsqrt.pop %v928
        %v930 = vmul.f32 %v929, %v928
        %v931 = vmul.f32 %v930, %v929
        %v932 = vmul.f32 0.5, %v931
        %v933 = vsub.f32 1.5, %v932
        %v934 = vmul.f32 %v929, %v933
        %vm935 = vweird.f32 %v928
        %vm936 = vweird.f32 %v929
        %vm937 = vmor %vm935, %vm936
        %v938 = vsel %vm937, %v929, %v934
        %v939 = vmul.f32 %v922, %v938
        %v940 = vld [vmem:[%s9] sm:$0x1]
        %v942 = vperm.slane %v940, 0
        %v944 = vmul.f32 %v939, %v942
        %v945 = vld [vmem:[#allocation2] sm:$0x1]
        %v947 = vperm.slane %v945, 0
        %v949 = vadd.f32 %v944, %v947
        %950 = vst.msk [vmem:[%s468] sm:$0xff] %vm480, %v949
        %p951 = scmp.lt.s32.totalorder %s28, 1
        %s952 = scalar_select %p951, %s28, 1
        %s953 = smul.addr %s952, 8
        %s954 = scalar_lea.vmem %s11, %s953
        %s955 = sand.u32 %s308, 1
        %s956 = scalar_lea.sflag [#allocation4], %s955
        %s957 = sand.u32 %s308, 1
        %s958 = smul.addr %s957, 32
        %s959 = scalar_lea.vmem [#allocation5], %s958
        // Predicated region
        $region69: #{decoder_forward.13} parent=63 // pred_check
          %p960 = pneg %p292
        $region70: #{decoder_forward.13} parent=63 // pred_check_branch
          %962 = sbr.rel (%p960) target = $region72
        $region71: #{decoder_forward.13} parent=63 // pred_region
          _
        $region72: #{decoder_forward.13} parent=63 // pred_fallthru
          _
        // Predicated region
        $region73: #{decoder_forward.13} parent=63 // pred_check
          %p963 = pneg %p318
        $region74: #{decoder_forward.13} parent=63 // pred_check_branch
          %965 = sbr.rel (%p963) target = $region76
        $region75: #{decoder_forward.13} parent=63 // pred_region
          %967 = vsyncadd %s956, 0
          %s968 = smul.addr %s28, 4
          %s969 = smul.addr %s968, 8
          %s970 = scalar_lea.hbm %s12, %s969
          %s971 = sshll.u32 %s959, 4
          %s972 = int_to_ptr.vmem [resolvable:$true] %s971
          %s973 = sshll.u32 %s970, 4
          %s974 = int_to_ptr.hbm [resolvable:$true] %s973
          %979 = dma.vmem_to_hbm [thread:$0]  %s972, 512, %s974, %s956, 128, 128, 8
        $region76: #{decoder_forward.13} parent=63 // pred_fallthru
          _
      $region64: #{decoder_forward.13} parent=5 // pred_fallthru
        _
      %p980 = scmp.le.s32.totalorder 2, %s23
      // Predicated region
      $region77: #{decoder_forward.13} parent=5 // pred_check
        %p981 = pneg %p980
      $region78: #{decoder_forward.13} parent=5 // pred_check_branch
        %983 = sbr.rel (%p981) target = $region80
      $region79: #{decoder_forward.13} parent=5 // pred_region
        %s984 = ssub.s32 %s23, 2
        // Predicated region
        $region81: #{decoder_forward.13} parent=79 // pred_check
          %p985 = pneg %p298
        $region82: #{decoder_forward.13} parent=79 // pred_check_branch
          %987 = sbr.rel (%p985) target = $region84
        $region83: #{decoder_forward.13} parent=79 // pred_region
          %p988 = scmp.lt.s32.totalorder %s29, 1
          %s989 = scalar_select %p988, %s29, 1
          %s990 = smul.addr %s989, 8
          %s991 = scalar_lea.vmem %s11, %s990
        $region84: #{decoder_forward.13} parent=79 // pred_fallthru
          _
        // Predicated region
        $region85: #{decoder_forward.13} parent=79 // pred_check
          %p992 = pneg %p324
        $region86: #{decoder_forward.13} parent=79 // pred_check_branch
          %994 = sbr.rel (%p992) target = $region88
        $region87: #{decoder_forward.13} parent=79 // pred_region
          %s995 = sand.u32 %s309, 1
          %s996 = scalar_lea.sflag [#allocation4], %s995
          %s997 = sand.u32 %s309, 1
          %s998 = smul.addr %s997, 32
          %s999 = scalar_lea.vmem [#allocation5], %s998
          %1001 = dma.done %s996, 512
        $region88: #{decoder_forward.13} parent=79 // pred_fallthru
          _
      $region80: #{decoder_forward.13} parent=5 // pred_fallthru
        _
    $region6: #{decoder_forward.13} parent=1 // loop_footer
      %s27 = sadd.s32 1, %s23
    $region7: #{decoder_forward.13} parent=1 // loop_footer_branch
      %22 = sbr.rel target = $region3
    $region8: #{decoder_forward.13} parent=1 // loop_exit
      _
    %1002 = vsyncpa [#allocation3], 1
    %s1003 = scalar_lea.sflag [#allocation3], 1
    %1004 = vsyncpa %s1003, 1
    %1005 = vsyncpa [#allocation4], 1
    %s1006 = scalar_lea.sflag [#allocation4], 1
    %1007 = vsyncpa %s1006, 1

// kernel: decoder_forward.15
$region0: #{decoder_forward.15}
  #allocation0 [shape = 'u32[]', space=smem, size = 0x4, offset = 0x4, fixed_abs, tag = 'smem constant byte address 0x4 - core index']
  #allocation1 [shape = 'u32[72,128]{1,0:T(1,128)}', space=vmem, size = 0x9000, scoped, tag = 'internal scratch']
  %s0 = inlined_call_operand.vmem [shape: f32[2,8,32], index: 0, kind: input, shape index: {}]
  %s1 = inlined_call_operand.vmem [shape: f32[32,64], index: 1, kind: input, shape index: {}]
  %s2 = inlined_call_operand.vmem [shape: f32[1,64], index: 2, kind: input, shape index: {}]
  %s3 = inlined_call_operand.hbm [shape: f32[2,8,64], index: 3, kind: output, shape index: {}]
  %s4 = sld [smem:[#allocation0]]
  $region45: #{decoder_forward.15} parent=0
    _
  %s6 = ssub.s32 1, %s4
  %s7 = scalar_select 0, %s6, %s4
  $region1: #{decoder_forward.15} parent=0
    #allocation2 [shape = 'u8[8192]{0}', space=vmem, size = 0x2000, scoped, tag = 'output window, operand 0']
    #allocation3 [shape = 's32[2]{0}', space=sflag, size = 0x8, scoped, tag = 'scoped memory for decoder_forward.15']
    %8 = vsyncpa [#allocation3], 0
    %s9 = scalar_lea.sflag [#allocation3], 1
    %10 = vsyncpa %s9, 0
    loop: start=0, step=1, limit=4
    $region2: #{decoder_forward.15} parent=1 // loop_pre_header
      _
    $region3: #{decoder_forward.15} parent=1 // loop_header
      %s12 = sphi 0, %s16
      %p13 = scmp.ge.s32.totalorder %s12, 4
      %s22 = sphi 0, %s24
      %s25 = sphi 0, %s22
      %s26 = sphi 0, %s25
      %s42 = sphi 0, %s26
      %s46 = sphi 0, %s46
      %s48 = sphi 0, %s46
      %s49 = sphi 0, %s48
      %s63 = sphi 0, %s49
      %s67 = sphi 0, %s67
      %s69 = sphi 0, %s67
      %s70 = sphi 0, %s69
      %s84 = sphi 0, %s70
      %s90 = sphi 0, %s92
      %s93 = sphi 0, %s90
      %s94 = sphi 0, %s93
      %s110 = sphi 0, %s94
    $region4: #{decoder_forward.15} parent=1 // loop_header_branch
      %15 = sbr.rel (%p13) target = $region8
    $region5: #{decoder_forward.15} parent=1 // loop_body
      %s17 = ssub.s32 %s12, 1
      %s18 = ssub.s32 %s12, 2
      %s19 = sadd.s32 %s12, 1
      %s20 = ssub.s32 %s12, %s19
      %p21 = scmp.eq.s32.totalorder %s20, 0
      %s23 = sadd.s32 %s22, 1
      %s24 = scalar_select %p21, %s22, %s23
      %p27 = pneg %p21
      %p28 = scmp.eq.s32.totalorder %s12, 1
      %p29 = por %p27, %p28
      %p30 = scmp.ne.s32.totalorder %s22, %s25
      %p31 = scmp.eq.s32.totalorder %s12, 0
      %p32 = por %p30, %p31
      %p33 = scmp.ne.s32.totalorder %s22, %s25
      %p34 = scmp.eq.s32.totalorder %s17, 1
      %p35 = por %p33, %p34
      %p36 = scmp.ne.s32.totalorder %s25, %s26
      %p37 = scmp.eq.s32.totalorder %s17, 0
      %p38 = por %p36, %p37
      %p39 = scmp.ne.s32.totalorder %s25, %s26
      %p40 = scmp.eq.s32.totalorder %s18, 1
      %p41 = por %p39, %p40
      %p43 = scmp.ne.s32.totalorder %s26, %s42
      %p44 = scmp.eq.s32.totalorder %s18, 0
      %p45 = por %p43, %p44
      %s47 = sadd.s32 %s46, 1
      %p50 = scmp.eq.s32.totalorder %s12, 1
      %p51 = scmp.ne.s32.totalorder %s46, %s48
      %p52 = scmp.eq.s32.totalorder %s12, 0
      %p53 = por %p51, %p52
      %p54 = scmp.ne.s32.totalorder %s46, %s48
      %p55 = scmp.eq.s32.totalorder %s17, 1
      %p56 = por %p54, %p55
      %p57 = scmp.ne.s32.totalorder %s48, %s49
      %p58 = scmp.eq.s32.totalorder %s17, 0
      %p59 = por %p57, %p58
      %p60 = scmp.ne.s32.totalorder %s48, %s49
      %p61 = scmp.eq.s32.totalorder %s18, 1
      %p62 = por %p60, %p61
      %p64 = scmp.ne.s32.totalorder %s49, %s63
      %p65 = scmp.eq.s32.totalorder %s18, 0
      %p66 = por %p64, %p65
      %s68 = sadd.s32 %s67, 1
      %p71 = scmp.eq.s32.totalorder %s12, 1
      %p72 = scmp.ne.s32.totalorder %s67, %s69
      %p73 = scmp.eq.s32.totalorder %s12, 0
      %p74 = por %p72, %p73
      %p75 = scmp.ne.s32.totalorder %s67, %s69
      %p76 = scmp.eq.s32.totalorder %s17, 1
      %p77 = por %p75, %p76
      %p78 = scmp.ne.s32.totalorder %s69, %s70
      %p79 = scmp.eq.s32.totalorder %s17, 0
      %p80 = por %p78, %p79
      %p81 = scmp.ne.s32.totalorder %s69, %s70
      %p82 = scmp.eq.s32.totalorder %s18, 1
      %p83 = por %p81, %p82
      %p85 = scmp.ne.s32.totalorder %s70, %s84
      %p86 = scmp.eq.s32.totalorder %s18, 0
      %p87 = por %p85, %p86
      %s88 = ssub.s32 %s12, %s19
      %p89 = scmp.eq.s32.totalorder %s88, 0
      %s91 = sadd.s32 %s90, 1
      %s92 = scalar_select %p89, %s90, %s91
      %p95 = pneg %p89
      %p96 = scmp.eq.s32.totalorder %s12, 1
      %p97 = por %p95, %p96
      %p98 = scmp.ne.s32.totalorder %s90, %s93
      %p99 = scmp.eq.s32.totalorder %s12, 0
      %p100 = por %p98, %p99
      %p101 = scmp.ne.s32.totalorder %s90, %s93
      %p102 = scmp.eq.s32.totalorder %s17, 1
      %p103 = por %p101, %p102
      %p104 = scmp.ne.s32.totalorder %s93, %s94
      %p105 = scmp.eq.s32.totalorder %s17, 0
      %p106 = por %p104, %p105
      %p107 = scmp.ne.s32.totalorder %s93, %s94
      %p108 = scmp.eq.s32.totalorder %s18, 1
      %p109 = por %p107, %p108
      %p111 = scmp.ne.s32.totalorder %s94, %s110
      %p112 = scmp.eq.s32.totalorder %s18, 0
      %p113 = por %p111, %p112
      %p114 = scmp.le.s32.totalorder 1, %s12
      %p115 = scmp.lt.s32.totalorder %s12, 3
      %p116 = pnand %p114, %p115
      %p117 = pneg %p116
      // Predicated region
      $region9: #{decoder_forward.15} parent=5 // pred_check
        _
      $region10: #{decoder_forward.15} parent=5 // pred_check_branch
        %119 = sbr.rel (%p116) target = $region12
      $region11: #{decoder_forward.15} parent=5 // pred_region
        %s120 = ssub.s32 %s12, 1
        // Predicated region
        $region13: #{decoder_forward.15} parent=11 // pred_check
          %p121 = pneg %p59
        $region14: #{decoder_forward.15} parent=11 // pred_check_branch
          %123 = sbr.rel (%p121) target = $region16
        $region15: #{decoder_forward.15} parent=11 // pred_region
          _
        $region16: #{decoder_forward.15} parent=11 // pred_fallthru
          _
        // Predicated region
        $region17: #{decoder_forward.15} parent=11 // pred_check
          %p124 = pneg %p80
        $region18: #{decoder_forward.15} parent=11 // pred_check_branch
          %126 = sbr.rel (%p124) target = $region20
        $region19: #{decoder_forward.15} parent=11 // pred_region
          _
        $region20: #{decoder_forward.15} parent=11 // pred_fallthru
          _
      $region12: #{decoder_forward.15} parent=5 // pred_fallthru
        _
      %p127 = scmp.lt.s32.totalorder %s12, 2
      // Predicated region
      $region21: #{decoder_forward.15} parent=5 // pred_check
        %p128 = pneg %p127
      $region22: #{decoder_forward.15} parent=5 // pred_check_branch
        %130 = sbr.rel (%p128) target = $region24
      $region23: #{decoder_forward.15} parent=5 // pred_region
        // Predicated region
        $region25: #{decoder_forward.15} parent=23 // pred_check
          %p131 = pneg %p32
        $region26: #{decoder_forward.15} parent=23 // pred_check_branch
          %133 = sbr.rel (%p131) target = $region28
        $region27: #{decoder_forward.15} parent=23 // pred_region
          %p134 = scmp.lt.s32.totalorder %s12, 1
          %s135 = scalar_select %p134, %s12, 1
          %s136 = smul.addr %s135, 8
          %s137 = scalar_lea.vmem %s0, %s136
        $region28: #{decoder_forward.15} parent=23 // pred_fallthru
          _
      $region24: #{decoder_forward.15} parent=5 // pred_fallthru
        _
      %p138 = scmp.le.s32.totalorder 1, %s12
      %p139 = scmp.lt.s32.totalorder %s12, 3
      %p140 = pnand %p138, %p139
      %p141 = pneg %p140
      // Predicated region
      $region29: #{decoder_forward.15} parent=5 // pred_check
        _
      $region30: #{decoder_forward.15} parent=5 // pred_check_branch
        %143 = sbr.rel (%p140) target = $region32
      $region31: #{decoder_forward.15} parent=5 // pred_region
        %s144 = ssub.s32 %s12, 1
        %p145 = scmp.lt.s32.totalorder %s17, 1
        %s146 = scalar_select %p145, %s17, 1
        %s147 = smul.addr %s146, 8
        %s148 = scalar_lea.vmem %s0, %s147
        %p149 = pneg %p38
        %p150 = pneg %p35
        %p151 = pneg %p59
        %p152 = pneg %p56
        %p153 = pneg %p80
        %p154 = pneg %p77
        %p155 = pneg %p106
        %p156 = pneg %p103
        %s157 = sand.u32 %s93, 1
        %s158 = scalar_lea.sflag [#allocation3], %s157
        %s159 = sand.u32 %s93, 1
        %s160 = smul.addr %s159, 8
        %s161 = scalar_lea.vmem [#allocation2], %s160
        %p162 = scmp.lt.s32.totalorder %s17, 1
        %s163 = scalar_select %p162, %s17, 1
        %s164 = smul.addr %s163, 8
        %s165 = scalar_lea.vmem %s0, %s164
        %v166 = vld [vmem:[%s165] sm:$0xff]
        %v167 = vld [vmem:[%s1] sm:$0xff]
        %v168 = vld [vmem:[%s1 + $0x8] sm:$0xff]
        %v169 = vld [vmem:[%s1 + $0x10] sm:$0xff]
        %v170 = vld [vmem:[%s1 + $0x18] sm:$0xff]
        %v171 = vld [vmem:[%s2] sm:$0x1]
        %v173 = vperm.slane %v171, 0
        %vm175 = vcmask 261120
        %v177 = vsel %vm175, %v166, 0
        %179 = vmatpush.msra.mxu0 0.0
        %180 = vmatpush.msra.mxu0 0.0
        %181 = vmatpush.msra.mxu0 0.0
        %182 = vmatpush.msra.mxu0 0.0
        %183 = vmatpush.msra.mxu0 0.0
        %184 = vmatpush.msra.mxu0 0.0
        %185 = vmatpush.msra.mxu0 0.0
        %186 = vmatpush.msra.mxu0 0.0
        %187 = vmatpush.msra.mxu0 0.0
        %188 = vmatpush.msra.mxu0 0.0
        %189 = vmatpush.msra.mxu0 0.0
        %190 = vmatpush.msra.mxu0 0.0
        %191 = vmatpush.msra.mxu0 %v170
        %192 = vmatpush.msra.mxu0 %v169
        %193 = vmatpush.msra.mxu0 %v168
        %194 = vmatpush.msra.mxu0 %v167
        %195 = vmatmul.f32.gmra.mxu0 %v177
        %v196 = vpop.f32.mrf.mxu0
        %v197 = vadd.f32 %v173, %v196
        %198 = vdwg.mxu0
        %vm199 = vcmask 523264
        %200 = vst.msk [vmem:[%s161] sm:$0xff] %vm199, %v197
        %s201 = sand.u32 %s93, 1
        %s202 = scalar_lea.sflag [#allocation3], %s201
        %s203 = sand.u32 %s93, 1
        %s204 = smul.addr %s203, 8
        %s205 = scalar_lea.vmem [#allocation2], %s204
        // Predicated region
        $region33: #{decoder_forward.15} parent=31 // pred_check
          %p206 = pneg %p103
        $region34: #{decoder_forward.15} parent=31 // pred_check_branch
          %208 = sbr.rel (%p206) target = $region36
        $region35: #{decoder_forward.15} parent=31 // pred_region
          %210 = vsyncadd %s202, 0
          %s211 = smul.addr %s17, 8
          %s212 = scalar_lea.hbm %s3, %s211
          %s214 = sshll.u32 %s205, 4
          %s215 = int_to_ptr.vmem [resolvable:$true] %s214
          %s216 = sshll.u32 %s212, 4
          %s217 = int_to_ptr.hbm [resolvable:$true] %s216
          %219 = dma.vmem_to_hbm [thread:$0]  %s215, 128, %s217, %s202
        $region36: #{decoder_forward.15} parent=31 // pred_fallthru
          _
      $region32: #{decoder_forward.15} parent=5 // pred_fallthru
        _
      %p220 = scmp.le.s32.totalorder 2, %s12
      // Predicated region
      $region37: #{decoder_forward.15} parent=5 // pred_check
        %p221 = pneg %p220
      $region38: #{decoder_forward.15} parent=5 // pred_check_branch
        %223 = sbr.rel (%p221) target = $region40
      $region39: #{decoder_forward.15} parent=5 // pred_region
        %s224 = ssub.s32 %s12, 2
        // Predicated region
        $region41: #{decoder_forward.15} parent=39 // pred_check
          %p225 = pneg %p109
        $region42: #{decoder_forward.15} parent=39 // pred_check_branch
          %227 = sbr.rel (%p225) target = $region44
        $region43: #{decoder_forward.15} parent=39 // pred_region
          %s228 = sand.u32 %s94, 1
          %s229 = scalar_lea.sflag [#allocation3], %s228
          %s230 = sand.u32 %s94, 1
          %s231 = smul.addr %s230, 8
          %s232 = scalar_lea.vmem [#allocation2], %s231
          %234 = dma.done %s229, 128
        $region44: #{decoder_forward.15} parent=39 // pred_fallthru
          _
      $region40: #{decoder_forward.15} parent=5 // pred_fallthru
        _
    $region6: #{decoder_forward.15} parent=1 // loop_footer
      %s16 = sadd.s32 1, %s12
    $region7: #{decoder_forward.15} parent=1 // loop_footer_branch
      %11 = sbr.rel target = $region3
    $region8: #{decoder_forward.15} parent=1 // loop_exit
      _
    %235 = vsyncpa [#allocation3], 1
    %s236 = scalar_lea.sflag [#allocation3], 1
    %237 = vsyncpa %s236, 1

</llo_original>
